<compile_context>
chip_gen: v6e
topology: v6e:2x2x1
jax: 0.10.0
libtpu: 0.0.40
codegen_flags: <defaults>
</compile_context>

<pallas_src>
import jax
import jax.numpy as jnp
from jax import lax
from jax.experimental import pallas as pl
from jax.experimental.pallas import tpu as pltpu

_BN_EPS = 1e-5
_K = 3          # conv kernel size
_PAD = 2        # conv padding
_NEG_INF = float("-inf")
_VMEM = pl.BlockSpec(memory_space=pltpu.MemorySpace.VMEM)


def _round_up(x, m):
    return ((x + m - 1) // m) * m


# ------------------------------ fused CNN kernel -----------------------------
def _make_cnn_kernel(B, L, S):
    # Flat layout: B segments of fixed length S (S % 8 == 0, S >= L + 7).
    # Within a segment, valid rows per stage:
    #   conv1 input  : pos in [4, 4+L)          (zeros around it = conv1 pad)
    #   conv1 output : pos in [2, 2+L+2)
    #   pool1 output : pos in [2, 2+L+3)
    #   conv2 output : pos in [0, L+5)
    #   pool2 output : pos in [0, L+6)
    R = B * S
    Lc1, P1 = L + 2, L + 3          # conv1 / pool1 valid lengths
    Lc2, P2 = L + 5, L + 6          # conv2 / pool2 valid lengths
    OFF_X = 2 * _PAD                # input rows start (= 4)
    OFF_1 = OFF_X - _PAD            # conv1 / pool1 valid rows start (= 2)

    def kernel(x_ref, w1_ref, p1_ref, w2_ref, p2_ref, o_ref, xpad_ref):
        # x_ref  : (B, L, 768) f32  (raw input, no wrapper-side pad/cast)
        # w1_ref : (3, 768, 256) bf16   p1_ref: (3, 256) f32 [bias, gamma, beta]
        # w2_ref : (3, 256, 128) bf16   p2_ref: (3, 128) f32 [bias, gamma, beta]
        # o_ref  : (B*S, 128) f32, channels-last (lane-dense), valid rows pos<P2
        # xpad_ref: (B, S, 768) bf16 scratch for the padded conv1 input

        Cin = x_ref.shape[-1]
        # position of every flat row inside its batch segment
        pos = lax.broadcasted_iota(jnp.int32, (R, 1), 0) % S

        # ---- conv1 input: bf16 cast + zero padding done INSIDE the kernel ----
        xpad_ref[...] = jnp.zeros((B, S, Cin), jnp.bfloat16)
        xpad_ref[:, OFF_X:OFF_X + L, :] = x_ref[...].astype(jnp.bfloat16)
        x0 = xpad_ref[...].reshape(R, Cin)          # S % 8 == 0 -> aligned

        def shift_up(a, k):
            # a[r + k] for every flat row (tail zero-filled).  Rows whose conv
            # window crosses a segment boundary are invalid positions and are
            # masked out downstream, so the wrap-free fill is sufficient.
            z = jnp.zeros((k, a.shape[1]), a.dtype)
            return jnp.concatenate([a[k:], z], axis=0)

        def conv(x_bf, w_ref):
            # K=3 shifted matmuls over ALL B*S rows (M stays large on the MXU);
            # the narrow bf16 LHS is shifted, not the wide f32 result.
            acc = jnp.dot(x_bf, w_ref[0], preferred_element_type=jnp.float32)
            for k in range(1, _K):
                acc = acc + jnp.dot(shift_up(x_bf, k), w_ref[k],
                                    preferred_element_type=jnp.float32)
            return acc

        def batchnorm(v, mask, count, gamma, beta):
            # training-mode BatchNorm1d over the `count` valid rows only
            # (single pass, biased variance, clamped >= 0 for safety).
            vm = jnp.where(mask, v, 0.0)
            mean = jnp.sum(vm, axis=0, keepdims=True) * (1.0 / count)
            msq = jnp.sum(vm * vm, axis=0, keepdims=True) * (1.0 / count)
            var = jnp.maximum(msq - mean * mean, 0.0)
            # TODO(synk): at large B*L route these axis-0 reductions through the
            # MXU (ones-row matmul) to shorten the serial tail between blocks.
            return (v - mean) * lax.rsqrt(var + _BN_EPS) * gamma + beta

        def maxpool_2_1_1(v, in_mask):
            # MaxPool1d(kernel=2, stride=1, padding=1):
            #   out[p] = max(in[p-1], in[p]) with -inf outside the valid rows
            # (PyTorch pads max-pool with -inf).  Single whole-array shift.
            vm = jnp.where(in_mask, v, _NEG_INF)
            prev = jnp.concatenate(
                [jnp.full((1, v.shape[1]), _NEG_INF, v.dtype), vm[:-1]], axis=0)
            return jnp.maximum(prev, vm)

        # -------------- block 1: Conv -> ReLU -> BN -> MaxPool --------------
        y = conv(x0, w1_ref) + p1_ref[0:1, :]             # + conv1 bias
        y = jnp.maximum(y, 0.0)                           # ReLU
        m1 = (pos >= OFF_1) & (pos < OFF_1 + Lc1)         # valid conv1 rows
        y = batchnorm(y, m1, float(B * Lc1), p1_ref[1:2, :], p1_ref[2:3, :])
        y = maxpool_2_1_1(y, m1)                          # valid: [OFF_1, OFF_1+P1)

        # -------------- block 2: Conv -> BN -> ReLU -> MaxPool --------------
        mp1 = (pos >= OFF_1) & (pos < OFF_1 + P1)
        x2 = jnp.where(mp1, y, 0.0).astype(jnp.bfloat16)  # zeros == conv2 pad
        y = conv(x2, w2_ref) + p2_ref[0:1, :]             # + conv2 bias
        m2 = pos < Lc2                                    # valid conv2 rows
        y = batchnorm(y, m2, float(B * Lc2), p2_ref[1:2, :], p2_ref[2:3, :])
        y = jnp.maximum(y, 0.0)                           # ReLU
        y = maxpool_2_1_1(y, m2)                          # valid: [0, P2)

        # lane-dense 128-wide single store; slack rows zeroed
        o_ref[...] = jnp.where(pos < P2, y, 0.0)

    return kernel


# ---------------------------------- wrapper ----------------------------------
def cnn_forward(x, p):
    """x: (B, L, 768) -- exactly the tensor the PyTorch module receives."""
    B, L, Cin = x.shape
    P2 = L + 6
    S = _round_up(L + 2 * _PAD + _K, 8)      # fixed per-batch segment length
    C1 = p['conv1_w'].shape[0]               # 256
    C2 = p['conv2_w'].shape[0]               # 128

    # conv weights: PyTorch (Cout, Cin, K) -> per-tap (K, Cin, Cout), bf16
    # (f32 accumulation in-kernel; small deviation vs PyTorch f32 conv).
    w1 = jnp.transpose(p['conv1_w'], (2, 1, 0)).astype(jnp.bfloat16)
    w2 = jnp.transpose(p['conv2_w'], (2, 1, 0)).astype(jnp.bfloat16)

    # pack the six tiny per-channel vectors into two operands
    pp1 = jnp.stack([p['conv1_b'], p['bn1_g'], p['bn1_b']], axis=0)   # (3, 256)
    pp2 = jnp.stack([p['conv2_b'], p['bn2_g'], p['bn2_b']], axis=0)   # (3, 128)

    out_flat = pl.pallas_call(
        _make_cnn_kernel(B, L, S),
        out_shape=jax.ShapeDtypeStruct((B * S, C2), jnp.float32),
        in_specs=[_VMEM] * 5,
        out_specs=_VMEM,
        scratch_shapes=[pltpu.VMEM((B, S, Cin), jnp.bfloat16)],
        compiler_params=pltpu.CompilerParams(
            vmem_limit_bytes=64 * 1024 * 1024),
    )(x, w1, pp1, w2, pp2)

    # drop the per-segment slack rows and return PyTorch's NCW (B, 128, L+6).
    # (The channels-last (B, L+6, 128) view right before the transpose is what
    # a downstream LSTM matmul actually wants.)
    out = out_flat.reshape(B, S, C2)[:, :P2, :]
    return jnp.transpose(out, (0, 2, 1))


# --------------------------------- parameters --------------------------------
def init_params(key):
    ks = jax.random.split(key, 4)

    def u(k, shape, fan_in):
        bound = 1.0 / float(fan_in) ** 0.5
        return jax.random.uniform(k, shape, jnp.float32, -bound, bound)

    return {
        'conv1_w': u(ks[0], (256, 768, 3), 768 * 3),
        'conv1_b': u(ks[1], (256,), 768 * 3),
        'bn1_g': jnp.ones((256,), jnp.float32),
        'bn1_b': jnp.zeros((256,), jnp.float32),
        'conv2_w': u(ks[2], (128, 256, 3), 256 * 3),
        'conv2_b': u(ks[3], (128,), 256 * 3),
        'bn2_g': jnp.ones((128,), jnp.float32),
        'bn2_b': jnp.zeros((128,), jnp.float32),
    }


if __name__ == "__main__":
    key = jax.random.PRNGKey(0)
    k_x, k_p = jax.random.split(key)
    B, L = 2, 8                                    # input: (batch, seq, 768)
    x = jax.random.normal(k_x, (B, L, 768), jnp.float32)
    params = init_params(k_p)

    out = jax.jit(cnn_forward)(x, params)
    out = jax.block_until_ready(out)
    assert out.shape == (B, 128, L + 6) and out.dtype == jnp.float32
    assert bool(jnp.isfinite(out).all())
    print("KERNEL_OK")
</pallas_src>

<mosaic_0001>
module attributes {stable_mosaic.version = 11 : i64} {
  func.func @kernel(%arg0: memref<2x8x768xf32, #tpu.memory_space<vmem>>, %arg1: memref<3x768x256xbf16, #tpu.memory_space<vmem>>, %arg2: memref<3x256xf32, #tpu.memory_space<vmem>>, %arg3: memref<3x256x128xbf16, #tpu.memory_space<vmem>>, %arg4: memref<3x128xf32, #tpu.memory_space<vmem>>, %arg5: memref<32x128xf32, #tpu.memory_space<vmem>>, %arg6: memref<2x16x768xbf16, #tpu.memory_space<vmem>>) attributes {dimension_semantics = [], scalar_prefetch = 0 : i64, scratch_operands = 1 : i64, tpu.core_type = #tpu.core_type<tc>} {
    %0 = tpu.iota {dimensions = array<i32: 0>} : vector<32x1xi32>
    %c16_i32 = arith.constant 16 : i32
    %c0_i32 = arith.constant 0 : i32
    %1 = arith.cmpi eq, %c16_i32, %c0_i32 : i32
    %c1_i32 = arith.constant 1 : i32
    %2 = arith.select %1, %c1_i32, %c16_i32 : i32
    %3 = vector.broadcast %2 : i32 to vector<32x1xi32>
    %4 = arith.remsi %0, %3 : vector<32x1xi32>
    %c0_i32_0 = arith.constant 0 : i32
    %5 = vector.broadcast %c0_i32_0 : i32 to vector<32x1xi32>
    %6 = arith.cmpi ne, %4, %5 : vector<32x1xi32>
    %c0_i32_1 = arith.constant 0 : i32
    %7 = vector.broadcast %c0_i32_1 : i32 to vector<32x1xi32>
    %8 = arith.cmpi slt, %4, %7 : vector<32x1xi32>
    %c0_i32_2 = arith.constant 0 : i32
    %9 = arith.cmpi slt, %2, %c0_i32_2 : i32
    %10 = vector.broadcast %9 : i1 to vector<32x1xi1>
    %11 = vector.broadcast %10 : vector<32x1xi1> to vector<32x1xi1>
    %12 = arith.xori %8, %11 : vector<32x1xi1>
    %13 = arith.andi %12, %6 : vector<32x1xi1>
    %14 = vector.broadcast %2 : i32 to vector<32x1xi32>
    %15 = arith.addi %4, %14 : vector<32x1xi32>
    %16 = arith.select %13, %15, %4 : vector<32x1xi1>, vector<32x1xi32>
    %cst = arith.constant 0.000000e+00 : bf16
    %17 = vector.broadcast %cst : bf16 to vector<2x16x768xbf16>
    %c0 = arith.constant 0 : index
    %c0_3 = arith.constant 0 : index
    %c0_4 = arith.constant 0 : index
    %18 = vector.load %arg6[%c0, %c0_3, %c0_4] : memref<2x16x768xbf16, #tpu.memory_space<vmem>>, vector<2x16x768xbf16>
    tpu.vector_store %arg6[%c0, %c0_3, %c0_4], %17 {strides = array<i32>} : memref<2x16x768xbf16, #tpu.memory_space<vmem>>, vector<2x16x768xbf16>,
    %c0_5 = arith.constant 0 : index
    %c0_6 = arith.constant 0 : index
    %c0_7 = arith.constant 0 : index
    %19 = vector.load %arg0[%c0_5, %c0_6, %c0_7] : memref<2x8x768xf32, #tpu.memory_space<vmem>>, vector<2x8x768xf32>
    %20 = arith.truncf %19 : vector<2x8x768xf32> to vector<2x8x768xbf16>
    %c0_8 = arith.constant 0 : index
    %c4 = arith.constant 4 : index
    %c0_9 = arith.constant 0 : index
    %21 = vector.load %arg6[%c0_8, %c4, %c0_9] : memref<2x16x768xbf16, #tpu.memory_space<vmem>>, vector<2x8x768xbf16>
    tpu.vector_store %arg6[%c0_8, %c4, %c0_9], %20 {strides = array<i32>} : memref<2x16x768xbf16, #tpu.memory_space<vmem>>, vector<2x8x768xbf16>,
    %c0_10 = arith.constant 0 : index
    %c0_11 = arith.constant 0 : index
    %c0_12 = arith.constant 0 : index
    %22 = vector.load %arg6[%c0_10, %c0_11, %c0_12] : memref<2x16x768xbf16, #tpu.memory_space<vmem>>, vector<2x16x768xbf16>
    %23 = vector.shape_cast %22 : vector<2x16x768xbf16> to vector<32x768xbf16>
    %c0_13 = arith.constant 0 : index
    %c0_14 = arith.constant 0 : index
    %c0_15 = arith.constant 0 : index
    %24 = vector.load %arg1[%c0_13, %c0_14, %c0_15] : memref<3x768x256xbf16, #tpu.memory_space<vmem>>, vector<1x768x256xbf16>
    %25 = vector.shape_cast %24 : vector<1x768x256xbf16> to vector<768x256xbf16>
    %cst_16 = arith.constant dense<0.000000e+00> : vector<32x256xf32>
    %26 = tpu.matmul %23, %25, %cst_16 {dimension_numbers = #tpu.dot_dimension_numbers<[1], [0], [0], [1], [0, 0, 1, 1], [], []>} : vector<32x768xbf16>, vector<768x256xbf16>, vector<32x256xf32> -> vector<32x256xf32>
    %cst_17 = arith.constant 0.000000e+00 : bf16
    %27 = vector.broadcast %cst_17 : bf16 to vector<1x768xbf16>
    %28 = vector.extract_strided_slice %23 {offsets = [1, 0], sizes = [31, 768], strides = [1, 1]} : vector<32x768xbf16> to vector<31x768xbf16>
    %29 = tpu.concatenate %28, %27 in 0 : vector<31x768xbf16>, vector<1x768xbf16> -> vector<32x768xbf16>
    %c1 = arith.constant 1 : index
    %c0_18 = arith.constant 0 : index
    %c0_19 = arith.constant 0 : index
    %30 = vector.load %arg1[%c1, %c0_18, %c0_19] : memref<3x768x256xbf16, #tpu.memory_space<vmem>>, vector<1x768x256xbf16>
    %31 = vector.shape_cast %30 : vector<1x768x256xbf16> to vector<768x256xbf16>
    %cst_20 = arith.constant dense<0.000000e+00> : vector<32x256xf32>
    %32 = tpu.matmul %29, %31, %cst_20 {dimension_numbers = #tpu.dot_dimension_numbers<[1], [0], [0], [1], [0, 0, 1, 1], [], []>} : vector<32x768xbf16>, vector<768x256xbf16>, vector<32x256xf32> -> vector<32x256xf32>
    %33 = arith.addf %26, %32 : vector<32x256xf32>
    %cst_21 = arith.constant 0.000000e+00 : bf16
    %34 = vector.broadcast %cst_21 : bf16 to vector<2x768xbf16>
    %35 = vector.extract_strided_slice %23 {offsets = [2, 0], sizes = [30, 768], strides = [1, 1]} : vector<32x768xbf16> to vector<30x768xbf16>
    %36 = tpu.concatenate %35, %34 in 0 : vector<30x768xbf16>, vector<2x768xbf16> -> vector<32x768xbf16>
    %c2 = arith.constant 2 : index
    %c0_22 = arith.constant 0 : index
    %c0_23 = arith.constant 0 : index
    %37 = vector.load %arg1[%c2, %c0_22, %c0_23] : memref<3x768x256xbf16, #tpu.memory_space<vmem>>, vector<1x768x256xbf16>
    %38 = vector.shape_cast %37 : vector<1x768x256xbf16> to vector<768x256xbf16>
    %cst_24 = arith.constant dense<0.000000e+00> : vector<32x256xf32>
    %39 = tpu.matmul %36, %38, %cst_24 {dimension_numbers = #tpu.dot_dimension_numbers<[1], [0], [0], [1], [0, 0, 1, 1], [], []>} : vector<32x768xbf16>, vector<768x256xbf16>, vector<32x256xf32> -> vector<32x256xf32>
    %40 = arith.addf %33, %39 : vector<32x256xf32>
    %c0_25 = arith.constant 0 : index
    %c0_26 = arith.constant 0 : index
    %41 = vector.load %arg2[%c0_25, %c0_26] : memref<3x256xf32, #tpu.memory_space<vmem>>, vector<1x256xf32>
    %42 = vector.broadcast %41 : vector<1x256xf32> to vector<32x256xf32>
    %43 = arith.addf %40, %42 : vector<32x256xf32>
    %cst_27 = arith.constant 0.000000e+00 : f32
    %44 = vector.broadcast %cst_27 : f32 to vector<32x256xf32>
    %45 = arith.maximumf %43, %44 : vector<32x256xf32>
    %c2_i32 = arith.constant 2 : i32
    %46 = vector.broadcast %c2_i32 : i32 to vector<32x1xi32>
    %47 = arith.cmpi sge, %16, %46 : vector<32x1xi32>
    %c12_i32 = arith.constant 12 : i32
    %48 = vector.broadcast %c12_i32 : i32 to vector<32x1xi32>
    %49 = arith.cmpi slt, %16, %48 : vector<32x1xi32>
    %50 = arith.andi %47, %49 : vector<32x1xi1>
    %c1_28 = arith.constant 1 : index
    %c0_29 = arith.constant 0 : index
    %51 = vector.load %arg2[%c1_28, %c0_29] : memref<3x256xf32, #tpu.memory_space<vmem>>, vector<1x256xf32>
    %c2_30 = arith.constant 2 : index
    %c0_31 = arith.constant 0 : index
    %52 = vector.load %arg2[%c2_30, %c0_31] : memref<3x256xf32, #tpu.memory_space<vmem>>, vector<1x256xf32>
    %cst_32 = arith.constant 0.000000e+00 : f32
    %53 = vector.shape_cast %50 : vector<32x1xi1> to vector<32x1xi1>
    %54 = vector.broadcast %53 : vector<32x1xi1> to vector<32x256xi1>
    %55 = vector.broadcast %cst_32 : f32 to vector<32x256xf32>
    %56 = arith.select %54, %45, %55 : vector<32x256xi1>, vector<32x256xf32>
    %cst_33 = arith.constant dense<0.000000e+00> : vector<256xf32>
    %57 = vector.multi_reduction <add>, %56, %cst_33 [0] : vector<32x256xf32> to vector<256xf32>
    %58 = vector.shape_cast %57 : vector<256xf32> to vector<1x256xf32>
    %cst_34 = arith.constant 5.000000e-02 : f32
    %59 = vector.broadcast %cst_34 : f32 to vector<1x256xf32>
    %60 = arith.mulf %58, %59 : vector<1x256xf32>
    %61 = arith.mulf %56, %56 : vector<32x256xf32>
    %cst_35 = arith.constant dense<0.000000e+00> : vector<256xf32>
    %62 = vector.multi_reduction <add>, %61, %cst_35 [0] : vector<32x256xf32> to vector<256xf32>
    %63 = vector.shape_cast %62 : vector<256xf32> to vector<1x256xf32>
    %cst_36 = arith.constant 5.000000e-02 : f32
    %64 = vector.broadcast %cst_36 : f32 to vector<1x256xf32>
    %65 = arith.mulf %63, %64 : vector<1x256xf32>
    %66 = arith.mulf %60, %60 : vector<1x256xf32>
    %67 = arith.subf %65, %66 : vector<1x256xf32>
    %cst_37 = arith.constant 0.000000e+00 : f32
    %68 = vector.broadcast %cst_37 : f32 to vector<1x256xf32>
    %69 = arith.maximumf %67, %68 : vector<1x256xf32>
    %70 = vector.broadcast %60 : vector<1x256xf32> to vector<32x256xf32>
    %71 = arith.subf %45, %70 : vector<32x256xf32>
    %cst_38 = arith.constant 9.99999974E-6 : f32
    %72 = vector.broadcast %cst_38 : f32 to vector<1x256xf32>
    %73 = arith.addf %69, %72 : vector<1x256xf32>
    %74 = math.rsqrt %73 : vector<1x256xf32>
    %75 = vector.broadcast %74 : vector<1x256xf32> to vector<32x256xf32>
    %76 = arith.mulf %71, %75 : vector<32x256xf32>
    %77 = vector.broadcast %51 : vector<1x256xf32> to vector<32x256xf32>
    %78 = arith.mulf %76, %77 : vector<32x256xf32>
    %79 = vector.broadcast %52 : vector<1x256xf32> to vector<32x256xf32>
    %80 = arith.addf %78, %79 : vector<32x256xf32>
    %cst_39 = arith.constant 0xFF800000 : f32
    %81 = vector.shape_cast %50 : vector<32x1xi1> to vector<32x1xi1>
    %82 = vector.broadcast %81 : vector<32x1xi1> to vector<32x256xi1>
    %83 = vector.broadcast %cst_39 : f32 to vector<32x256xf32>
    %84 = arith.select %82, %80, %83 : vector<32x256xi1>, vector<32x256xf32>
    %cst_40 = arith.constant 0xFF800000 : f32
    %85 = vector.broadcast %cst_40 : f32 to vector<1x256xf32>
    %86 = vector.extract_strided_slice %84 {offsets = [0, 0], sizes = [31, 256], strides = [1, 1]} : vector<32x256xf32> to vector<31x256xf32>
    %87 = tpu.concatenate %85, %86 in 0 : vector<1x256xf32>, vector<31x256xf32> -> vector<32x256xf32>
    %88 = arith.maximumf %87, %84 : vector<32x256xf32>
    %c2_i32_41 = arith.constant 2 : i32
    %89 = vector.broadcast %c2_i32_41 : i32 to vector<32x1xi32>
    %90 = arith.cmpi sge, %16, %89 : vector<32x1xi32>
    %c13_i32 = arith.constant 13 : i32
    %91 = vector.broadcast %c13_i32 : i32 to vector<32x1xi32>
    %92 = arith.cmpi slt, %16, %91 : vector<32x1xi32>
    %93 = arith.andi %90, %92 : vector<32x1xi1>
    %cst_42 = arith.constant 0.000000e+00 : f32
    %94 = vector.shape_cast %93 : vector<32x1xi1> to vector<32x1xi1>
    %95 = vector.broadcast %94 : vector<32x1xi1> to vector<32x256xi1>
    %96 = vector.broadcast %cst_42 : f32 to vector<32x256xf32>
    %97 = arith.select %95, %88, %96 : vector<32x256xi1>, vector<32x256xf32>
    %98 = arith.truncf %97 : vector<32x256xf32> to vector<32x256xbf16>
    %c0_43 = arith.constant 0 : index
    %c0_44 = arith.constant 0 : index
    %c0_45 = arith.constant 0 : index
    %99 = vector.load %arg3[%c0_43, %c0_44, %c0_45] : memref<3x256x128xbf16, #tpu.memory_space<vmem>>, vector<1x256x128xbf16>
    %100 = vector.shape_cast %99 : vector<1x256x128xbf16> to vector<256x128xbf16>
    %cst_46 = arith.constant dense<0.000000e+00> : vector<32x128xf32>
    %101 = tpu.matmul %98, %100, %cst_46 {dimension_numbers = #tpu.dot_dimension_numbers<[1], [0], [0], [1], [0, 0, 1, 1], [], []>} : vector<32x256xbf16>, vector<256x128xbf16>, vector<32x128xf32> -> vector<32x128xf32>
    %cst_47 = arith.constant 0.000000e+00 : bf16
    %102 = vector.broadcast %cst_47 : bf16 to vector<1x256xbf16>
    %103 = vector.extract_strided_slice %98 {offsets = [1, 0], sizes = [31, 256], strides = [1, 1]} : vector<32x256xbf16> to vector<31x256xbf16>
    %104 = tpu.concatenate %103, %102 in 0 : vector<31x256xbf16>, vector<1x256xbf16> -> vector<32x256xbf16>
    %c1_48 = arith.constant 1 : index
    %c0_49 = arith.constant 0 : index
    %c0_50 = arith.constant 0 : index
    %105 = vector.load %arg3[%c1_48, %c0_49, %c0_50] : memref<3x256x128xbf16, #tpu.memory_space<vmem>>, vector<1x256x128xbf16>
    %106 = vector.shape_cast %105 : vector<1x256x128xbf16> to vector<256x128xbf16>
    %cst_51 = arith.constant dense<0.000000e+00> : vector<32x128xf32>
    %107 = tpu.matmul %104, %106, %cst_51 {dimension_numbers = #tpu.dot_dimension_numbers<[1], [0], [0], [1], [0, 0, 1, 1], [], []>} : vector<32x256xbf16>, vector<256x128xbf16>, vector<32x128xf32> -> vector<32x128xf32>
    %108 = arith.addf %101, %107 : vector<32x128xf32>
    %cst_52 = arith.constant 0.000000e+00 : bf16
    %109 = vector.broadcast %cst_52 : bf16 to vector<2x256xbf16>
    %110 = vector.extract_strided_slice %98 {offsets = [2, 0], sizes = [30, 256], strides = [1, 1]} : vector<32x256xbf16> to vector<30x256xbf16>
    %111 = tpu.concatenate %110, %109 in 0 : vector<30x256xbf16>, vector<2x256xbf16> -> vector<32x256xbf16>
    %c2_53 = arith.constant 2 : index
    %c0_54 = arith.constant 0 : index
    %c0_55 = arith.constant 0 : index
    %112 = vector.load %arg3[%c2_53, %c0_54, %c0_55] : memref<3x256x128xbf16, #tpu.memory_space<vmem>>, vector<1x256x128xbf16>
    %113 = vector.shape_cast %112 : vector<1x256x128xbf16> to vector<256x128xbf16>
    %cst_56 = arith.constant dense<0.000000e+00> : vector<32x128xf32>
    %114 = tpu.matmul %111, %113, %cst_56 {dimension_numbers = #tpu.dot_dimension_numbers<[1], [0], [0], [1], [0, 0, 1, 1], [], []>} : vector<32x256xbf16>, vector<256x128xbf16>, vector<32x128xf32> -> vector<32x128xf32>
    %115 = arith.addf %108, %114 : vector<32x128xf32>
    %c0_57 = arith.constant 0 : index
    %c0_58 = arith.constant 0 : index
    %116 = vector.load %arg4[%c0_57, %c0_58] : memref<3x128xf32, #tpu.memory_space<vmem>>, vector<1x128xf32>
    %117 = vector.broadcast %116 : vector<1x128xf32> to vector<32x128xf32>
    %118 = arith.addf %115, %117 : vector<32x128xf32>
    %c13_i32_59 = arith.constant 13 : i32
    %119 = vector.broadcast %c13_i32_59 : i32 to vector<32x1xi32>
    %120 = arith.cmpi slt, %16, %119 : vector<32x1xi32>
    %c1_60 = arith.constant 1 : index
    %c0_61 = arith.constant 0 : index
    %121 = vector.load %arg4[%c1_60, %c0_61] : memref<3x128xf32, #tpu.memory_space<vmem>>, vector<1x128xf32>
    %c2_62 = arith.constant 2 : index
    %c0_63 = arith.constant 0 : index
    %122 = vector.load %arg4[%c2_62, %c0_63] : memref<3x128xf32, #tpu.memory_space<vmem>>, vector<1x128xf32>
    %cst_64 = arith.constant 0.000000e+00 : f32
    %123 = vector.shape_cast %120 : vector<32x1xi1> to vector<32x1xi1>
    %124 = vector.broadcast %123 : vector<32x1xi1> to vector<32x128xi1>
    %125 = vector.broadcast %cst_64 : f32 to vector<32x128xf32>
    %126 = arith.select %124, %118, %125 : vector<32x128xi1>, vector<32x128xf32>
    %cst_65 = arith.constant dense<0.000000e+00> : vector<128xf32>
    %127 = vector.multi_reduction <add>, %126, %cst_65 [0] : vector<32x128xf32> to vector<128xf32>
    %128 = vector.shape_cast %127 : vector<128xf32> to vector<1x128xf32>
    %cst_66 = arith.constant 0.0384615399 : f32
    %129 = vector.broadcast %cst_66 : f32 to vector<1x128xf32>
    %130 = arith.mulf %128, %129 : vector<1x128xf32>
    %131 = arith.mulf %126, %126 : vector<32x128xf32>
    %cst_67 = arith.constant dense<0.000000e+00> : vector<128xf32>
    %132 = vector.multi_reduction <add>, %131, %cst_67 [0] : vector<32x128xf32> to vector<128xf32>
    %133 = vector.shape_cast %132 : vector<128xf32> to vector<1x128xf32>
    %cst_68 = arith.constant 0.0384615399 : f32
    %134 = vector.broadcast %cst_68 : f32 to vector<1x128xf32>
    %135 = arith.mulf %133, %134 : vector<1x128xf32>
    %136 = arith.mulf %130, %130 : vector<1x128xf32>
    %137 = arith.subf %135, %136 : vector<1x128xf32>
    %cst_69 = arith.constant 0.000000e+00 : f32
    %138 = vector.broadcast %cst_69 : f32 to vector<1x128xf32>
    %139 = arith.maximumf %137, %138 : vector<1x128xf32>
    %140 = vector.broadcast %130 : vector<1x128xf32> to vector<32x128xf32>
    %141 = arith.subf %118, %140 : vector<32x128xf32>
    %cst_70 = arith.constant 9.99999974E-6 : f32
    %142 = vector.broadcast %cst_70 : f32 to vector<1x128xf32>
    %143 = arith.addf %139, %142 : vector<1x128xf32>
    %144 = math.rsqrt %143 : vector<1x128xf32>
    %145 = vector.broadcast %144 : vector<1x128xf32> to vector<32x128xf32>
    %146 = arith.mulf %141, %145 : vector<32x128xf32>
    %147 = vector.broadcast %121 : vector<1x128xf32> to vector<32x128xf32>
    %148 = arith.mulf %146, %147 : vector<32x128xf32>
    %149 = vector.broadcast %122 : vector<1x128xf32> to vector<32x128xf32>
    %150 = arith.addf %148, %149 : vector<32x128xf32>
    %cst_71 = arith.constant 0.000000e+00 : f32
    %151 = vector.broadcast %cst_71 : f32 to vector<32x128xf32>
    %152 = arith.maximumf %150, %151 : vector<32x128xf32>
    %cst_72 = arith.constant 0xFF800000 : f32
    %153 = vector.shape_cast %120 : vector<32x1xi1> to vector<32x1xi1>
    %154 = vector.broadcast %153 : vector<32x1xi1> to vector<32x128xi1>
    %155 = vector.broadcast %cst_72 : f32 to vector<32x128xf32>
    %156 = arith.select %154, %152, %155 : vector<32x128xi1>, vector<32x128xf32>
    %cst_73 = arith.constant 0xFF800000 : f32
    %157 = vector.broadcast %cst_73 : f32 to vector<1x128xf32>
    %158 = vector.extract_strided_slice %156 {offsets = [0, 0], sizes = [31, 128], strides = [1, 1]} : vector<32x128xf32> to vector<31x128xf32>
    %159 = tpu.concatenate %157, %158 in 0 : vector<1x128xf32>, vector<31x128xf32> -> vector<32x128xf32>
    %160 = arith.maximumf %159, %156 : vector<32x128xf32>
    %c14_i32 = arith.constant 14 : i32
    %161 = vector.broadcast %c14_i32 : i32 to vector<32x1xi32>
    %162 = arith.cmpi slt, %16, %161 : vector<32x1xi32>
    %cst_74 = arith.constant 0.000000e+00 : f32
    %163 = vector.shape_cast %162 : vector<32x1xi1> to vector<32x1xi1>
    %164 = vector.broadcast %163 : vector<32x1xi1> to vector<32x128xi1>
    %165 = vector.broadcast %cst_74 : f32 to vector<32x128xf32>
    %166 = arith.select %164, %160, %165 : vector<32x128xi1>, vector<32x128xf32>
    %c0_75 = arith.constant 0 : index
    %c0_76 = arith.constant 0 : index
    %167 = vector.load %arg5[%c0_75, %c0_76] : memref<32x128xf32, #tpu.memory_space<vmem>>, vector<32x128xf32>
    tpu.vector_store %arg5[%c0_75, %c0_76], %166 {strides = array<i32>} : memref<32x128xf32, #tpu.memory_space<vmem>>, vector<32x128xf32>,
    return
  }
}

</mosaic_0001>

<llo_original>
// kernel: cnn_forward.1
$region0: #{cnn_forward.1}
  #allocation0 [shape = 'u32[]', space=smem, size = 0x4, offset = 0x4, fixed_abs, tag = 'smem constant byte address 0x4 - core index']
  #allocation1 [shape = 'u32[144,128]{1,0:T(1,128)}', space=vmem, size = 0x12000, scoped, tag = 'internal scratch']
  #allocation2 [shape = 'bf16[2,16,768]{2,1,0:T(8,128)(2,1)}', space=vmem, size = 0xc000, scoped, tag = 'scratch operand']
  %s0 = inlined_call_operand.vmem [shape: f32[2,8,768], index: 0, kind: input, shape index: {}]
  %s1 = inlined_call_operand.vmem [shape: bf16[3,768,256], index: 1, kind: input, shape index: {}]
  %s2 = inlined_call_operand.vmem [shape: f32[3,256], index: 2, kind: input, shape index: {}]
  %s3 = inlined_call_operand.vmem [shape: bf16[3,256,128], index: 3, kind: input, shape index: {}]
  %s4 = inlined_call_operand.vmem [shape: f32[3,128], index: 4, kind: input, shape index: {}]
  %s5 = inlined_call_operand.vmem [shape: f32[32,128], index: 5, kind: output, shape index: {}]
  %s6 = sld [smem:[#allocation0]]
  $region30: #{cnn_forward.1} parent=0
    _
  %s8 = ssub.s32 1, %s6
  %s9 = scalar_select 0, %s8, %s6
  // Predicated region
  $region2: #{cnn_forward.1} parent=0 // pred_check
    _
  $region3: #{cnn_forward.1} parent=0 // pred_check_branch
    %11 = sbr.rel (0) target = $region5
  $region4: #{cnn_forward.1} parent=0 // pred_region
    _
  $region5: #{cnn_forward.1} parent=0 // pred_fallthru
    _
  // Predicated region
  $region6: #{cnn_forward.1} parent=0 // pred_check
    _
  $region7: #{cnn_forward.1} parent=0 // pred_check_branch
    %13 = sbr.rel (0) target = $region9
  $region8: #{cnn_forward.1} parent=0 // pred_region
    _
  $region9: #{cnn_forward.1} parent=0 // pred_fallthru
    _
  // Predicated region
  $region10: #{cnn_forward.1} parent=0 // pred_check
    _
  $region11: #{cnn_forward.1} parent=0 // pred_check_branch
    %15 = sbr.rel (0) target = $region13
  $region12: #{cnn_forward.1} parent=0 // pred_region
    _
  $region13: #{cnn_forward.1} parent=0 // pred_fallthru
    _
  // Predicated region
  $region14: #{cnn_forward.1} parent=0 // pred_check
    _
  $region15: #{cnn_forward.1} parent=0 // pred_check_branch
    %17 = sbr.rel (0) target = $region17
  $region16: #{cnn_forward.1} parent=0 // pred_region
    _
  $region17: #{cnn_forward.1} parent=0 // pred_fallthru
    _
  // Predicated region
  $region18: #{cnn_forward.1} parent=0 // pred_check
    _
  $region19: #{cnn_forward.1} parent=0 // pred_check_branch
    %19 = sbr.rel (0) target = $region21
  $region20: #{cnn_forward.1} parent=0 // pred_region
    _
  $region21: #{cnn_forward.1} parent=0 // pred_fallthru
    _
  %v21 = vlaneseq
  %v22 = vshrl.u32 %v21, 7
  %v23 = vadd.s32 %v22, 8
  %v24 = vadd.s32 %v22, 16
  %v25 = vadd.s32 %v22, 24
  %vm26 = vcmp.lt.s32.totalorder %v22, 0
  %v27 = vsub.s32 0, %v22
  %v28 = vsel %vm26, %v27, %v22
  %v29 = vshrl.u32 %v28, 4
  %v30 = vand.u32 %v28, 15
  %v31 = vsub.s32 0, %v30
  %v32 = vsel %vm26, %v31, %v30
  %vm33 = vcmp.lt.s32.totalorder %v23, 0
  %v34 = vsub.s32 0, %v23
  %v35 = vsel %vm33, %v34, %v23
  %v36 = vshrl.u32 %v35, 4
  %v37 = vand.u32 %v35, 15
  %v38 = vsub.s32 0, %v37
  %v39 = vsel %vm33, %v38, %v37
  %vm40 = vcmp.lt.s32.totalorder %v24, 0
  %v41 = vsub.s32 0, %v24
  %v42 = vsel %vm40, %v41, %v24
  %v43 = vshrl.u32 %v42, 4
  %v44 = vand.u32 %v42, 15
  %v45 = vsub.s32 0, %v44
  %v46 = vsel %vm40, %v45, %v44
  %vm47 = vcmp.lt.s32.totalorder %v25, 0
  %v48 = vsub.s32 0, %v25
  %v49 = vsel %vm47, %v48, %v25
  %v50 = vshrl.u32 %v49, 4
  %v51 = vand.u32 %v49, 15
  %v52 = vsub.s32 0, %v51
  %v53 = vsel %vm47, %v52, %v51
  %vm54 = vcmp.ne.s32.totalorder %v32, 0
  %vm55 = vcmp.ne.s32.totalorder %v39, 0
  %vm56 = vcmp.ne.s32.totalorder %v46, 0
  %vm57 = vcmp.ne.s32.totalorder %v53, 0
  %vm58 = vcmp.lt.s32.totalorder %v32, 0
  %vm59 = vcmp.lt.s32.totalorder %v39, 0
  %vm60 = vcmp.lt.s32.totalorder %v46, 0
  %vm61 = vcmp.lt.s32.totalorder %v53, 0
  %vm62 = vmand %vm58, %vm54
  %vm63 = vmand %vm59, %vm55
  %vm64 = vmand %vm60, %vm56
  %vm65 = vmand %vm61, %vm57
  %v66 = vadd.s32 %v32, 16
  %v67 = vadd.s32 %v39, 16
  %v68 = vadd.s32 %v46, 16
  %v69 = vadd.s32 %v53, 16
  %v70 = vsel %vm62, %v66, %v32
  %v71 = vsel %vm63, %v67, %v39
  %v72 = vsel %vm64, %v68, %v46
  %v73 = vsel %vm65, %v69, %v53
  %74 = vst [vmem:[#allocation2] sm:$0xff] 0
  %75 = vst [vmem:[#allocation2 + $0x8] sm:$0xff] 0
  %76 = vst [vmem:[#allocation2 + $0x10] sm:$0xff] 0
  %77 = vst [vmem:[#allocation2 + $0x18] sm:$0xff] 0
  %78 = vst [vmem:[#allocation2 + $0x20] sm:$0xff] 0
  %79 = vst [vmem:[#allocation2 + $0x28] sm:$0xff] 0
  %80 = vst [vmem:[#allocation2 + $0x30] sm:$0xff] 0
  %81 = vst [vmem:[#allocation2 + $0x38] sm:$0xff] 0
  %82 = vst [vmem:[#allocation2 + $0x40] sm:$0xff] 0
  %83 = vst [vmem:[#allocation2 + $0x48] sm:$0xff] 0
  %84 = vst [vmem:[#allocation2 + $0x50] sm:$0xff] 0
  %85 = vst [vmem:[#allocation2 + $0x58] sm:$0xff] 0
  %v86 = vld [vmem:[%s0] sm:$0xff]
  %v87 = vld [vmem:[%s0 + $0x8] sm:$0xff]
  %v88 = vld [vmem:[%s0 + $0x10] sm:$0xff]
  %v89 = vld [vmem:[%s0 + $0x18] sm:$0xff]
  %v90 = vld [vmem:[%s0 + $0x20] sm:$0xff]
  %v91 = vld [vmem:[%s0 + $0x28] sm:$0xff]
  %v92 = vld [vmem:[%s0 + $0x30] sm:$0xff]
  %v93 = vld [vmem:[%s0 + $0x38] sm:$0xff]
  %v94 = vld [vmem:[%s0 + $0x40] sm:$0xff]
  %v95 = vld [vmem:[%s0 + $0x48] sm:$0xff]
  %v96 = vld [vmem:[%s0 + $0x50] sm:$0xff]
  %v97 = vld [vmem:[%s0 + $0x58] sm:$0xff]
  %v98 = vpack.c.bf16 %v86, %v86
  %v99 = vpack.c.bf16 %v87, %v87
  %v100 = vpack.c.bf16 %v88, %v88
  %v101 = vpack.c.bf16 %v89, %v89
  %v102 = vpack.c.bf16 %v90, %v90
  %v103 = vpack.c.bf16 %v91, %v91
  %v104 = vpack.c.bf16 %v92, %v92
  %v105 = vpack.c.bf16 %v93, %v93
  %v106 = vpack.c.bf16 %v94, %v94
  %v107 = vpack.c.bf16 %v95, %v95
  %v108 = vpack.c.bf16 %v96, %v96
  %v109 = vpack.c.bf16 %v97, %v97
  %v122 = vunpack.c.l.b16 %v98
  %v123 = vunpack.c.l.b16 %v99
  %v124 = vunpack.c.l.b16 %v100
  %v125 = vunpack.c.l.b16 %v101
  %v126 = vunpack.c.l.b16 %v102
  %v127 = vunpack.c.l.b16 %v103
  %v128 = vunpack.c.l.b16 %v104
  %v129 = vunpack.c.l.b16 %v105
  %v130 = vunpack.c.l.b16 %v106
  %v131 = vunpack.c.l.b16 %v107
  %v132 = vunpack.c.l.b16 %v108
  %v133 = vunpack.c.l.b16 %v109
  %v134 = vpack.c.b16 %v123, %v122
  %v135 = vpack.c.b16 %v125, %v124
  %v136 = vpack.c.b16 %v127, %v126
  %v137 = vpack.c.b16 %v129, %v128
  %v138 = vpack.c.b16 %v131, %v130
  %v139 = vpack.c.b16 %v133, %v132
  %v140 = vrot.slane %v134, 6
  %v141 = vrot.slane %v135, 6
  %v142 = vrot.slane %v136, 6
  %v143 = vrot.slane %v140, 4
  %v144 = vrot.slane %v141, 4
  %v145 = vrot.slane %v142, 4
  %v146 = vrot.slane %v137, 6
  %v147 = vrot.slane %v138, 6
  %v148 = vrot.slane %v139, 6
  %v149 = vrot.slane %v146, 4
  %v150 = vrot.slane %v147, 4
  %v151 = vrot.slane %v148, 4
  %164 = vst [vmem:[#allocation2] sm:$0xcc] %v140
  %165 = vst [vmem:[#allocation2 + $0x8] sm:$0xcc] %v141
  %166 = vst [vmem:[#allocation2 + $0x10] sm:$0xcc] %v142
  %167 = vst [vmem:[#allocation2 + $0x18] sm:$0x33] %v143
  %168 = vst [vmem:[#allocation2 + $0x20] sm:$0x33] %v144
  %169 = vst [vmem:[#allocation2 + $0x28] sm:$0x33] %v145
  %170 = vst [vmem:[#allocation2 + $0x30] sm:$0xcc] %v146
  %171 = vst [vmem:[#allocation2 + $0x38] sm:$0xcc] %v147
  %172 = vst [vmem:[#allocation2 + $0x40] sm:$0xcc] %v148
  %173 = vst [vmem:[#allocation2 + $0x48] sm:$0x33] %v149
  %174 = vst [vmem:[#allocation2 + $0x50] sm:$0x33] %v150
  %175 = vst [vmem:[#allocation2 + $0x58] sm:$0x33] %v151
  %v176 = vld [vmem:[#allocation2] sm:$0xff]
  %v177 = vld [vmem:[#allocation2 + $0x8] sm:$0xff]
  %v178 = vld [vmem:[#allocation2 + $0x10] sm:$0xff]
  %v179 = vld [vmem:[#allocation2 + $0x18] sm:$0xff]
  %v180 = vld [vmem:[#allocation2 + $0x20] sm:$0xff]
  %v181 = vld [vmem:[#allocation2 + $0x28] sm:$0xff]
  %v182 = vld [vmem:[#allocation2 + $0x30] sm:$0xff]
  %v183 = vld [vmem:[#allocation2 + $0x38] sm:$0xff]
  %v184 = vld [vmem:[#allocation2 + $0x40] sm:$0xff]
  %v185 = vld [vmem:[#allocation2 + $0x48] sm:$0xff]
  %v186 = vld [vmem:[#allocation2 + $0x50] sm:$0xff]
  %v187 = vld [vmem:[#allocation2 + $0x58] sm:$0xff]
  %v188 = vld [vmem:[%s1] sm:$0xff]
  %v189 = vld [vmem:[%s1 + $0x8] sm:$0xff]
  %v190 = vld [vmem:[%s1 + $0x10] sm:$0xff]
  %v191 = vld [vmem:[%s1 + $0x18] sm:$0xff]
  %v192 = vld [vmem:[%s1 + $0x20] sm:$0xff]
  %v193 = vld [vmem:[%s1 + $0x28] sm:$0xff]
  %v194 = vld [vmem:[%s1 + $0x30] sm:$0xff]
  %v195 = vld [vmem:[%s1 + $0x38] sm:$0xff]
  %v196 = vld [vmem:[%s1 + $0x40] sm:$0xff]
  %v197 = vld [vmem:[%s1 + $0x48] sm:$0xff]
  %v198 = vld [vmem:[%s1 + $0x50] sm:$0xff]
  %v199 = vld [vmem:[%s1 + $0x58] sm:$0xff]
  %v200 = vld [vmem:[%s1 + $0x60] sm:$0xff]
  %v201 = vld [vmem:[%s1 + $0x68] sm:$0xff]
  %v202 = vld [vmem:[%s1 + $0x70] sm:$0xff]
  %v203 = vld [vmem:[%s1 + $0x78] sm:$0xff]
  %v204 = vld [vmem:[%s1 + $0x80] sm:$0xff]
  %v205 = vld [vmem:[%s1 + $0x88] sm:$0xff]
  %v206 = vld [vmem:[%s1 + $0x90] sm:$0xff]
  %v207 = vld [vmem:[%s1 + $0x98] sm:$0xff]
  %v208 = vld [vmem:[%s1 + $0xa0] sm:$0xff]
  %v209 = vld [vmem:[%s1 + $0xa8] sm:$0xff]
  %v210 = vld [vmem:[%s1 + $0xb0] sm:$0xff]
  %v211 = vld [vmem:[%s1 + $0xb8] sm:$0xff]
  %v212 = vld [vmem:[%s1 + $0xc0] sm:$0xff]
  %v213 = vld [vmem:[%s1 + $0xc8] sm:$0xff]
  %v214 = vld [vmem:[%s1 + $0xd0] sm:$0xff]
  %v215 = vld [vmem:[%s1 + $0xd8] sm:$0xff]
  %v216 = vld [vmem:[%s1 + $0xe0] sm:$0xff]
  %v217 = vld [vmem:[%s1 + $0xe8] sm:$0xff]
  %v218 = vld [vmem:[%s1 + $0xf0] sm:$0xff]
  %v219 = vld [vmem:[%s1 + $0xf8] sm:$0xff]
  %v220 = vld [vmem:[%s1 + $0x100] sm:$0xff]
  %v221 = vld [vmem:[%s1 + $0x108] sm:$0xff]
  %v222 = vld [vmem:[%s1 + $0x110] sm:$0xff]
  %v223 = vld [vmem:[%s1 + $0x118] sm:$0xff]
  %v224 = vld [vmem:[%s1 + $0x120] sm:$0xff]
  %v225 = vld [vmem:[%s1 + $0x128] sm:$0xff]
  %v226 = vld [vmem:[%s1 + $0x130] sm:$0xff]
  %v227 = vld [vmem:[%s1 + $0x138] sm:$0xff]
  %v228 = vld [vmem:[%s1 + $0x140] sm:$0xff]
  %v229 = vld [vmem:[%s1 + $0x148] sm:$0xff]
  %v230 = vld [vmem:[%s1 + $0x150] sm:$0xff]
  %v231 = vld [vmem:[%s1 + $0x158] sm:$0xff]
  %v232 = vld [vmem:[%s1 + $0x160] sm:$0xff]
  %v233 = vld [vmem:[%s1 + $0x168] sm:$0xff]
  %v234 = vld [vmem:[%s1 + $0x170] sm:$0xff]
  %v235 = vld [vmem:[%s1 + $0x178] sm:$0xff]
  %v236 = vld [vmem:[%s1 + $0x180] sm:$0xff]
  %v237 = vld [vmem:[%s1 + $0x188] sm:$0xff]
  %v238 = vld [vmem:[%s1 + $0x190] sm:$0xff]
  %v239 = vld [vmem:[%s1 + $0x198] sm:$0xff]
  %v240 = vld [vmem:[%s1 + $0x1a0] sm:$0xff]
  %v241 = vld [vmem:[%s1 + $0x1a8] sm:$0xff]
  %v242 = vld [vmem:[%s1 + $0x1b0] sm:$0xff]
  %v243 = vld [vmem:[%s1 + $0x1b8] sm:$0xff]
  %v244 = vld [vmem:[%s1 + $0x1c0] sm:$0xff]
  %v245 = vld [vmem:[%s1 + $0x1c8] sm:$0xff]
  %v246 = vld [vmem:[%s1 + $0x1d0] sm:$0xff]
  %v247 = vld [vmem:[%s1 + $0x1d8] sm:$0xff]
  %v248 = vld [vmem:[%s1 + $0x1e0] sm:$0xff]
  %v249 = vld [vmem:[%s1 + $0x1e8] sm:$0xff]
  %v250 = vld [vmem:[%s1 + $0x1f0] sm:$0xff]
  %v251 = vld [vmem:[%s1 + $0x1f8] sm:$0xff]
  %v252 = vld [vmem:[%s1 + $0x200] sm:$0xff]
  %v253 = vld [vmem:[%s1 + $0x208] sm:$0xff]
  %v254 = vld [vmem:[%s1 + $0x210] sm:$0xff]
  %v255 = vld [vmem:[%s1 + $0x218] sm:$0xff]
  %v256 = vld [vmem:[%s1 + $0x220] sm:$0xff]
  %v257 = vld [vmem:[%s1 + $0x228] sm:$0xff]
  %v258 = vld [vmem:[%s1 + $0x230] sm:$0xff]
  %v259 = vld [vmem:[%s1 + $0x238] sm:$0xff]
  %v260 = vld [vmem:[%s1 + $0x240] sm:$0xff]
  %v261 = vld [vmem:[%s1 + $0x248] sm:$0xff]
  %v262 = vld [vmem:[%s1 + $0x250] sm:$0xff]
  %v263 = vld [vmem:[%s1 + $0x258] sm:$0xff]
  %v264 = vld [vmem:[%s1 + $0x260] sm:$0xff]
  %v265 = vld [vmem:[%s1 + $0x268] sm:$0xff]
  %v266 = vld [vmem:[%s1 + $0x270] sm:$0xff]
  %v267 = vld [vmem:[%s1 + $0x278] sm:$0xff]
  %v268 = vld [vmem:[%s1 + $0x280] sm:$0xff]
  %v269 = vld [vmem:[%s1 + $0x288] sm:$0xff]
  %v270 = vld [vmem:[%s1 + $0x290] sm:$0xff]
  %v271 = vld [vmem:[%s1 + $0x298] sm:$0xff]
  %v272 = vld [vmem:[%s1 + $0x2a0] sm:$0xff]
  %v273 = vld [vmem:[%s1 + $0x2a8] sm:$0xff]
  %v274 = vld [vmem:[%s1 + $0x2b0] sm:$0xff]
  %v275 = vld [vmem:[%s1 + $0x2b8] sm:$0xff]
  %v276 = vld [vmem:[%s1 + $0x2c0] sm:$0xff]
  %v277 = vld [vmem:[%s1 + $0x2c8] sm:$0xff]
  %v278 = vld [vmem:[%s1 + $0x2d0] sm:$0xff]
  %v279 = vld [vmem:[%s1 + $0x2d8] sm:$0xff]
  %v280 = vld [vmem:[%s1 + $0x2e0] sm:$0xff]
  %v281 = vld [vmem:[%s1 + $0x2e8] sm:$0xff]
  %v282 = vld [vmem:[%s1 + $0x2f0] sm:$0xff]
  %v283 = vld [vmem:[%s1 + $0x2f8] sm:$0xff]
  %v296 = vunpack.c.l.b16 %v176
  %v297 = vunpack.c.h.b16 %v176
  %v298 = vunpack.c.l.b16 %v177
  %v299 = vunpack.c.h.b16 %v177
  %v300 = vunpack.c.l.b16 %v178
  %v301 = vunpack.c.h.b16 %v178
  %v302 = vunpack.c.l.b16 %v179
  %v303 = vunpack.c.h.b16 %v179
  %v304 = vunpack.c.l.b16 %v180
  %v305 = vunpack.c.h.b16 %v180
  %v306 = vunpack.c.l.b16 %v181
  %v307 = vunpack.c.h.b16 %v181
  %v308 = vunpack.c.l.b16 %v182
  %v309 = vunpack.c.h.b16 %v182
  %v310 = vunpack.c.l.b16 %v183
  %v311 = vunpack.c.h.b16 %v183
  %v312 = vunpack.c.l.b16 %v184
  %v313 = vunpack.c.h.b16 %v184
  %v314 = vunpack.c.l.b16 %v185
  %v315 = vunpack.c.h.b16 %v185
  %v316 = vunpack.c.l.b16 %v186
  %v317 = vunpack.c.h.b16 %v186
  %v318 = vunpack.c.l.b16 %v187
  %v319 = vunpack.c.h.b16 %v187
  %v320 = vpack.c.b16 %v302, %v296
  %v321 = vpack.c.b16 %v303, %v297
  %v322 = vpack.c.b16 %v304, %v298
  %v323 = vpack.c.b16 %v305, %v299
  %v324 = vpack.c.b16 %v306, %v300
  %v325 = vpack.c.b16 %v307, %v301
  %v326 = vpack.c.b16 %v314, %v308
  %v327 = vpack.c.b16 %v315, %v309
  %v328 = vpack.c.b16 %v316, %v310
  %v329 = vpack.c.b16 %v317, %v311
  %v330 = vpack.c.b16 %v318, %v312
  %v331 = vpack.c.b16 %v319, %v313
  %vm332 = vsmask.f32 7424
  %v334 = vshrl.u32 %v320, 16
  %v336 = vshll.u32 %v320, 16
  %v338 = vrot.slane %v336, 1
  %v339 = vor.u32 %v334, %v338
  %v341 = vshll.u32 %v326, 16
  %v343 = vrot.slane %v341, 1
  %v344 = vsel %vm332, %v339, %v343
  %v346 = vshrl.u32 %v321, 16
  %v348 = vshll.u32 %v321, 16
  %v350 = vrot.slane %v348, 1
  %v351 = vor.u32 %v346, %v350
  %v353 = vshll.u32 %v327, 16
  %v355 = vrot.slane %v353, 1
  %v356 = vsel %vm332, %v351, %v355
  %v358 = vshrl.u32 %v322, 16
  %v360 = vshll.u32 %v322, 16
  %v362 = vrot.slane %v360, 1
  %v363 = vor.u32 %v358, %v362
  %v365 = vshll.u32 %v328, 16
  %v367 = vrot.slane %v365, 1
  %v368 = vsel %vm332, %v363, %v367
  %v370 = vshrl.u32 %v323, 16
  %v372 = vshll.u32 %v323, 16
  %v374 = vrot.slane %v372, 1
  %v375 = vor.u32 %v370, %v374
  %v377 = vshll.u32 %v329, 16
  %v379 = vrot.slane %v377, 1
  %v380 = vsel %vm332, %v375, %v379
  %v382 = vshrl.u32 %v324, 16
  %v384 = vshll.u32 %v324, 16
  %v386 = vrot.slane %v384, 1
  %v387 = vor.u32 %v382, %v386
  %v389 = vshll.u32 %v330, 16
  %v391 = vrot.slane %v389, 1
  %v392 = vsel %vm332, %v387, %v391
  %v394 = vshrl.u32 %v325, 16
  %v396 = vshll.u32 %v325, 16
  %v398 = vrot.slane %v396, 1
  %v399 = vor.u32 %v394, %v398
  %v401 = vshll.u32 %v331, 16
  %v403 = vrot.slane %v401, 1
  %v404 = vsel %vm332, %v399, %v403
  %v405 = vshrl.u32 %v326, 16
  %v407 = vor.u32 %v405, %v343
  %v408 = vshrl.u32 %v327, 16
  %v410 = vor.u32 %v408, %v355
  %v411 = vshrl.u32 %v328, 16
  %v413 = vor.u32 %v411, %v367
  %v414 = vshrl.u32 %v329, 16
  %v416 = vor.u32 %v414, %v379
  %v417 = vshrl.u32 %v330, 16
  %v419 = vor.u32 %v417, %v391
  %v420 = vshrl.u32 %v331, 16
  %v422 = vor.u32 %v420, %v403
  %vm435 = vcmask 1047552
  %vm436 = vmand %vm435, %vm332
  %v437 = vsel %vm436, %v407, 0
  %v438 = vsel %vm436, %v410, 0
  %v439 = vsel %vm436, %v413, 0
  %v440 = vsel %vm436, %v416, 0
  %v441 = vsel %vm436, %v419, 0
  %v442 = vsel %vm436, %v422, 0
  %s443 = scalar_lea.vmem %s1, 768
  %v444 = vld [vmem:[%s443] sm:$0xff]
  %v445 = vld [vmem:[%s443 + $0x8] sm:$0xff]
  %v446 = vld [vmem:[%s443 + $0x10] sm:$0xff]
  %v447 = vld [vmem:[%s443 + $0x18] sm:$0xff]
  %v448 = vld [vmem:[%s443 + $0x20] sm:$0xff]
  %v449 = vld [vmem:[%s443 + $0x28] sm:$0xff]
  %v450 = vld [vmem:[%s443 + $0x30] sm:$0xff]
  %v451 = vld [vmem:[%s443 + $0x38] sm:$0xff]
  %v452 = vld [vmem:[%s443 + $0x40] sm:$0xff]
  %v453 = vld [vmem:[%s443 + $0x48] sm:$0xff]
  %v454 = vld [vmem:[%s443 + $0x50] sm:$0xff]
  %v455 = vld [vmem:[%s443 + $0x58] sm:$0xff]
  %v456 = vld [vmem:[%s443 + $0x60] sm:$0xff]
  %v457 = vld [vmem:[%s443 + $0x68] sm:$0xff]
  %v458 = vld [vmem:[%s443 + $0x70] sm:$0xff]
  %v459 = vld [vmem:[%s443 + $0x78] sm:$0xff]
  %v460 = vld [vmem:[%s443 + $0x80] sm:$0xff]
  %v461 = vld [vmem:[%s443 + $0x88] sm:$0xff]
  %v462 = vld [vmem:[%s443 + $0x90] sm:$0xff]
  %v463 = vld [vmem:[%s443 + $0x98] sm:$0xff]
  %v464 = vld [vmem:[%s443 + $0xa0] sm:$0xff]
  %v465 = vld [vmem:[%s443 + $0xa8] sm:$0xff]
  %v466 = vld [vmem:[%s443 + $0xb0] sm:$0xff]
  %v467 = vld [vmem:[%s443 + $0xb8] sm:$0xff]
  %v468 = vld [vmem:[%s443 + $0xc0] sm:$0xff]
  %v469 = vld [vmem:[%s443 + $0xc8] sm:$0xff]
  %v470 = vld [vmem:[%s443 + $0xd0] sm:$0xff]
  %v471 = vld [vmem:[%s443 + $0xd8] sm:$0xff]
  %v472 = vld [vmem:[%s443 + $0xe0] sm:$0xff]
  %v473 = vld [vmem:[%s443 + $0xe8] sm:$0xff]
  %v474 = vld [vmem:[%s443 + $0xf0] sm:$0xff]
  %v475 = vld [vmem:[%s443 + $0xf8] sm:$0xff]
  %v476 = vld [vmem:[%s443 + $0x100] sm:$0xff]
  %v477 = vld [vmem:[%s443 + $0x108] sm:$0xff]
  %v478 = vld [vmem:[%s443 + $0x110] sm:$0xff]
  %v479 = vld [vmem:[%s443 + $0x118] sm:$0xff]
  %v480 = vld [vmem:[%s443 + $0x120] sm:$0xff]
  %v481 = vld [vmem:[%s443 + $0x128] sm:$0xff]
  %v482 = vld [vmem:[%s443 + $0x130] sm:$0xff]
  %v483 = vld [vmem:[%s443 + $0x138] sm:$0xff]
  %v484 = vld [vmem:[%s443 + $0x140] sm:$0xff]
  %v485 = vld [vmem:[%s443 + $0x148] sm:$0xff]
  %v486 = vld [vmem:[%s443 + $0x150] sm:$0xff]
  %v487 = vld [vmem:[%s443 + $0x158] sm:$0xff]
  %v488 = vld [vmem:[%s443 + $0x160] sm:$0xff]
  %v489 = vld [vmem:[%s443 + $0x168] sm:$0xff]
  %v490 = vld [vmem:[%s443 + $0x170] sm:$0xff]
  %v491 = vld [vmem:[%s443 + $0x178] sm:$0xff]
  %v492 = vld [vmem:[%s443 + $0x180] sm:$0xff]
  %v493 = vld [vmem:[%s443 + $0x188] sm:$0xff]
  %v494 = vld [vmem:[%s443 + $0x190] sm:$0xff]
  %v495 = vld [vmem:[%s443 + $0x198] sm:$0xff]
  %v496 = vld [vmem:[%s443 + $0x1a0] sm:$0xff]
  %v497 = vld [vmem:[%s443 + $0x1a8] sm:$0xff]
  %v498 = vld [vmem:[%s443 + $0x1b0] sm:$0xff]
  %v499 = vld [vmem:[%s443 + $0x1b8] sm:$0xff]
  %v500 = vld [vmem:[%s443 + $0x1c0] sm:$0xff]
  %v501 = vld [vmem:[%s443 + $0x1c8] sm:$0xff]
  %v502 = vld [vmem:[%s443 + $0x1d0] sm:$0xff]
  %v503 = vld [vmem:[%s443 + $0x1d8] sm:$0xff]
  %v504 = vld [vmem:[%s443 + $0x1e0] sm:$0xff]
  %v505 = vld [vmem:[%s443 + $0x1e8] sm:$0xff]
  %v506 = vld [vmem:[%s443 + $0x1f0] sm:$0xff]
  %v507 = vld [vmem:[%s443 + $0x1f8] sm:$0xff]
  %v508 = vld [vmem:[%s443 + $0x200] sm:$0xff]
  %v509 = vld [vmem:[%s443 + $0x208] sm:$0xff]
  %v510 = vld [vmem:[%s443 + $0x210] sm:$0xff]
  %v511 = vld [vmem:[%s443 + $0x218] sm:$0xff]
  %v512 = vld [vmem:[%s443 + $0x220] sm:$0xff]
  %v513 = vld [vmem:[%s443 + $0x228] sm:$0xff]
  %v514 = vld [vmem:[%s443 + $0x230] sm:$0xff]
  %v515 = vld [vmem:[%s443 + $0x238] sm:$0xff]
  %v516 = vld [vmem:[%s443 + $0x240] sm:$0xff]
  %v517 = vld [vmem:[%s443 + $0x248] sm:$0xff]
  %v518 = vld [vmem:[%s443 + $0x250] sm:$0xff]
  %v519 = vld [vmem:[%s443 + $0x258] sm:$0xff]
  %v520 = vld [vmem:[%s443 + $0x260] sm:$0xff]
  %v521 = vld [vmem:[%s443 + $0x268] sm:$0xff]
  %v522 = vld [vmem:[%s443 + $0x270] sm:$0xff]
  %v523 = vld [vmem:[%s443 + $0x278] sm:$0xff]
  %v524 = vld [vmem:[%s443 + $0x280] sm:$0xff]
  %v525 = vld [vmem:[%s443 + $0x288] sm:$0xff]
  %v526 = vld [vmem:[%s443 + $0x290] sm:$0xff]
  %v527 = vld [vmem:[%s443 + $0x298] sm:$0xff]
  %v528 = vld [vmem:[%s443 + $0x2a0] sm:$0xff]
  %v529 = vld [vmem:[%s443 + $0x2a8] sm:$0xff]
  %v530 = vld [vmem:[%s443 + $0x2b0] sm:$0xff]
  %v531 = vld [vmem:[%s443 + $0x2b8] sm:$0xff]
  %v532 = vld [vmem:[%s443 + $0x2c0] sm:$0xff]
  %v533 = vld [vmem:[%s443 + $0x2c8] sm:$0xff]
  %v534 = vld [vmem:[%s443 + $0x2d0] sm:$0xff]
  %v535 = vld [vmem:[%s443 + $0x2d8] sm:$0xff]
  %v536 = vld [vmem:[%s443 + $0x2e0] sm:$0xff]
  %v537 = vld [vmem:[%s443 + $0x2e8] sm:$0xff]
  %v538 = vld [vmem:[%s443 + $0x2f0] sm:$0xff]
  %v539 = vld [vmem:[%s443 + $0x2f8] sm:$0xff]
  %v636 = vunpack.c.l.b16 %v444
  %v637 = vunpack.c.h.b16 %v444
  %v638 = vunpack.c.l.b16 %v445
  %v639 = vunpack.c.h.b16 %v445
  %v640 = vunpack.c.l.b16 %v446
  %v641 = vunpack.c.h.b16 %v446
  %v642 = vunpack.c.l.b16 %v447
  %v643 = vunpack.c.h.b16 %v447
  %v644 = vunpack.c.l.b16 %v448
  %v645 = vunpack.c.h.b16 %v448
  %v646 = vunpack.c.l.b16 %v449
  %v647 = vunpack.c.h.b16 %v449
  %v648 = vunpack.c.l.b16 %v450
  %v649 = vunpack.c.h.b16 %v450
  %v650 = vunpack.c.l.b16 %v451
  %v651 = vunpack.c.h.b16 %v451
  %v652 = vunpack.c.l.b16 %v452
  %v653 = vunpack.c.h.b16 %v452
  %v654 = vunpack.c.l.b16 %v453
  %v655 = vunpack.c.h.b16 %v453
  %v656 = vunpack.c.l.b16 %v454
  %v657 = vunpack.c.h.b16 %v454
  %v658 = vunpack.c.l.b16 %v455
  %v659 = vunpack.c.h.b16 %v455
  %v660 = vunpack.c.l.b16 %v456
  %v661 = vunpack.c.h.b16 %v456
  %v662 = vunpack.c.l.b16 %v457
  %v663 = vunpack.c.h.b16 %v457
  %v664 = vunpack.c.l.b16 %v458
  %v665 = vunpack.c.h.b16 %v458
  %v666 = vunpack.c.l.b16 %v459
  %v667 = vunpack.c.h.b16 %v459
  %v668 = vunpack.c.l.b16 %v460
  %v669 = vunpack.c.h.b16 %v460
  %v670 = vunpack.c.l.b16 %v461
  %v671 = vunpack.c.h.b16 %v461
  %v672 = vunpack.c.l.b16 %v462
  %v673 = vunpack.c.h.b16 %v462
  %v674 = vunpack.c.l.b16 %v463
  %v675 = vunpack.c.h.b16 %v463
  %v676 = vunpack.c.l.b16 %v464
  %v677 = vunpack.c.h.b16 %v464
  %v678 = vunpack.c.l.b16 %v465
  %v679 = vunpack.c.h.b16 %v465
  %v680 = vunpack.c.l.b16 %v466
  %v681 = vunpack.c.h.b16 %v466
  %v682 = vunpack.c.l.b16 %v467
  %v683 = vunpack.c.h.b16 %v467
  %v684 = vunpack.c.l.b16 %v468
  %v685 = vunpack.c.h.b16 %v468
  %v686 = vunpack.c.l.b16 %v469
  %v687 = vunpack.c.h.b16 %v469
  %v688 = vunpack.c.l.b16 %v470
  %v689 = vunpack.c.h.b16 %v470
  %v690 = vunpack.c.l.b16 %v471
  %v691 = vunpack.c.h.b16 %v471
  %v692 = vunpack.c.l.b16 %v472
  %v693 = vunpack.c.h.b16 %v472
  %v694 = vunpack.c.l.b16 %v473
  %v695 = vunpack.c.h.b16 %v473
  %v696 = vunpack.c.l.b16 %v474
  %v697 = vunpack.c.h.b16 %v474
  %v698 = vunpack.c.l.b16 %v475
  %v699 = vunpack.c.h.b16 %v475
  %v700 = vunpack.c.l.b16 %v476
  %v701 = vunpack.c.h.b16 %v476
  %v702 = vunpack.c.l.b16 %v477
  %v703 = vunpack.c.h.b16 %v477
  %v704 = vunpack.c.l.b16 %v478
  %v705 = vunpack.c.h.b16 %v478
  %v706 = vunpack.c.l.b16 %v479
  %v707 = vunpack.c.h.b16 %v479
  %v708 = vunpack.c.l.b16 %v480
  %v709 = vunpack.c.h.b16 %v480
  %v710 = vunpack.c.l.b16 %v481
  %v711 = vunpack.c.h.b16 %v481
  %v712 = vunpack.c.l.b16 %v482
  %v713 = vunpack.c.h.b16 %v482
  %v714 = vunpack.c.l.b16 %v483
  %v715 = vunpack.c.h.b16 %v483
  %v716 = vunpack.c.l.b16 %v484
  %v717 = vunpack.c.h.b16 %v484
  %v718 = vunpack.c.l.b16 %v485
  %v719 = vunpack.c.h.b16 %v485
  %v720 = vunpack.c.l.b16 %v486
  %v721 = vunpack.c.h.b16 %v486
  %v722 = vunpack.c.l.b16 %v487
  %v723 = vunpack.c.h.b16 %v487
  %v724 = vunpack.c.l.b16 %v488
  %v725 = vunpack.c.h.b16 %v488
  %v726 = vunpack.c.l.b16 %v489
  %v727 = vunpack.c.h.b16 %v489
  %v728 = vunpack.c.l.b16 %v490
  %v729 = vunpack.c.h.b16 %v490
  %v730 = vunpack.c.l.b16 %v491
  %v731 = vunpack.c.h.b16 %v491
  %v732 = vunpack.c.l.b16 %v492
  %v733 = vunpack.c.h.b16 %v492
  %v734 = vunpack.c.l.b16 %v493
  %v735 = vunpack.c.h.b16 %v493
  %v736 = vunpack.c.l.b16 %v494
  %v737 = vunpack.c.h.b16 %v494
  %v738 = vunpack.c.l.b16 %v495
  %v739 = vunpack.c.h.b16 %v495
  %v740 = vunpack.c.l.b16 %v496
  %v741 = vunpack.c.h.b16 %v496
  %v742 = vunpack.c.l.b16 %v497
  %v743 = vunpack.c.h.b16 %v497
  %v744 = vunpack.c.l.b16 %v498
  %v745 = vunpack.c.h.b16 %v498
  %v746 = vunpack.c.l.b16 %v499
  %v747 = vunpack.c.h.b16 %v499
  %v748 = vunpack.c.l.b16 %v500
  %v749 = vunpack.c.h.b16 %v500
  %v750 = vunpack.c.l.b16 %v501
  %v751 = vunpack.c.h.b16 %v501
  %v752 = vunpack.c.l.b16 %v502
  %v753 = vunpack.c.h.b16 %v502
  %v754 = vunpack.c.l.b16 %v503
  %v755 = vunpack.c.h.b16 %v503
  %v756 = vunpack.c.l.b16 %v504
  %v757 = vunpack.c.h.b16 %v504
  %v758 = vunpack.c.l.b16 %v505
  %v759 = vunpack.c.h.b16 %v505
  %v760 = vunpack.c.l.b16 %v506
  %v761 = vunpack.c.h.b16 %v506
  %v762 = vunpack.c.l.b16 %v507
  %v763 = vunpack.c.h.b16 %v507
  %v764 = vunpack.c.l.b16 %v508
  %v765 = vunpack.c.h.b16 %v508
  %v766 = vunpack.c.l.b16 %v509
  %v767 = vunpack.c.h.b16 %v509
  %v768 = vunpack.c.l.b16 %v510
  %v769 = vunpack.c.h.b16 %v510
  %v770 = vunpack.c.l.b16 %v511
  %v771 = vunpack.c.h.b16 %v511
  %v772 = vunpack.c.l.b16 %v512
  %v773 = vunpack.c.h.b16 %v512
  %v774 = vunpack.c.l.b16 %v513
  %v775 = vunpack.c.h.b16 %v513
  %v776 = vunpack.c.l.b16 %v514
  %v777 = vunpack.c.h.b16 %v514
  %v778 = vunpack.c.l.b16 %v515
  %v779 = vunpack.c.h.b16 %v515
  %v780 = vunpack.c.l.b16 %v516
  %v781 = vunpack.c.h.b16 %v516
  %v782 = vunpack.c.l.b16 %v517
  %v783 = vunpack.c.h.b16 %v517
  %v784 = vunpack.c.l.b16 %v518
  %v785 = vunpack.c.h.b16 %v518
  %v786 = vunpack.c.l.b16 %v519
  %v787 = vunpack.c.h.b16 %v519
  %v788 = vunpack.c.l.b16 %v520
  %v789 = vunpack.c.h.b16 %v520
  %v790 = vunpack.c.l.b16 %v521
  %v791 = vunpack.c.h.b16 %v521
  %v792 = vunpack.c.l.b16 %v522
  %v793 = vunpack.c.h.b16 %v522
  %v794 = vunpack.c.l.b16 %v523
  %v795 = vunpack.c.h.b16 %v523
  %v796 = vunpack.c.l.b16 %v524
  %v797 = vunpack.c.h.b16 %v524
  %v798 = vunpack.c.l.b16 %v525
  %v799 = vunpack.c.h.b16 %v525
  %v800 = vunpack.c.l.b16 %v526
  %v801 = vunpack.c.h.b16 %v526
  %v802 = vunpack.c.l.b16 %v527
  %v803 = vunpack.c.h.b16 %v527
  %v804 = vunpack.c.l.b16 %v528
  %v805 = vunpack.c.h.b16 %v528
  %v806 = vunpack.c.l.b16 %v529
  %v807 = vunpack.c.h.b16 %v529
  %v808 = vunpack.c.l.b16 %v530
  %v809 = vunpack.c.h.b16 %v530
  %v810 = vunpack.c.l.b16 %v531
  %v811 = vunpack.c.h.b16 %v531
  %v812 = vunpack.c.l.b16 %v532
  %v813 = vunpack.c.h.b16 %v532
  %v814 = vunpack.c.l.b16 %v533
  %v815 = vunpack.c.h.b16 %v533
  %v816 = vunpack.c.l.b16 %v534
  %v817 = vunpack.c.h.b16 %v534
  %v818 = vunpack.c.l.b16 %v535
  %v819 = vunpack.c.h.b16 %v535
  %v820 = vunpack.c.l.b16 %v536
  %v821 = vunpack.c.h.b16 %v536
  %v822 = vunpack.c.l.b16 %v537
  %v823 = vunpack.c.h.b16 %v537
  %v824 = vunpack.c.l.b16 %v538
  %v825 = vunpack.c.h.b16 %v538
  %v826 = vunpack.c.l.b16 %v539
  %v827 = vunpack.c.h.b16 %v539
  %v828 = vpack.c.b16 %v638, %v636
  %v829 = vpack.c.b16 %v639, %v637
  %v830 = vpack.c.b16 %v642, %v640
  %v831 = vpack.c.b16 %v643, %v641
  %v832 = vpack.c.b16 %v646, %v644
  %v833 = vpack.c.b16 %v647, %v645
  %v834 = vpack.c.b16 %v650, %v648
  %v835 = vpack.c.b16 %v651, %v649
  %v836 = vpack.c.b16 %v654, %v652
  %v837 = vpack.c.b16 %v655, %v653
  %v838 = vpack.c.b16 %v658, %v656
  %v839 = vpack.c.b16 %v659, %v657
  %v840 = vpack.c.b16 %v662, %v660
  %v841 = vpack.c.b16 %v663, %v661
  %v842 = vpack.c.b16 %v666, %v664
  %v843 = vpack.c.b16 %v667, %v665
  %v844 = vpack.c.b16 %v670, %v668
  %v845 = vpack.c.b16 %v671, %v669
  %v846 = vpack.c.b16 %v674, %v672
  %v847 = vpack.c.b16 %v675, %v673
  %v848 = vpack.c.b16 %v678, %v676
  %v849 = vpack.c.b16 %v679, %v677
  %v850 = vpack.c.b16 %v682, %v680
  %v851 = vpack.c.b16 %v683, %v681
  %v852 = vpack.c.b16 %v686, %v684
  %v853 = vpack.c.b16 %v687, %v685
  %v854 = vpack.c.b16 %v690, %v688
  %v855 = vpack.c.b16 %v691, %v689
  %v856 = vpack.c.b16 %v694, %v692
  %v857 = vpack.c.b16 %v695, %v693
  %v858 = vpack.c.b16 %v698, %v696
  %v859 = vpack.c.b16 %v699, %v697
  %v860 = vpack.c.b16 %v702, %v700
  %v861 = vpack.c.b16 %v703, %v701
  %v862 = vpack.c.b16 %v706, %v704
  %v863 = vpack.c.b16 %v707, %v705
  %v864 = vpack.c.b16 %v710, %v708
  %v865 = vpack.c.b16 %v711, %v709
  %v866 = vpack.c.b16 %v714, %v712
  %v867 = vpack.c.b16 %v715, %v713
  %v868 = vpack.c.b16 %v718, %v716
  %v869 = vpack.c.b16 %v719, %v717
  %v870 = vpack.c.b16 %v722, %v720
  %v871 = vpack.c.b16 %v723, %v721
  %v872 = vpack.c.b16 %v726, %v724
  %v873 = vpack.c.b16 %v727, %v725
  %v874 = vpack.c.b16 %v730, %v728
  %v875 = vpack.c.b16 %v731, %v729
  %v876 = vpack.c.b16 %v734, %v732
  %v877 = vpack.c.b16 %v735, %v733
  %v878 = vpack.c.b16 %v738, %v736
  %v879 = vpack.c.b16 %v739, %v737
  %v880 = vpack.c.b16 %v742, %v740
  %v881 = vpack.c.b16 %v743, %v741
  %v882 = vpack.c.b16 %v746, %v744
  %v883 = vpack.c.b16 %v747, %v745
  %v884 = vpack.c.b16 %v750, %v748
  %v885 = vpack.c.b16 %v751, %v749
  %v886 = vpack.c.b16 %v754, %v752
  %v887 = vpack.c.b16 %v755, %v753
  %v888 = vpack.c.b16 %v758, %v756
  %v889 = vpack.c.b16 %v759, %v757
  %v890 = vpack.c.b16 %v762, %v760
  %v891 = vpack.c.b16 %v763, %v761
  %v892 = vpack.c.b16 %v766, %v764
  %v893 = vpack.c.b16 %v767, %v765
  %v894 = vpack.c.b16 %v770, %v768
  %v895 = vpack.c.b16 %v771, %v769
  %v896 = vpack.c.b16 %v774, %v772
  %v897 = vpack.c.b16 %v775, %v773
  %v898 = vpack.c.b16 %v778, %v776
  %v899 = vpack.c.b16 %v779, %v777
  %v900 = vpack.c.b16 %v782, %v780
  %v901 = vpack.c.b16 %v783, %v781
  %v902 = vpack.c.b16 %v786, %v784
  %v903 = vpack.c.b16 %v787, %v785
  %v904 = vpack.c.b16 %v790, %v788
  %v905 = vpack.c.b16 %v791, %v789
  %v906 = vpack.c.b16 %v794, %v792
  %v907 = vpack.c.b16 %v795, %v793
  %v908 = vpack.c.b16 %v798, %v796
  %v909 = vpack.c.b16 %v799, %v797
  %v910 = vpack.c.b16 %v802, %v800
  %v911 = vpack.c.b16 %v803, %v801
  %v912 = vpack.c.b16 %v806, %v804
  %v913 = vpack.c.b16 %v807, %v805
  %v914 = vpack.c.b16 %v810, %v808
  %v915 = vpack.c.b16 %v811, %v809
  %v916 = vpack.c.b16 %v814, %v812
  %v917 = vpack.c.b16 %v815, %v813
  %v918 = vpack.c.b16 %v818, %v816
  %v919 = vpack.c.b16 %v819, %v817
  %v920 = vpack.c.b16 %v822, %v820
  %v921 = vpack.c.b16 %v823, %v821
  %v922 = vpack.c.b16 %v826, %v824
  %v923 = vpack.c.b16 %v827, %v825
  %1020 = vmatprep.subr.bf16.mxu0 %v843
  %1021 = vmatpush1.bf16.msra.mxu0 %v842
  %1022 = vmatprep.subr.bf16.mxu0 %v841
  %1023 = vmatpush1.bf16.msra.mxu0 %v840
  %1024 = vmatprep.subr.bf16.mxu0 %v839
  %1025 = vmatpush1.bf16.msra.mxu0 %v838
  %1026 = vmatprep.subr.bf16.mxu0 %v837
  %1027 = vmatpush1.bf16.msra.mxu0 %v836
  %1028 = vmatprep.subr.bf16.mxu0 %v835
  %1029 = vmatpush1.bf16.msra.mxu0 %v834
  %1030 = vmatprep.subr.bf16.mxu0 %v833
  %1031 = vmatpush1.bf16.msra.mxu0 %v832
  %1032 = vmatprep.subr.bf16.mxu0 %v831
  %1033 = vmatpush1.bf16.msra.mxu0 %v830
  %1034 = vmatprep.subr.bf16.mxu0 %v829
  %1035 = vmatpush1.bf16.msra.mxu0 %v828
  %1036 = vmatprep.subr.bf16.mxu0 %v859
  %1037 = vmatpush2.bf16.msra.mxu0 %v858
  %1038 = vmatprep.subr.bf16.mxu0 %v857
  %1039 = vmatpush2.bf16.msra.mxu0 %v856
  %1040 = vmatprep.subr.bf16.mxu0 %v855
  %1041 = vmatpush2.bf16.msra.mxu0 %v854
  %1042 = vmatprep.subr.bf16.mxu0 %v853
  %1043 = vmatpush2.bf16.msra.mxu0 %v852
  %1044 = vmatprep.subr.bf16.mxu0 %v851
  %1045 = vmatpush2.bf16.msra.mxu0 %v850
  %1046 = vmatprep.subr.bf16.mxu0 %v849
  %1047 = vmatpush2.bf16.msra.mxu0 %v848
  %1048 = vmatprep.subr.bf16.mxu0 %v847
  %1049 = vmatpush2.bf16.msra.mxu0 %v846
  %1050 = vmatprep.subr.bf16.mxu0 %v845
  %1051 = vmatpush2.bf16.msra.mxu0 %v844
  %1052 = vmatprep.mubr.bf16.mxu0 %v356
  %1053 = vmatmul.mubr.bf16.gmra.mxu0 %v344
  %v1054 = vpop.f32.mrf.mxu0
  %v1055 = vadd.f32 0.0, %v1054
  %v1056 = vpop.f32.mrf.mxu0
  %v1057 = vadd.f32 0.0, %v1056
  %v1058 = vpop.f32.mrf.mxu0
  %v1059 = vadd.f32 0.0, %v1058
  %v1060 = vpop.f32.mrf.mxu0
  %v1061 = vadd.f32 0.0, %v1060
  %1062 = vmatprep.mubr.bf16.mxu0 %v438
  %1063 = vmatmul.mubr.bf16.gmra.mxu0 %v437
  %v1064 = vpop.f32.mrf.mxu0
  %v1065 = vadd.f32 0.0, %v1064
  %v1066 = vpop.f32.mrf.mxu0
  %v1067 = vadd.f32 0.0, %v1066
  %v1068 = vpop.f32.mrf.mxu0
  %v1069 = vadd.f32 0.0, %v1068
  %v1070 = vpop.f32.mrf.mxu0
  %v1071 = vadd.f32 0.0, %v1070
  %1072 = vdwg.mxu0
  %1073 = vmatprep.subr.bf16.mxu0 %v875
  %1074 = vmatpush1.bf16.msra.mxu0 %v874
  %1075 = vmatprep.subr.bf16.mxu0 %v873
  %1076 = vmatpush1.bf16.msra.mxu0 %v872
  %1077 = vmatprep.subr.bf16.mxu0 %v871
  %1078 = vmatpush1.bf16.msra.mxu0 %v870
  %1079 = vmatprep.subr.bf16.mxu0 %v869
  %1080 = vmatpush1.bf16.msra.mxu0 %v868
  %1081 = vmatprep.subr.bf16.mxu0 %v867
  %1082 = vmatpush1.bf16.msra.mxu0 %v866
  %1083 = vmatprep.subr.bf16.mxu0 %v865
  %1084 = vmatpush1.bf16.msra.mxu0 %v864
  %1085 = vmatprep.subr.bf16.mxu0 %v863
  %1086 = vmatpush1.bf16.msra.mxu0 %v862
  %1087 = vmatprep.subr.bf16.mxu0 %v861
  %1088 = vmatpush1.bf16.msra.mxu0 %v860
  %1089 = vmatprep.subr.bf16.mxu0 %v891
  %1090 = vmatpush2.bf16.msra.mxu0 %v890
  %1091 = vmatprep.subr.bf16.mxu0 %v889
  %1092 = vmatpush2.bf16.msra.mxu0 %v888
  %1093 = vmatprep.subr.bf16.mxu0 %v887
  %1094 = vmatpush2.bf16.msra.mxu0 %v886
  %1095 = vmatprep.subr.bf16.mxu0 %v885
  %1096 = vmatpush2.bf16.msra.mxu0 %v884
  %1097 = vmatprep.subr.bf16.mxu0 %v883
  %1098 = vmatpush2.bf16.msra.mxu0 %v882
  %1099 = vmatprep.subr.bf16.mxu0 %v881
  %1100 = vmatpush2.bf16.msra.mxu0 %v880
  %1101 = vmatprep.subr.bf16.mxu0 %v879
  %1102 = vmatpush2.bf16.msra.mxu0 %v878
  %1103 = vmatprep.subr.bf16.mxu0 %v877
  %1104 = vmatpush2.bf16.msra.mxu0 %v876
  %1105 = vmatprep.mubr.bf16.mxu0 %v380
  %1106 = vmatmul.mubr.bf16.gmra.mxu0 %v368
  %v1107 = vpop.f32.mrf.mxu0
  %v1108 = vadd.f32 %v1055, %v1107
  %v1109 = vpop.f32.mrf.mxu0
  %v1110 = vadd.f32 %v1057, %v1109
  %v1111 = vpop.f32.mrf.mxu0
  %v1112 = vadd.f32 %v1059, %v1111
  %v1113 = vpop.f32.mrf.mxu0
  %v1114 = vadd.f32 %v1061, %v1113
  %1115 = vmatprep.mubr.bf16.mxu0 %v440
  %1116 = vmatmul.mubr.bf16.gmra.mxu0 %v439
  %v1117 = vpop.f32.mrf.mxu0
  %v1118 = vadd.f32 %v1065, %v1117
  %v1119 = vpop.f32.mrf.mxu0
  %v1120 = vadd.f32 %v1067, %v1119
  %v1121 = vpop.f32.mrf.mxu0
  %v1122 = vadd.f32 %v1069, %v1121
  %v1123 = vpop.f32.mrf.mxu0
  %v1124 = vadd.f32 %v1071, %v1123
  %1125 = vdwg.mxu0
  %1126 = vmatprep.subr.bf16.mxu0 %v907
  %1127 = vmatpush1.bf16.msra.mxu0 %v906
  %1128 = vmatprep.subr.bf16.mxu0 %v905
  %1129 = vmatpush1.bf16.msra.mxu0 %v904
  %1130 = vmatprep.subr.bf16.mxu0 %v903
  %1131 = vmatpush1.bf16.msra.mxu0 %v902
  %1132 = vmatprep.subr.bf16.mxu0 %v901
  %1133 = vmatpush1.bf16.msra.mxu0 %v900
  %1134 = vmatprep.subr.bf16.mxu0 %v899
  %1135 = vmatpush1.bf16.msra.mxu0 %v898
  %1136 = vmatprep.subr.bf16.mxu0 %v897
  %1137 = vmatpush1.bf16.msra.mxu0 %v896
  %1138 = vmatprep.subr.bf16.mxu0 %v895
  %1139 = vmatpush1.bf16.msra.mxu0 %v894
  %1140 = vmatprep.subr.bf16.mxu0 %v893
  %1141 = vmatpush1.bf16.msra.mxu0 %v892
  %1142 = vmatprep.subr.bf16.mxu0 %v923
  %1143 = vmatpush2.bf16.msra.mxu0 %v922
  %1144 = vmatprep.subr.bf16.mxu0 %v921
  %1145 = vmatpush2.bf16.msra.mxu0 %v920
  %1146 = vmatprep.subr.bf16.mxu0 %v919
  %1147 = vmatpush2.bf16.msra.mxu0 %v918
  %1148 = vmatprep.subr.bf16.mxu0 %v917
  %1149 = vmatpush2.bf16.msra.mxu0 %v916
  %1150 = vmatprep.subr.bf16.mxu0 %v915
  %1151 = vmatpush2.bf16.msra.mxu0 %v914
  %1152 = vmatprep.subr.bf16.mxu0 %v913
  %1153 = vmatpush2.bf16.msra.mxu0 %v912
  %1154 = vmatprep.subr.bf16.mxu0 %v911
  %1155 = vmatpush2.bf16.msra.mxu0 %v910
  %1156 = vmatprep.subr.bf16.mxu0 %v909
  %1157 = vmatpush2.bf16.msra.mxu0 %v908
  %1158 = vmatprep.mubr.bf16.mxu0 %v404
  %1159 = vmatmul.mubr.bf16.gmra.mxu0 %v392
  %v1160 = vpop.f32.mrf.mxu0
  %v1161 = vadd.f32 %v1108, %v1160
  %v1162 = vpop.f32.mrf.mxu0
  %v1163 = vadd.f32 %v1110, %v1162
  %v1164 = vpop.f32.mrf.mxu0
  %v1165 = vadd.f32 %v1112, %v1164
  %v1166 = vpop.f32.mrf.mxu0
  %v1167 = vadd.f32 %v1114, %v1166
  %1168 = vmatprep.mubr.bf16.mxu0 %v442
  %1169 = vmatmul.mubr.bf16.gmra.mxu0 %v441
  %v1170 = vpop.f32.mrf.mxu0
  %v1171 = vadd.f32 %v1118, %v1170
  %v1172 = vpop.f32.mrf.mxu0
  %v1173 = vadd.f32 %v1120, %v1172
  %v1174 = vpop.f32.mrf.mxu0
  %v1175 = vadd.f32 %v1122, %v1174
  %v1176 = vpop.f32.mrf.mxu0
  %v1177 = vadd.f32 %v1124, %v1176
  %1178 = vdwg.mxu0
  %v1287 = vunpack.c.l.b16 %v188
  %v1288 = vunpack.c.h.b16 %v188
  %v1289 = vunpack.c.l.b16 %v189
  %v1290 = vunpack.c.h.b16 %v189
  %v1291 = vunpack.c.l.b16 %v190
  %v1292 = vunpack.c.h.b16 %v190
  %v1293 = vunpack.c.l.b16 %v191
  %v1294 = vunpack.c.h.b16 %v191
  %v1295 = vunpack.c.l.b16 %v192
  %v1296 = vunpack.c.h.b16 %v192
  %v1297 = vunpack.c.l.b16 %v193
  %v1298 = vunpack.c.h.b16 %v193
  %v1299 = vunpack.c.l.b16 %v194
  %v1300 = vunpack.c.h.b16 %v194
  %v1301 = vunpack.c.l.b16 %v195
  %v1302 = vunpack.c.h.b16 %v195
  %v1303 = vunpack.c.l.b16 %v196
  %v1304 = vunpack.c.h.b16 %v196
  %v1305 = vunpack.c.l.b16 %v197
  %v1306 = vunpack.c.h.b16 %v197
  %v1307 = vunpack.c.l.b16 %v198
  %v1308 = vunpack.c.h.b16 %v198
  %v1309 = vunpack.c.l.b16 %v199
  %v1310 = vunpack.c.h.b16 %v199
  %v1311 = vunpack.c.l.b16 %v200
  %v1312 = vunpack.c.h.b16 %v200
  %v1313 = vunpack.c.l.b16 %v201
  %v1314 = vunpack.c.h.b16 %v201
  %v1315 = vunpack.c.l.b16 %v202
  %v1316 = vunpack.c.h.b16 %v202
  %v1317 = vunpack.c.l.b16 %v203
  %v1318 = vunpack.c.h.b16 %v203
  %v1319 = vunpack.c.l.b16 %v204
  %v1320 = vunpack.c.h.b16 %v204
  %v1321 = vunpack.c.l.b16 %v205
  %v1322 = vunpack.c.h.b16 %v205
  %v1323 = vunpack.c.l.b16 %v206
  %v1324 = vunpack.c.h.b16 %v206
  %v1325 = vunpack.c.l.b16 %v207
  %v1326 = vunpack.c.h.b16 %v207
  %v1327 = vunpack.c.l.b16 %v208
  %v1328 = vunpack.c.h.b16 %v208
  %v1329 = vunpack.c.l.b16 %v209
  %v1330 = vunpack.c.h.b16 %v209
  %v1331 = vunpack.c.l.b16 %v210
  %v1332 = vunpack.c.h.b16 %v210
  %v1333 = vunpack.c.l.b16 %v211
  %v1334 = vunpack.c.h.b16 %v211
  %v1335 = vunpack.c.l.b16 %v212
  %v1336 = vunpack.c.h.b16 %v212
  %v1337 = vunpack.c.l.b16 %v213
  %v1338 = vunpack.c.h.b16 %v213
  %v1339 = vunpack.c.l.b16 %v214
  %v1340 = vunpack.c.h.b16 %v214
  %v1341 = vunpack.c.l.b16 %v215
  %v1342 = vunpack.c.h.b16 %v215
  %v1343 = vunpack.c.l.b16 %v216
  %v1344 = vunpack.c.h.b16 %v216
  %v1345 = vunpack.c.l.b16 %v217
  %v1346 = vunpack.c.h.b16 %v217
  %v1347 = vunpack.c.l.b16 %v218
  %v1348 = vunpack.c.h.b16 %v218
  %v1349 = vunpack.c.l.b16 %v219
  %v1350 = vunpack.c.h.b16 %v219
  %v1351 = vunpack.c.l.b16 %v220
  %v1352 = vunpack.c.h.b16 %v220
  %v1353 = vunpack.c.l.b16 %v221
  %v1354 = vunpack.c.h.b16 %v221
  %v1355 = vunpack.c.l.b16 %v222
  %v1356 = vunpack.c.h.b16 %v222
  %v1357 = vunpack.c.l.b16 %v223
  %v1358 = vunpack.c.h.b16 %v223
  %v1359 = vunpack.c.l.b16 %v224
  %v1360 = vunpack.c.h.b16 %v224
  %v1361 = vunpack.c.l.b16 %v225
  %v1362 = vunpack.c.h.b16 %v225
  %v1363 = vunpack.c.l.b16 %v226
  %v1364 = vunpack.c.h.b16 %v226
  %v1365 = vunpack.c.l.b16 %v227
  %v1366 = vunpack.c.h.b16 %v227
  %v1367 = vunpack.c.l.b16 %v228
  %v1368 = vunpack.c.h.b16 %v228
  %v1369 = vunpack.c.l.b16 %v229
  %v1370 = vunpack.c.h.b16 %v229
  %v1371 = vunpack.c.l.b16 %v230
  %v1372 = vunpack.c.h.b16 %v230
  %v1373 = vunpack.c.l.b16 %v231
  %v1374 = vunpack.c.h.b16 %v231
  %v1375 = vunpack.c.l.b16 %v232
  %v1376 = vunpack.c.h.b16 %v232
  %v1377 = vunpack.c.l.b16 %v233
  %v1378 = vunpack.c.h.b16 %v233
  %v1379 = vunpack.c.l.b16 %v234
  %v1380 = vunpack.c.h.b16 %v234
  %v1381 = vunpack.c.l.b16 %v235
  %v1382 = vunpack.c.h.b16 %v235
  %v1383 = vunpack.c.l.b16 %v236
  %v1384 = vunpack.c.h.b16 %v236
  %v1385 = vunpack.c.l.b16 %v237
  %v1386 = vunpack.c.h.b16 %v237
  %v1387 = vunpack.c.l.b16 %v238
  %v1388 = vunpack.c.h.b16 %v238
  %v1389 = vunpack.c.l.b16 %v239
  %v1390 = vunpack.c.h.b16 %v239
  %v1391 = vunpack.c.l.b16 %v240
  %v1392 = vunpack.c.h.b16 %v240
  %v1393 = vunpack.c.l.b16 %v241
  %v1394 = vunpack.c.h.b16 %v241
  %v1395 = vunpack.c.l.b16 %v242
  %v1396 = vunpack.c.h.b16 %v242
  %v1397 = vunpack.c.l.b16 %v243
  %v1398 = vunpack.c.h.b16 %v243
  %v1399 = vunpack.c.l.b16 %v244
  %v1400 = vunpack.c.h.b16 %v244
  %v1401 = vunpack.c.l.b16 %v245
  %v1402 = vunpack.c.h.b16 %v245
  %v1403 = vunpack.c.l.b16 %v246
  %v1404 = vunpack.c.h.b16 %v246
  %v1405 = vunpack.c.l.b16 %v247
  %v1406 = vunpack.c.h.b16 %v247
  %v1407 = vunpack.c.l.b16 %v248
  %v1408 = vunpack.c.h.b16 %v248
  %v1409 = vunpack.c.l.b16 %v249
  %v1410 = vunpack.c.h.b16 %v249
  %v1411 = vunpack.c.l.b16 %v250
  %v1412 = vunpack.c.h.b16 %v250
  %v1413 = vunpack.c.l.b16 %v251
  %v1414 = vunpack.c.h.b16 %v251
  %v1415 = vunpack.c.l.b16 %v252
  %v1416 = vunpack.c.h.b16 %v252
  %v1417 = vunpack.c.l.b16 %v253
  %v1418 = vunpack.c.h.b16 %v253
  %v1419 = vunpack.c.l.b16 %v254
  %v1420 = vunpack.c.h.b16 %v254
  %v1421 = vunpack.c.l.b16 %v255
  %v1422 = vunpack.c.h.b16 %v255
  %v1423 = vunpack.c.l.b16 %v256
  %v1424 = vunpack.c.h.b16 %v256
  %v1425 = vunpack.c.l.b16 %v257
  %v1426 = vunpack.c.h.b16 %v257
  %v1427 = vunpack.c.l.b16 %v258
  %v1428 = vunpack.c.h.b16 %v258
  %v1429 = vunpack.c.l.b16 %v259
  %v1430 = vunpack.c.h.b16 %v259
  %v1431 = vunpack.c.l.b16 %v260
  %v1432 = vunpack.c.h.b16 %v260
  %v1433 = vunpack.c.l.b16 %v261
  %v1434 = vunpack.c.h.b16 %v261
  %v1435 = vunpack.c.l.b16 %v262
  %v1436 = vunpack.c.h.b16 %v262
  %v1437 = vunpack.c.l.b16 %v263
  %v1438 = vunpack.c.h.b16 %v263
  %v1439 = vunpack.c.l.b16 %v264
  %v1440 = vunpack.c.h.b16 %v264
  %v1441 = vunpack.c.l.b16 %v265
  %v1442 = vunpack.c.h.b16 %v265
  %v1443 = vunpack.c.l.b16 %v266
  %v1444 = vunpack.c.h.b16 %v266
  %v1445 = vunpack.c.l.b16 %v267
  %v1446 = vunpack.c.h.b16 %v267
  %v1447 = vunpack.c.l.b16 %v268
  %v1448 = vunpack.c.h.b16 %v268
  %v1449 = vunpack.c.l.b16 %v269
  %v1450 = vunpack.c.h.b16 %v269
  %v1451 = vunpack.c.l.b16 %v270
  %v1452 = vunpack.c.h.b16 %v270
  %v1453 = vunpack.c.l.b16 %v271
  %v1454 = vunpack.c.h.b16 %v271
  %v1455 = vunpack.c.l.b16 %v272
  %v1456 = vunpack.c.h.b16 %v272
  %v1457 = vunpack.c.l.b16 %v273
  %v1458 = vunpack.c.h.b16 %v273
  %v1459 = vunpack.c.l.b16 %v274
  %v1460 = vunpack.c.h.b16 %v274
  %v1461 = vunpack.c.l.b16 %v275
  %v1462 = vunpack.c.h.b16 %v275
  %v1463 = vunpack.c.l.b16 %v276
  %v1464 = vunpack.c.h.b16 %v276
  %v1465 = vunpack.c.l.b16 %v277
  %v1466 = vunpack.c.h.b16 %v277
  %v1467 = vunpack.c.l.b16 %v278
  %v1468 = vunpack.c.h.b16 %v278
  %v1469 = vunpack.c.l.b16 %v279
  %v1470 = vunpack.c.h.b16 %v279
  %v1471 = vunpack.c.l.b16 %v280
  %v1472 = vunpack.c.h.b16 %v280
  %v1473 = vunpack.c.l.b16 %v281
  %v1474 = vunpack.c.h.b16 %v281
  %v1475 = vunpack.c.l.b16 %v282
  %v1476 = vunpack.c.h.b16 %v282
  %v1477 = vunpack.c.l.b16 %v283
  %v1478 = vunpack.c.h.b16 %v283
  %v1479 = vpack.c.b16 %v1289, %v1287
  %v1480 = vpack.c.b16 %v1290, %v1288
  %v1481 = vpack.c.b16 %v1293, %v1291
  %v1482 = vpack.c.b16 %v1294, %v1292
  %v1483 = vpack.c.b16 %v1297, %v1295
  %v1484 = vpack.c.b16 %v1298, %v1296
  %v1485 = vpack.c.b16 %v1301, %v1299
  %v1486 = vpack.c.b16 %v1302, %v1300
  %v1487 = vpack.c.b16 %v1305, %v1303
  %v1488 = vpack.c.b16 %v1306, %v1304
  %v1489 = vpack.c.b16 %v1309, %v1307
  %v1490 = vpack.c.b16 %v1310, %v1308
  %v1491 = vpack.c.b16 %v1313, %v1311
  %v1492 = vpack.c.b16 %v1314, %v1312
  %v1493 = vpack.c.b16 %v1317, %v1315
  %v1494 = vpack.c.b16 %v1318, %v1316
  %v1495 = vpack.c.b16 %v1321, %v1319
  %v1496 = vpack.c.b16 %v1322, %v1320
  %v1497 = vpack.c.b16 %v1325, %v1323
  %v1498 = vpack.c.b16 %v1326, %v1324
  %v1499 = vpack.c.b16 %v1329, %v1327
  %v1500 = vpack.c.b16 %v1330, %v1328
  %v1501 = vpack.c.b16 %v1333, %v1331
  %v1502 = vpack.c.b16 %v1334, %v1332
  %v1503 = vpack.c.b16 %v1337, %v1335
  %v1504 = vpack.c.b16 %v1338, %v1336
  %v1505 = vpack.c.b16 %v1341, %v1339
  %v1506 = vpack.c.b16 %v1342, %v1340
  %v1507 = vpack.c.b16 %v1345, %v1343
  %v1508 = vpack.c.b16 %v1346, %v1344
  %v1509 = vpack.c.b16 %v1349, %v1347
  %v1510 = vpack.c.b16 %v1350, %v1348
  %v1511 = vpack.c.b16 %v1353, %v1351
  %v1512 = vpack.c.b16 %v1354, %v1352
  %v1513 = vpack.c.b16 %v1357, %v1355
  %v1514 = vpack.c.b16 %v1358, %v1356
  %v1515 = vpack.c.b16 %v1361, %v1359
  %v1516 = vpack.c.b16 %v1362, %v1360
  %v1517 = vpack.c.b16 %v1365, %v1363
  %v1518 = vpack.c.b16 %v1366, %v1364
  %v1519 = vpack.c.b16 %v1369, %v1367
  %v1520 = vpack.c.b16 %v1370, %v1368
  %v1521 = vpack.c.b16 %v1373, %v1371
  %v1522 = vpack.c.b16 %v1374, %v1372
  %v1523 = vpack.c.b16 %v1377, %v1375
  %v1524 = vpack.c.b16 %v1378, %v1376
  %v1525 = vpack.c.b16 %v1381, %v1379
  %v1526 = vpack.c.b16 %v1382, %v1380
  %v1527 = vpack.c.b16 %v1385, %v1383
  %v1528 = vpack.c.b16 %v1386, %v1384
  %v1529 = vpack.c.b16 %v1389, %v1387
  %v1530 = vpack.c.b16 %v1390, %v1388
  %v1531 = vpack.c.b16 %v1393, %v1391
  %v1532 = vpack.c.b16 %v1394, %v1392
  %v1533 = vpack.c.b16 %v1397, %v1395
  %v1534 = vpack.c.b16 %v1398, %v1396
  %v1535 = vpack.c.b16 %v1401, %v1399
  %v1536 = vpack.c.b16 %v1402, %v1400
  %v1537 = vpack.c.b16 %v1405, %v1403
  %v1538 = vpack.c.b16 %v1406, %v1404
  %v1539 = vpack.c.b16 %v1409, %v1407
  %v1540 = vpack.c.b16 %v1410, %v1408
  %v1541 = vpack.c.b16 %v1413, %v1411
  %v1542 = vpack.c.b16 %v1414, %v1412
  %v1543 = vpack.c.b16 %v1417, %v1415
  %v1544 = vpack.c.b16 %v1418, %v1416
  %v1545 = vpack.c.b16 %v1421, %v1419
  %v1546 = vpack.c.b16 %v1422, %v1420
  %v1547 = vpack.c.b16 %v1425, %v1423
  %v1548 = vpack.c.b16 %v1426, %v1424
  %v1549 = vpack.c.b16 %v1429, %v1427
  %v1550 = vpack.c.b16 %v1430, %v1428
  %v1551 = vpack.c.b16 %v1433, %v1431
  %v1552 = vpack.c.b16 %v1434, %v1432
  %v1553 = vpack.c.b16 %v1437, %v1435
  %v1554 = vpack.c.b16 %v1438, %v1436
  %v1555 = vpack.c.b16 %v1441, %v1439
  %v1556 = vpack.c.b16 %v1442, %v1440
  %v1557 = vpack.c.b16 %v1445, %v1443
  %v1558 = vpack.c.b16 %v1446, %v1444
  %v1559 = vpack.c.b16 %v1449, %v1447
  %v1560 = vpack.c.b16 %v1450, %v1448
  %v1561 = vpack.c.b16 %v1453, %v1451
  %v1562 = vpack.c.b16 %v1454, %v1452
  %v1563 = vpack.c.b16 %v1457, %v1455
  %v1564 = vpack.c.b16 %v1458, %v1456
  %v1565 = vpack.c.b16 %v1461, %v1459
  %v1566 = vpack.c.b16 %v1462, %v1460
  %v1567 = vpack.c.b16 %v1465, %v1463
  %v1568 = vpack.c.b16 %v1466, %v1464
  %v1569 = vpack.c.b16 %v1469, %v1467
  %v1570 = vpack.c.b16 %v1470, %v1468
  %v1571 = vpack.c.b16 %v1473, %v1471
  %v1572 = vpack.c.b16 %v1474, %v1472
  %v1573 = vpack.c.b16 %v1477, %v1475
  %v1574 = vpack.c.b16 %v1478, %v1476
  %1671 = vmatprep.subr.bf16.mxu0 %v1494
  %1672 = vmatpush1.bf16.msra.mxu0 %v1493
  %1673 = vmatprep.subr.bf16.mxu0 %v1492
  %1674 = vmatpush1.bf16.msra.mxu0 %v1491
  %1675 = vmatprep.subr.bf16.mxu0 %v1490
  %1676 = vmatpush1.bf16.msra.mxu0 %v1489
  %1677 = vmatprep.subr.bf16.mxu0 %v1488
  %1678 = vmatpush1.bf16.msra.mxu0 %v1487
  %1679 = vmatprep.subr.bf16.mxu0 %v1486
  %1680 = vmatpush1.bf16.msra.mxu0 %v1485
  %1681 = vmatprep.subr.bf16.mxu0 %v1484
  %1682 = vmatpush1.bf16.msra.mxu0 %v1483
  %1683 = vmatprep.subr.bf16.mxu0 %v1482
  %1684 = vmatpush1.bf16.msra.mxu0 %v1481
  %1685 = vmatprep.subr.bf16.mxu0 %v1480
  %1686 = vmatpush1.bf16.msra.mxu0 %v1479
  %1687 = vmatprep.subr.bf16.mxu0 %v1510
  %1688 = vmatpush2.bf16.msra.mxu0 %v1509
  %1689 = vmatprep.subr.bf16.mxu0 %v1508
  %1690 = vmatpush2.bf16.msra.mxu0 %v1507
  %1691 = vmatprep.subr.bf16.mxu0 %v1506
  %1692 = vmatpush2.bf16.msra.mxu0 %v1505
  %1693 = vmatprep.subr.bf16.mxu0 %v1504
  %1694 = vmatpush2.bf16.msra.mxu0 %v1503
  %1695 = vmatprep.subr.bf16.mxu0 %v1502
  %1696 = vmatpush2.bf16.msra.mxu0 %v1501
  %1697 = vmatprep.subr.bf16.mxu0 %v1500
  %1698 = vmatpush2.bf16.msra.mxu0 %v1499
  %1699 = vmatprep.subr.bf16.mxu0 %v1498
  %1700 = vmatpush2.bf16.msra.mxu0 %v1497
  %1701 = vmatprep.subr.bf16.mxu0 %v1496
  %1702 = vmatpush2.bf16.msra.mxu0 %v1495
  %1703 = vmatprep.mubr.bf16.mxu0 %v321
  %1704 = vmatmul.mubr.bf16.gmra.mxu0 %v320
  %v1705 = vpop.f32.mrf.mxu0
  %v1706 = vadd.f32 %v1161, %v1705
  %v1707 = vpop.f32.mrf.mxu0
  %v1708 = vadd.f32 %v1163, %v1707
  %v1709 = vpop.f32.mrf.mxu0
  %v1710 = vadd.f32 %v1165, %v1709
  %v1711 = vpop.f32.mrf.mxu0
  %v1712 = vadd.f32 %v1167, %v1711
  %1713 = vmatprep.mubr.bf16.mxu0 %v327
  %1714 = vmatmul.mubr.bf16.gmra.mxu0 %v326
  %v1715 = vpop.f32.mrf.mxu0
  %v1716 = vadd.f32 %v1171, %v1715
  %v1717 = vpop.f32.mrf.mxu0
  %v1718 = vadd.f32 %v1173, %v1717
  %v1719 = vpop.f32.mrf.mxu0
  %v1720 = vadd.f32 %v1175, %v1719
  %v1721 = vpop.f32.mrf.mxu0
  %v1722 = vadd.f32 %v1177, %v1721
  %1723 = vdwg.mxu0
  %1724 = vmatprep.subr.bf16.mxu0 %v1526
  %1725 = vmatpush1.bf16.msra.mxu0 %v1525
  %1726 = vmatprep.subr.bf16.mxu0 %v1524
  %1727 = vmatpush1.bf16.msra.mxu0 %v1523
  %1728 = vmatprep.subr.bf16.mxu0 %v1522
  %1729 = vmatpush1.bf16.msra.mxu0 %v1521
  %1730 = vmatprep.subr.bf16.mxu0 %v1520
  %1731 = vmatpush1.bf16.msra.mxu0 %v1519
  %1732 = vmatprep.subr.bf16.mxu0 %v1518
  %1733 = vmatpush1.bf16.msra.mxu0 %v1517
  %1734 = vmatprep.subr.bf16.mxu0 %v1516
  %1735 = vmatpush1.bf16.msra.mxu0 %v1515
  %1736 = vmatprep.subr.bf16.mxu0 %v1514
  %1737 = vmatpush1.bf16.msra.mxu0 %v1513
  %1738 = vmatprep.subr.bf16.mxu0 %v1512
  %1739 = vmatpush1.bf16.msra.mxu0 %v1511
  %1740 = vmatprep.subr.bf16.mxu0 %v1542
  %1741 = vmatpush2.bf16.msra.mxu0 %v1541
  %1742 = vmatprep.subr.bf16.mxu0 %v1540
  %1743 = vmatpush2.bf16.msra.mxu0 %v1539
  %1744 = vmatprep.subr.bf16.mxu0 %v1538
  %1745 = vmatpush2.bf16.msra.mxu0 %v1537
  %1746 = vmatprep.subr.bf16.mxu0 %v1536
  %1747 = vmatpush2.bf16.msra.mxu0 %v1535
  %1748 = vmatprep.subr.bf16.mxu0 %v1534
  %1749 = vmatpush2.bf16.msra.mxu0 %v1533
  %1750 = vmatprep.subr.bf16.mxu0 %v1532
  %1751 = vmatpush2.bf16.msra.mxu0 %v1531
  %1752 = vmatprep.subr.bf16.mxu0 %v1530
  %1753 = vmatpush2.bf16.msra.mxu0 %v1529
  %1754 = vmatprep.subr.bf16.mxu0 %v1528
  %1755 = vmatpush2.bf16.msra.mxu0 %v1527
  %1756 = vmatprep.mubr.bf16.mxu0 %v323
  %1757 = vmatmul.mubr.bf16.gmra.mxu0 %v322
  %v1758 = vpop.f32.mrf.mxu0
  %v1759 = vadd.f32 %v1706, %v1758
  %v1760 = vpop.f32.mrf.mxu0
  %v1761 = vadd.f32 %v1708, %v1760
  %v1762 = vpop.f32.mrf.mxu0
  %v1763 = vadd.f32 %v1710, %v1762
  %v1764 = vpop.f32.mrf.mxu0
  %v1765 = vadd.f32 %v1712, %v1764
  %1766 = vmatprep.mubr.bf16.mxu0 %v329
  %1767 = vmatmul.mubr.bf16.gmra.mxu0 %v328
  %v1768 = vpop.f32.mrf.mxu0
  %v1769 = vadd.f32 %v1716, %v1768
  %v1770 = vpop.f32.mrf.mxu0
  %v1771 = vadd.f32 %v1718, %v1770
  %v1772 = vpop.f32.mrf.mxu0
  %v1773 = vadd.f32 %v1720, %v1772
  %v1774 = vpop.f32.mrf.mxu0
  %v1775 = vadd.f32 %v1722, %v1774
  %1776 = vdwg.mxu0
  %1777 = vmatprep.subr.bf16.mxu0 %v1558
  %1778 = vmatpush1.bf16.msra.mxu0 %v1557
  %1779 = vmatprep.subr.bf16.mxu0 %v1556
  %1780 = vmatpush1.bf16.msra.mxu0 %v1555
  %1781 = vmatprep.subr.bf16.mxu0 %v1554
  %1782 = vmatpush1.bf16.msra.mxu0 %v1553
  %1783 = vmatprep.subr.bf16.mxu0 %v1552
  %1784 = vmatpush1.bf16.msra.mxu0 %v1551
  %1785 = vmatprep.subr.bf16.mxu0 %v1550
  %1786 = vmatpush1.bf16.msra.mxu0 %v1549
  %1787 = vmatprep.subr.bf16.mxu0 %v1548
  %1788 = vmatpush1.bf16.msra.mxu0 %v1547
  %1789 = vmatprep.subr.bf16.mxu0 %v1546
  %1790 = vmatpush1.bf16.msra.mxu0 %v1545
  %1791 = vmatprep.subr.bf16.mxu0 %v1544
  %1792 = vmatpush1.bf16.msra.mxu0 %v1543
  %1793 = vmatprep.subr.bf16.mxu0 %v1574
  %1794 = vmatpush2.bf16.msra.mxu0 %v1573
  %1795 = vmatprep.subr.bf16.mxu0 %v1572
  %1796 = vmatpush2.bf16.msra.mxu0 %v1571
  %1797 = vmatprep.subr.bf16.mxu0 %v1570
  %1798 = vmatpush2.bf16.msra.mxu0 %v1569
  %1799 = vmatprep.subr.bf16.mxu0 %v1568
  %1800 = vmatpush2.bf16.msra.mxu0 %v1567
  %1801 = vmatprep.subr.bf16.mxu0 %v1566
  %1802 = vmatpush2.bf16.msra.mxu0 %v1565
  %1803 = vmatprep.subr.bf16.mxu0 %v1564
  %1804 = vmatpush2.bf16.msra.mxu0 %v1563
  %1805 = vmatprep.subr.bf16.mxu0 %v1562
  %1806 = vmatpush2.bf16.msra.mxu0 %v1561
  %1807 = vmatprep.subr.bf16.mxu0 %v1560
  %1808 = vmatpush2.bf16.msra.mxu0 %v1559
  %1809 = vmatprep.mubr.bf16.mxu0 %v325
  %1810 = vmatmul.mubr.bf16.gmra.mxu0 %v324
  %v1811 = vpop.f32.mrf.mxu0
  %v1812 = vadd.f32 %v1759, %v1811
  %v1813 = vpop.f32.mrf.mxu0
  %v1814 = vadd.f32 %v1761, %v1813
  %v1815 = vpop.f32.mrf.mxu0
  %v1816 = vadd.f32 %v1763, %v1815
  %v1817 = vpop.f32.mrf.mxu0
  %v1818 = vadd.f32 %v1765, %v1817
  %1819 = vmatprep.mubr.bf16.mxu0 %v331
  %1820 = vmatmul.mubr.bf16.gmra.mxu0 %v330
  %v1821 = vpop.f32.mrf.mxu0
  %v1822 = vadd.f32 %v1769, %v1821
  %v1823 = vpop.f32.mrf.mxu0
  %v1824 = vadd.f32 %v1771, %v1823
  %v1825 = vpop.f32.mrf.mxu0
  %v1826 = vadd.f32 %v1773, %v1825
  %v1827 = vpop.f32.mrf.mxu0
  %v1828 = vadd.f32 %v1775, %v1827
  %1829 = vdwg.mxu0
  %vm1830 = vcmask 1046528
  %v1831 = vrot.slane %v320, 1
  %v1832 = vrot.slane %v326, 1
  %v1833 = vsel %vm1830, %v1831, %v1832
  %v1834 = vrot.slane %v321, 1
  %v1835 = vrot.slane %v327, 1
  %v1836 = vsel %vm1830, %v1834, %v1835
  %v1837 = vrot.slane %v322, 1
  %v1838 = vrot.slane %v328, 1
  %v1839 = vsel %vm1830, %v1837, %v1838
  %v1840 = vrot.slane %v323, 1
  %v1841 = vrot.slane %v329, 1
  %v1842 = vsel %vm1830, %v1840, %v1841
  %v1843 = vrot.slane %v324, 1
  %v1844 = vrot.slane %v330, 1
  %v1845 = vsel %vm1830, %v1843, %v1844
  %v1846 = vrot.slane %v325, 1
  %v1847 = vrot.slane %v331, 1
  %v1848 = vsel %vm1830, %v1846, %v1847
  %vm1855 = vcmask 1046528
  %v1858 = vsel %vm1855, %v1832, 0
  %v1861 = vsel %vm1855, %v1835, 0
  %v1864 = vsel %vm1855, %v1838, 0
  %v1867 = vsel %vm1855, %v1841, 0
  %v1870 = vsel %vm1855, %v1844, 0
  %v1873 = vsel %vm1855, %v1847, 0
  %s1875 = scalar_lea.vmem %s1, 1536
  %v1876 = vld [vmem:[%s1875] sm:$0xff]
  %v1877 = vld [vmem:[%s1875 + $0x8] sm:$0xff]
  %v1878 = vld [vmem:[%s1875 + $0x10] sm:$0xff]
  %v1879 = vld [vmem:[%s1875 + $0x18] sm:$0xff]
  %v1880 = vld [vmem:[%s1875 + $0x20] sm:$0xff]
  %v1881 = vld [vmem:[%s1875 + $0x28] sm:$0xff]
  %v1882 = vld [vmem:[%s1875 + $0x30] sm:$0xff]
  %v1883 = vld [vmem:[%s1875 + $0x38] sm:$0xff]
  %v1884 = vld [vmem:[%s1875 + $0x40] sm:$0xff]
  %v1885 = vld [vmem:[%s1875 + $0x48] sm:$0xff]
  %v1886 = vld [vmem:[%s1875 + $0x50] sm:$0xff]
  %v1887 = vld [vmem:[%s1875 + $0x58] sm:$0xff]
  %v1888 = vld [vmem:[%s1875 + $0x60] sm:$0xff]
  %v1889 = vld [vmem:[%s1875 + $0x68] sm:$0xff]
  %v1890 = vld [vmem:[%s1875 + $0x70] sm:$0xff]
  %v1891 = vld [vmem:[%s1875 + $0x78] sm:$0xff]
  %v1892 = vld [vmem:[%s1875 + $0x80] sm:$0xff]
  %v1893 = vld [vmem:[%s1875 + $0x88] sm:$0xff]
  %v1894 = vld [vmem:[%s1875 + $0x90] sm:$0xff]
  %v1895 = vld [vmem:[%s1875 + $0x98] sm:$0xff]
  %v1896 = vld [vmem:[%s1875 + $0xa0] sm:$0xff]
  %v1897 = vld [vmem:[%s1875 + $0xa8] sm:$0xff]
  %v1898 = vld [vmem:[%s1875 + $0xb0] sm:$0xff]
  %v1899 = vld [vmem:[%s1875 + $0xb8] sm:$0xff]
  %v1900 = vld [vmem:[%s1875 + $0xc0] sm:$0xff]
  %v1901 = vld [vmem:[%s1875 + $0xc8] sm:$0xff]
  %v1902 = vld [vmem:[%s1875 + $0xd0] sm:$0xff]
  %v1903 = vld [vmem:[%s1875 + $0xd8] sm:$0xff]
  %v1904 = vld [vmem:[%s1875 + $0xe0] sm:$0xff]
  %v1905 = vld [vmem:[%s1875 + $0xe8] sm:$0xff]
  %v1906 = vld [vmem:[%s1875 + $0xf0] sm:$0xff]
  %v1907 = vld [vmem:[%s1875 + $0xf8] sm:$0xff]
  %v1908 = vld [vmem:[%s1875 + $0x100] sm:$0xff]
  %v1909 = vld [vmem:[%s1875 + $0x108] sm:$0xff]
  %v1910 = vld [vmem:[%s1875 + $0x110] sm:$0xff]
  %v1911 = vld [vmem:[%s1875 + $0x118] sm:$0xff]
  %v1912 = vld [vmem:[%s1875 + $0x120] sm:$0xff]
  %v1913 = vld [vmem:[%s1875 + $0x128] sm:$0xff]
  %v1914 = vld [vmem:[%s1875 + $0x130] sm:$0xff]
  %v1915 = vld [vmem:[%s1875 + $0x138] sm:$0xff]
  %v1916 = vld [vmem:[%s1875 + $0x140] sm:$0xff]
  %v1917 = vld [vmem:[%s1875 + $0x148] sm:$0xff]
  %v1918 = vld [vmem:[%s1875 + $0x150] sm:$0xff]
  %v1919 = vld [vmem:[%s1875 + $0x158] sm:$0xff]
  %v1920 = vld [vmem:[%s1875 + $0x160] sm:$0xff]
  %v1921 = vld [vmem:[%s1875 + $0x168] sm:$0xff]
  %v1922 = vld [vmem:[%s1875 + $0x170] sm:$0xff]
  %v1923 = vld [vmem:[%s1875 + $0x178] sm:$0xff]
  %v1924 = vld [vmem:[%s1875 + $0x180] sm:$0xff]
  %v1925 = vld [vmem:[%s1875 + $0x188] sm:$0xff]
  %v1926 = vld [vmem:[%s1875 + $0x190] sm:$0xff]
  %v1927 = vld [vmem:[%s1875 + $0x198] sm:$0xff]
  %v1928 = vld [vmem:[%s1875 + $0x1a0] sm:$0xff]
  %v1929 = vld [vmem:[%s1875 + $0x1a8] sm:$0xff]
  %v1930 = vld [vmem:[%s1875 + $0x1b0] sm:$0xff]
  %v1931 = vld [vmem:[%s1875 + $0x1b8] sm:$0xff]
  %v1932 = vld [vmem:[%s1875 + $0x1c0] sm:$0xff]
  %v1933 = vld [vmem:[%s1875 + $0x1c8] sm:$0xff]
  %v1934 = vld [vmem:[%s1875 + $0x1d0] sm:$0xff]
  %v1935 = vld [vmem:[%s1875 + $0x1d8] sm:$0xff]
  %v1936 = vld [vmem:[%s1875 + $0x1e0] sm:$0xff]
  %v1937 = vld [vmem:[%s1875 + $0x1e8] sm:$0xff]
  %v1938 = vld [vmem:[%s1875 + $0x1f0] sm:$0xff]
  %v1939 = vld [vmem:[%s1875 + $0x1f8] sm:$0xff]
  %v1940 = vld [vmem:[%s1875 + $0x200] sm:$0xff]
  %v1941 = vld [vmem:[%s1875 + $0x208] sm:$0xff]
  %v1942 = vld [vmem:[%s1875 + $0x210] sm:$0xff]
  %v1943 = vld [vmem:[%s1875 + $0x218] sm:$0xff]
  %v1944 = vld [vmem:[%s1875 + $0x220] sm:$0xff]
  %v1945 = vld [vmem:[%s1875 + $0x228] sm:$0xff]
  %v1946 = vld [vmem:[%s1875 + $0x230] sm:$0xff]
  %v1947 = vld [vmem:[%s1875 + $0x238] sm:$0xff]
  %v1948 = vld [vmem:[%s1875 + $0x240] sm:$0xff]
  %v1949 = vld [vmem:[%s1875 + $0x248] sm:$0xff]
  %v1950 = vld [vmem:[%s1875 + $0x250] sm:$0xff]
  %v1951 = vld [vmem:[%s1875 + $0x258] sm:$0xff]
  %v1952 = vld [vmem:[%s1875 + $0x260] sm:$0xff]
  %v1953 = vld [vmem:[%s1875 + $0x268] sm:$0xff]
  %v1954 = vld [vmem:[%s1875 + $0x270] sm:$0xff]
  %v1955 = vld [vmem:[%s1875 + $0x278] sm:$0xff]
  %v1956 = vld [vmem:[%s1875 + $0x280] sm:$0xff]
  %v1957 = vld [vmem:[%s1875 + $0x288] sm:$0xff]
  %v1958 = vld [vmem:[%s1875 + $0x290] sm:$0xff]
  %v1959 = vld [vmem:[%s1875 + $0x298] sm:$0xff]
  %v1960 = vld [vmem:[%s1875 + $0x2a0] sm:$0xff]
  %v1961 = vld [vmem:[%s1875 + $0x2a8] sm:$0xff]
  %v1962 = vld [vmem:[%s1875 + $0x2b0] sm:$0xff]
  %v1963 = vld [vmem:[%s1875 + $0x2b8] sm:$0xff]
  %v1964 = vld [vmem:[%s1875 + $0x2c0] sm:$0xff]
  %v1965 = vld [vmem:[%s1875 + $0x2c8] sm:$0xff]
  %v1966 = vld [vmem:[%s1875 + $0x2d0] sm:$0xff]
  %v1967 = vld [vmem:[%s1875 + $0x2d8] sm:$0xff]
  %v1968 = vld [vmem:[%s1875 + $0x2e0] sm:$0xff]
  %v1969 = vld [vmem:[%s1875 + $0x2e8] sm:$0xff]
  %v1970 = vld [vmem:[%s1875 + $0x2f0] sm:$0xff]
  %v1971 = vld [vmem:[%s1875 + $0x2f8] sm:$0xff]
  %v2068 = vunpack.c.l.b16 %v1876
  %v2069 = vunpack.c.h.b16 %v1876
  %v2070 = vunpack.c.l.b16 %v1877
  %v2071 = vunpack.c.h.b16 %v1877
  %v2072 = vunpack.c.l.b16 %v1878
  %v2073 = vunpack.c.h.b16 %v1878
  %v2074 = vunpack.c.l.b16 %v1879
  %v2075 = vunpack.c.h.b16 %v1879
  %v2076 = vunpack.c.l.b16 %v1880
  %v2077 = vunpack.c.h.b16 %v1880
  %v2078 = vunpack.c.l.b16 %v1881
  %v2079 = vunpack.c.h.b16 %v1881
  %v2080 = vunpack.c.l.b16 %v1882
  %v2081 = vunpack.c.h.b16 %v1882
  %v2082 = vunpack.c.l.b16 %v1883
  %v2083 = vunpack.c.h.b16 %v1883
  %v2084 = vunpack.c.l.b16 %v1884
  %v2085 = vunpack.c.h.b16 %v1884
  %v2086 = vunpack.c.l.b16 %v1885
  %v2087 = vunpack.c.h.b16 %v1885
  %v2088 = vunpack.c.l.b16 %v1886
  %v2089 = vunpack.c.h.b16 %v1886
  %v2090 = vunpack.c.l.b16 %v1887
  %v2091 = vunpack.c.h.b16 %v1887
  %v2092 = vunpack.c.l.b16 %v1888
  %v2093 = vunpack.c.h.b16 %v1888
  %v2094 = vunpack.c.l.b16 %v1889
  %v2095 = vunpack.c.h.b16 %v1889
  %v2096 = vunpack.c.l.b16 %v1890
  %v2097 = vunpack.c.h.b16 %v1890
  %v2098 = vunpack.c.l.b16 %v1891
  %v2099 = vunpack.c.h.b16 %v1891
  %v2100 = vunpack.c.l.b16 %v1892
  %v2101 = vunpack.c.h.b16 %v1892
  %v2102 = vunpack.c.l.b16 %v1893
  %v2103 = vunpack.c.h.b16 %v1893
  %v2104 = vunpack.c.l.b16 %v1894
  %v2105 = vunpack.c.h.b16 %v1894
  %v2106 = vunpack.c.l.b16 %v1895
  %v2107 = vunpack.c.h.b16 %v1895
  %v2108 = vunpack.c.l.b16 %v1896
  %v2109 = vunpack.c.h.b16 %v1896
  %v2110 = vunpack.c.l.b16 %v1897
  %v2111 = vunpack.c.h.b16 %v1897
  %v2112 = vunpack.c.l.b16 %v1898
  %v2113 = vunpack.c.h.b16 %v1898
  %v2114 = vunpack.c.l.b16 %v1899
  %v2115 = vunpack.c.h.b16 %v1899
  %v2116 = vunpack.c.l.b16 %v1900
  %v2117 = vunpack.c.h.b16 %v1900
  %v2118 = vunpack.c.l.b16 %v1901
  %v2119 = vunpack.c.h.b16 %v1901
  %v2120 = vunpack.c.l.b16 %v1902
  %v2121 = vunpack.c.h.b16 %v1902
  %v2122 = vunpack.c.l.b16 %v1903
  %v2123 = vunpack.c.h.b16 %v1903
  %v2124 = vunpack.c.l.b16 %v1904
  %v2125 = vunpack.c.h.b16 %v1904
  %v2126 = vunpack.c.l.b16 %v1905
  %v2127 = vunpack.c.h.b16 %v1905
  %v2128 = vunpack.c.l.b16 %v1906
  %v2129 = vunpack.c.h.b16 %v1906
  %v2130 = vunpack.c.l.b16 %v1907
  %v2131 = vunpack.c.h.b16 %v1907
  %v2132 = vunpack.c.l.b16 %v1908
  %v2133 = vunpack.c.h.b16 %v1908
  %v2134 = vunpack.c.l.b16 %v1909
  %v2135 = vunpack.c.h.b16 %v1909
  %v2136 = vunpack.c.l.b16 %v1910
  %v2137 = vunpack.c.h.b16 %v1910
  %v2138 = vunpack.c.l.b16 %v1911
  %v2139 = vunpack.c.h.b16 %v1911
  %v2140 = vunpack.c.l.b16 %v1912
  %v2141 = vunpack.c.h.b16 %v1912
  %v2142 = vunpack.c.l.b16 %v1913
  %v2143 = vunpack.c.h.b16 %v1913
  %v2144 = vunpack.c.l.b16 %v1914
  %v2145 = vunpack.c.h.b16 %v1914
  %v2146 = vunpack.c.l.b16 %v1915
  %v2147 = vunpack.c.h.b16 %v1915
  %v2148 = vunpack.c.l.b16 %v1916
  %v2149 = vunpack.c.h.b16 %v1916
  %v2150 = vunpack.c.l.b16 %v1917
  %v2151 = vunpack.c.h.b16 %v1917
  %v2152 = vunpack.c.l.b16 %v1918
  %v2153 = vunpack.c.h.b16 %v1918
  %v2154 = vunpack.c.l.b16 %v1919
  %v2155 = vunpack.c.h.b16 %v1919
  %v2156 = vunpack.c.l.b16 %v1920
  %v2157 = vunpack.c.h.b16 %v1920
  %v2158 = vunpack.c.l.b16 %v1921
  %v2159 = vunpack.c.h.b16 %v1921
  %v2160 = vunpack.c.l.b16 %v1922
  %v2161 = vunpack.c.h.b16 %v1922
  %v2162 = vunpack.c.l.b16 %v1923
  %v2163 = vunpack.c.h.b16 %v1923
  %v2164 = vunpack.c.l.b16 %v1924
  %v2165 = vunpack.c.h.b16 %v1924
  %v2166 = vunpack.c.l.b16 %v1925
  %v2167 = vunpack.c.h.b16 %v1925
  %v2168 = vunpack.c.l.b16 %v1926
  %v2169 = vunpack.c.h.b16 %v1926
  %v2170 = vunpack.c.l.b16 %v1927
  %v2171 = vunpack.c.h.b16 %v1927
  %v2172 = vunpack.c.l.b16 %v1928
  %v2173 = vunpack.c.h.b16 %v1928
  %v2174 = vunpack.c.l.b16 %v1929
  %v2175 = vunpack.c.h.b16 %v1929
  %v2176 = vunpack.c.l.b16 %v1930
  %v2177 = vunpack.c.h.b16 %v1930
  %v2178 = vunpack.c.l.b16 %v1931
  %v2179 = vunpack.c.h.b16 %v1931
  %v2180 = vunpack.c.l.b16 %v1932
  %v2181 = vunpack.c.h.b16 %v1932
  %v2182 = vunpack.c.l.b16 %v1933
  %v2183 = vunpack.c.h.b16 %v1933
  %v2184 = vunpack.c.l.b16 %v1934
  %v2185 = vunpack.c.h.b16 %v1934
  %v2186 = vunpack.c.l.b16 %v1935
  %v2187 = vunpack.c.h.b16 %v1935
  %v2188 = vunpack.c.l.b16 %v1936
  %v2189 = vunpack.c.h.b16 %v1936
  %v2190 = vunpack.c.l.b16 %v1937
  %v2191 = vunpack.c.h.b16 %v1937
  %v2192 = vunpack.c.l.b16 %v1938
  %v2193 = vunpack.c.h.b16 %v1938
  %v2194 = vunpack.c.l.b16 %v1939
  %v2195 = vunpack.c.h.b16 %v1939
  %v2196 = vunpack.c.l.b16 %v1940
  %v2197 = vunpack.c.h.b16 %v1940
  %v2198 = vunpack.c.l.b16 %v1941
  %v2199 = vunpack.c.h.b16 %v1941
  %v2200 = vunpack.c.l.b16 %v1942
  %v2201 = vunpack.c.h.b16 %v1942
  %v2202 = vunpack.c.l.b16 %v1943
  %v2203 = vunpack.c.h.b16 %v1943
  %v2204 = vunpack.c.l.b16 %v1944
  %v2205 = vunpack.c.h.b16 %v1944
  %v2206 = vunpack.c.l.b16 %v1945
  %v2207 = vunpack.c.h.b16 %v1945
  %v2208 = vunpack.c.l.b16 %v1946
  %v2209 = vunpack.c.h.b16 %v1946
  %v2210 = vunpack.c.l.b16 %v1947
  %v2211 = vunpack.c.h.b16 %v1947
  %v2212 = vunpack.c.l.b16 %v1948
  %v2213 = vunpack.c.h.b16 %v1948
  %v2214 = vunpack.c.l.b16 %v1949
  %v2215 = vunpack.c.h.b16 %v1949
  %v2216 = vunpack.c.l.b16 %v1950
  %v2217 = vunpack.c.h.b16 %v1950
  %v2218 = vunpack.c.l.b16 %v1951
  %v2219 = vunpack.c.h.b16 %v1951
  %v2220 = vunpack.c.l.b16 %v1952
  %v2221 = vunpack.c.h.b16 %v1952
  %v2222 = vunpack.c.l.b16 %v1953
  %v2223 = vunpack.c.h.b16 %v1953
  %v2224 = vunpack.c.l.b16 %v1954
  %v2225 = vunpack.c.h.b16 %v1954
  %v2226 = vunpack.c.l.b16 %v1955
  %v2227 = vunpack.c.h.b16 %v1955
  %v2228 = vunpack.c.l.b16 %v1956
  %v2229 = vunpack.c.h.b16 %v1956
  %v2230 = vunpack.c.l.b16 %v1957
  %v2231 = vunpack.c.h.b16 %v1957
  %v2232 = vunpack.c.l.b16 %v1958
  %v2233 = vunpack.c.h.b16 %v1958
  %v2234 = vunpack.c.l.b16 %v1959
  %v2235 = vunpack.c.h.b16 %v1959
  %v2236 = vunpack.c.l.b16 %v1960
  %v2237 = vunpack.c.h.b16 %v1960
  %v2238 = vunpack.c.l.b16 %v1961
  %v2239 = vunpack.c.h.b16 %v1961
  %v2240 = vunpack.c.l.b16 %v1962
  %v2241 = vunpack.c.h.b16 %v1962
  %v2242 = vunpack.c.l.b16 %v1963
  %v2243 = vunpack.c.h.b16 %v1963
  %v2244 = vunpack.c.l.b16 %v1964
  %v2245 = vunpack.c.h.b16 %v1964
  %v2246 = vunpack.c.l.b16 %v1965
  %v2247 = vunpack.c.h.b16 %v1965
  %v2248 = vunpack.c.l.b16 %v1966
  %v2249 = vunpack.c.h.b16 %v1966
  %v2250 = vunpack.c.l.b16 %v1967
  %v2251 = vunpack.c.h.b16 %v1967
  %v2252 = vunpack.c.l.b16 %v1968
  %v2253 = vunpack.c.h.b16 %v1968
  %v2254 = vunpack.c.l.b16 %v1969
  %v2255 = vunpack.c.h.b16 %v1969
  %v2256 = vunpack.c.l.b16 %v1970
  %v2257 = vunpack.c.h.b16 %v1970
  %v2258 = vunpack.c.l.b16 %v1971
  %v2259 = vunpack.c.h.b16 %v1971
  %v2260 = vpack.c.b16 %v2070, %v2068
  %v2261 = vpack.c.b16 %v2071, %v2069
  %v2262 = vpack.c.b16 %v2074, %v2072
  %v2263 = vpack.c.b16 %v2075, %v2073
  %v2264 = vpack.c.b16 %v2078, %v2076
  %v2265 = vpack.c.b16 %v2079, %v2077
  %v2266 = vpack.c.b16 %v2082, %v2080
  %v2267 = vpack.c.b16 %v2083, %v2081
  %v2268 = vpack.c.b16 %v2086, %v2084
  %v2269 = vpack.c.b16 %v2087, %v2085
  %v2270 = vpack.c.b16 %v2090, %v2088
  %v2271 = vpack.c.b16 %v2091, %v2089
  %v2272 = vpack.c.b16 %v2094, %v2092
  %v2273 = vpack.c.b16 %v2095, %v2093
  %v2274 = vpack.c.b16 %v2098, %v2096
  %v2275 = vpack.c.b16 %v2099, %v2097
  %v2276 = vpack.c.b16 %v2102, %v2100
  %v2277 = vpack.c.b16 %v2103, %v2101
  %v2278 = vpack.c.b16 %v2106, %v2104
  %v2279 = vpack.c.b16 %v2107, %v2105
  %v2280 = vpack.c.b16 %v2110, %v2108
  %v2281 = vpack.c.b16 %v2111, %v2109
  %v2282 = vpack.c.b16 %v2114, %v2112
  %v2283 = vpack.c.b16 %v2115, %v2113
  %v2284 = vpack.c.b16 %v2118, %v2116
  %v2285 = vpack.c.b16 %v2119, %v2117
  %v2286 = vpack.c.b16 %v2122, %v2120
  %v2287 = vpack.c.b16 %v2123, %v2121
  %v2288 = vpack.c.b16 %v2126, %v2124
  %v2289 = vpack.c.b16 %v2127, %v2125
  %v2290 = vpack.c.b16 %v2130, %v2128
  %v2291 = vpack.c.b16 %v2131, %v2129
  %v2292 = vpack.c.b16 %v2134, %v2132
  %v2293 = vpack.c.b16 %v2135, %v2133
  %v2294 = vpack.c.b16 %v2138, %v2136
  %v2295 = vpack.c.b16 %v2139, %v2137
  %v2296 = vpack.c.b16 %v2142, %v2140
  %v2297 = vpack.c.b16 %v2143, %v2141
  %v2298 = vpack.c.b16 %v2146, %v2144
  %v2299 = vpack.c.b16 %v2147, %v2145
  %v2300 = vpack.c.b16 %v2150, %v2148
  %v2301 = vpack.c.b16 %v2151, %v2149
  %v2302 = vpack.c.b16 %v2154, %v2152
  %v2303 = vpack.c.b16 %v2155, %v2153
  %v2304 = vpack.c.b16 %v2158, %v2156
  %v2305 = vpack.c.b16 %v2159, %v2157
  %v2306 = vpack.c.b16 %v2162, %v2160
  %v2307 = vpack.c.b16 %v2163, %v2161
  %v2308 = vpack.c.b16 %v2166, %v2164
  %v2309 = vpack.c.b16 %v2167, %v2165
  %v2310 = vpack.c.b16 %v2170, %v2168
  %v2311 = vpack.c.b16 %v2171, %v2169
  %v2312 = vpack.c.b16 %v2174, %v2172
  %v2313 = vpack.c.b16 %v2175, %v2173
  %v2314 = vpack.c.b16 %v2178, %v2176
  %v2315 = vpack.c.b16 %v2179, %v2177
  %v2316 = vpack.c.b16 %v2182, %v2180
  %v2317 = vpack.c.b16 %v2183, %v2181
  %v2318 = vpack.c.b16 %v2186, %v2184
  %v2319 = vpack.c.b16 %v2187, %v2185
  %v2320 = vpack.c.b16 %v2190, %v2188
  %v2321 = vpack.c.b16 %v2191, %v2189
  %v2322 = vpack.c.b16 %v2194, %v2192
  %v2323 = vpack.c.b16 %v2195, %v2193
  %v2324 = vpack.c.b16 %v2198, %v2196
  %v2325 = vpack.c.b16 %v2199, %v2197
  %v2326 = vpack.c.b16 %v2202, %v2200
  %v2327 = vpack.c.b16 %v2203, %v2201
  %v2328 = vpack.c.b16 %v2206, %v2204
  %v2329 = vpack.c.b16 %v2207, %v2205
  %v2330 = vpack.c.b16 %v2210, %v2208
  %v2331 = vpack.c.b16 %v2211, %v2209
  %v2332 = vpack.c.b16 %v2214, %v2212
  %v2333 = vpack.c.b16 %v2215, %v2213
  %v2334 = vpack.c.b16 %v2218, %v2216
  %v2335 = vpack.c.b16 %v2219, %v2217
  %v2336 = vpack.c.b16 %v2222, %v2220
  %v2337 = vpack.c.b16 %v2223, %v2221
  %v2338 = vpack.c.b16 %v2226, %v2224
  %v2339 = vpack.c.b16 %v2227, %v2225
  %v2340 = vpack.c.b16 %v2230, %v2228
  %v2341 = vpack.c.b16 %v2231, %v2229
  %v2342 = vpack.c.b16 %v2234, %v2232
  %v2343 = vpack.c.b16 %v2235, %v2233
  %v2344 = vpack.c.b16 %v2238, %v2236
  %v2345 = vpack.c.b16 %v2239, %v2237
  %v2346 = vpack.c.b16 %v2242, %v2240
  %v2347 = vpack.c.b16 %v2243, %v2241
  %v2348 = vpack.c.b16 %v2246, %v2244
  %v2349 = vpack.c.b16 %v2247, %v2245
  %v2350 = vpack.c.b16 %v2250, %v2248
  %v2351 = vpack.c.b16 %v2251, %v2249
  %v2352 = vpack.c.b16 %v2254, %v2252
  %v2353 = vpack.c.b16 %v2255, %v2253
  %v2354 = vpack.c.b16 %v2258, %v2256
  %v2355 = vpack.c.b16 %v2259, %v2257
  %2452 = vmatprep.subr.bf16.mxu0 %v2275
  %2453 = vmatpush1.bf16.msra.mxu0 %v2274
  %2454 = vmatprep.subr.bf16.mxu0 %v2273
  %2455 = vmatpush1.bf16.msra.mxu0 %v2272
  %2456 = vmatprep.subr.bf16.mxu0 %v2271
  %2457 = vmatpush1.bf16.msra.mxu0 %v2270
  %2458 = vmatprep.subr.bf16.mxu0 %v2269
  %2459 = vmatpush1.bf16.msra.mxu0 %v2268
  %2460 = vmatprep.subr.bf16.mxu0 %v2267
  %2461 = vmatpush1.bf16.msra.mxu0 %v2266
  %2462 = vmatprep.subr.bf16.mxu0 %v2265
  %2463 = vmatpush1.bf16.msra.mxu0 %v2264
  %2464 = vmatprep.subr.bf16.mxu0 %v2263
  %2465 = vmatpush1.bf16.msra.mxu0 %v2262
  %2466 = vmatprep.subr.bf16.mxu0 %v2261
  %2467 = vmatpush1.bf16.msra.mxu0 %v2260
  %2468 = vmatprep.subr.bf16.mxu0 %v2291
  %2469 = vmatpush2.bf16.msra.mxu0 %v2290
  %2470 = vmatprep.subr.bf16.mxu0 %v2289
  %2471 = vmatpush2.bf16.msra.mxu0 %v2288
  %2472 = vmatprep.subr.bf16.mxu0 %v2287
  %2473 = vmatpush2.bf16.msra.mxu0 %v2286
  %2474 = vmatprep.subr.bf16.mxu0 %v2285
  %2475 = vmatpush2.bf16.msra.mxu0 %v2284
  %2476 = vmatprep.subr.bf16.mxu0 %v2283
  %2477 = vmatpush2.bf16.msra.mxu0 %v2282
  %2478 = vmatprep.subr.bf16.mxu0 %v2281
  %2479 = vmatpush2.bf16.msra.mxu0 %v2280
  %2480 = vmatprep.subr.bf16.mxu0 %v2279
  %2481 = vmatpush2.bf16.msra.mxu0 %v2278
  %2482 = vmatprep.subr.bf16.mxu0 %v2277
  %2483 = vmatpush2.bf16.msra.mxu0 %v2276
  %2484 = vmatprep.mubr.bf16.mxu0 %v1836
  %2485 = vmatmul.mubr.bf16.gmra.mxu0 %v1833
  %v2486 = vpop.f32.mrf.mxu0
  %v2487 = vadd.f32 0.0, %v2486
  %v2488 = vpop.f32.mrf.mxu0
  %v2489 = vadd.f32 0.0, %v2488
  %v2490 = vpop.f32.mrf.mxu0
  %v2491 = vadd.f32 0.0, %v2490
  %v2492 = vpop.f32.mrf.mxu0
  %v2493 = vadd.f32 0.0, %v2492
  %2494 = vmatprep.mubr.bf16.mxu0 %v1861
  %2495 = vmatmul.mubr.bf16.gmra.mxu0 %v1858
  %v2496 = vpop.f32.mrf.mxu0
  %v2497 = vadd.f32 0.0, %v2496
  %v2498 = vpop.f32.mrf.mxu0
  %v2499 = vadd.f32 0.0, %v2498
  %v2500 = vpop.f32.mrf.mxu0
  %v2501 = vadd.f32 0.0, %v2500
  %v2502 = vpop.f32.mrf.mxu0
  %v2503 = vadd.f32 0.0, %v2502
  %2504 = vdwg.mxu0
  %2505 = vmatprep.subr.bf16.mxu0 %v2307
  %2506 = vmatpush1.bf16.msra.mxu0 %v2306
  %2507 = vmatprep.subr.bf16.mxu0 %v2305
  %2508 = vmatpush1.bf16.msra.mxu0 %v2304
  %2509 = vmatprep.subr.bf16.mxu0 %v2303
  %2510 = vmatpush1.bf16.msra.mxu0 %v2302
  %2511 = vmatprep.subr.bf16.mxu0 %v2301
  %2512 = vmatpush1.bf16.msra.mxu0 %v2300
  %2513 = vmatprep.subr.bf16.mxu0 %v2299
  %2514 = vmatpush1.bf16.msra.mxu0 %v2298
  %2515 = vmatprep.subr.bf16.mxu0 %v2297
  %2516 = vmatpush1.bf16.msra.mxu0 %v2296
  %2517 = vmatprep.subr.bf16.mxu0 %v2295
  %2518 = vmatpush1.bf16.msra.mxu0 %v2294
  %2519 = vmatprep.subr.bf16.mxu0 %v2293
  %2520 = vmatpush1.bf16.msra.mxu0 %v2292
  %2521 = vmatprep.subr.bf16.mxu0 %v2323
  %2522 = vmatpush2.bf16.msra.mxu0 %v2322
  %2523 = vmatprep.subr.bf16.mxu0 %v2321
  %2524 = vmatpush2.bf16.msra.mxu0 %v2320
  %2525 = vmatprep.subr.bf16.mxu0 %v2319
  %2526 = vmatpush2.bf16.msra.mxu0 %v2318
  %2527 = vmatprep.subr.bf16.mxu0 %v2317
  %2528 = vmatpush2.bf16.msra.mxu0 %v2316
  %2529 = vmatprep.subr.bf16.mxu0 %v2315
  %2530 = vmatpush2.bf16.msra.mxu0 %v2314
  %2531 = vmatprep.subr.bf16.mxu0 %v2313
  %2532 = vmatpush2.bf16.msra.mxu0 %v2312
  %2533 = vmatprep.subr.bf16.mxu0 %v2311
  %2534 = vmatpush2.bf16.msra.mxu0 %v2310
  %2535 = vmatprep.subr.bf16.mxu0 %v2309
  %2536 = vmatpush2.bf16.msra.mxu0 %v2308
  %2537 = vmatprep.mubr.bf16.mxu0 %v1842
  %2538 = vmatmul.mubr.bf16.gmra.mxu0 %v1839
  %v2539 = vpop.f32.mrf.mxu0
  %v2540 = vadd.f32 %v2487, %v2539
  %v2541 = vpop.f32.mrf.mxu0
  %v2542 = vadd.f32 %v2489, %v2541
  %v2543 = vpop.f32.mrf.mxu0
  %v2544 = vadd.f32 %v2491, %v2543
  %v2545 = vpop.f32.mrf.mxu0
  %v2546 = vadd.f32 %v2493, %v2545
  %2547 = vmatprep.mubr.bf16.mxu0 %v1867
  %2548 = vmatmul.mubr.bf16.gmra.mxu0 %v1864
  %v2549 = vpop.f32.mrf.mxu0
  %v2550 = vadd.f32 %v2497, %v2549
  %v2551 = vpop.f32.mrf.mxu0
  %v2552 = vadd.f32 %v2499, %v2551
  %v2553 = vpop.f32.mrf.mxu0
  %v2554 = vadd.f32 %v2501, %v2553
  %v2555 = vpop.f32.mrf.mxu0
  %v2556 = vadd.f32 %v2503, %v2555
  %2557 = vdwg.mxu0
  %2558 = vmatprep.subr.bf16.mxu0 %v2339
  %2559 = vmatpush1.bf16.msra.mxu0 %v2338
  %2560 = vmatprep.subr.bf16.mxu0 %v2337
  %2561 = vmatpush1.bf16.msra.mxu0 %v2336
  %2562 = vmatprep.subr.bf16.mxu0 %v2335
  %2563 = vmatpush1.bf16.msra.mxu0 %v2334
  %2564 = vmatprep.subr.bf16.mxu0 %v2333
  %2565 = vmatpush1.bf16.msra.mxu0 %v2332
  %2566 = vmatprep.subr.bf16.mxu0 %v2331
  %2567 = vmatpush1.bf16.msra.mxu0 %v2330
  %2568 = vmatprep.subr.bf16.mxu0 %v2329
  %2569 = vmatpush1.bf16.msra.mxu0 %v2328
  %2570 = vmatprep.subr.bf16.mxu0 %v2327
  %2571 = vmatpush1.bf16.msra.mxu0 %v2326
  %2572 = vmatprep.subr.bf16.mxu0 %v2325
  %2573 = vmatpush1.bf16.msra.mxu0 %v2324
  %2574 = vmatprep.subr.bf16.mxu0 %v2355
  %2575 = vmatpush2.bf16.msra.mxu0 %v2354
  %2576 = vmatprep.subr.bf16.mxu0 %v2353
  %2577 = vmatpush2.bf16.msra.mxu0 %v2352
  %2578 = vmatprep.subr.bf16.mxu0 %v2351
  %2579 = vmatpush2.bf16.msra.mxu0 %v2350
  %2580 = vmatprep.subr.bf16.mxu0 %v2349
  %2581 = vmatpush2.bf16.msra.mxu0 %v2348
  %2582 = vmatprep.subr.bf16.mxu0 %v2347
  %2583 = vmatpush2.bf16.msra.mxu0 %v2346
  %2584 = vmatprep.subr.bf16.mxu0 %v2345
  %2585 = vmatpush2.bf16.msra.mxu0 %v2344
  %2586 = vmatprep.subr.bf16.mxu0 %v2343
  %2587 = vmatpush2.bf16.msra.mxu0 %v2342
  %2588 = vmatprep.subr.bf16.mxu0 %v2341
  %2589 = vmatpush2.bf16.msra.mxu0 %v2340
  %2590 = vmatprep.mubr.bf16.mxu0 %v1848
  %2591 = vmatmul.mubr.bf16.gmra.mxu0 %v1845
  %v2592 = vpop.f32.mrf.mxu0
  %v2593 = vadd.f32 %v2540, %v2592
  %v2594 = vpop.f32.mrf.mxu0
  %v2595 = vadd.f32 %v2542, %v2594
  %v2596 = vpop.f32.mrf.mxu0
  %v2597 = vadd.f32 %v2544, %v2596
  %v2598 = vpop.f32.mrf.mxu0
  %v2599 = vadd.f32 %v2546, %v2598
  %2600 = vmatprep.mubr.bf16.mxu0 %v1873
  %2601 = vmatmul.mubr.bf16.gmra.mxu0 %v1870
  %v2602 = vpop.f32.mrf.mxu0
  %v2603 = vadd.f32 %v2550, %v2602
  %v2604 = vpop.f32.mrf.mxu0
  %v2605 = vadd.f32 %v2552, %v2604
  %v2606 = vpop.f32.mrf.mxu0
  %v2607 = vadd.f32 %v2554, %v2606
  %v2608 = vpop.f32.mrf.mxu0
  %v2609 = vadd.f32 %v2556, %v2608
  %2610 = vdwg.mxu0
  %v2611 = vadd.f32 %v1812, %v2593
  %v2612 = vadd.f32 %v1814, %v2595
  %v2613 = vadd.f32 %v1816, %v2597
  %v2614 = vadd.f32 %v1818, %v2599
  %v2615 = vadd.f32 %v1822, %v2603
  %v2616 = vadd.f32 %v1824, %v2605
  %v2617 = vadd.f32 %v1826, %v2607
  %v2618 = vadd.f32 %v1828, %v2609
  %v2619 = vld [vmem:[%s2] ss:$4 sm:$0x3]
  %v2621 = vlaneseq
  %v2622 = vshrl.u32 %v2621, 7
  %v2623 = vsub.s32 0, %v2622
  %v2624 = vrot.slane %v2619, %v2623
  %v2625 = vlaneseq
  %v2626 = vshrl.u32 %v2625, 7
  %v2627 = vsub.s32 1, %v2626
  %v2628 = vrot.slane %v2619, %v2627
  %v2631 = vadd.f32 %v2611, %v2624
  %v2632 = vadd.f32 %v2612, %v2628
  %v2633 = vadd.f32 %v2613, %v2624
  %v2634 = vadd.f32 %v2614, %v2628
  %v2635 = vadd.f32 %v2615, %v2624
  %v2636 = vadd.f32 %v2616, %v2628
  %v2637 = vadd.f32 %v2617, %v2624
  %v2638 = vadd.f32 %v2618, %v2628
  %v2639 = vmax.f32 %v2631, 0.0
  %v2640 = vmax.f32 %v2632, 0.0
  %v2641 = vmax.f32 %v2633, 0.0
  %v2642 = vmax.f32 %v2634, 0.0
  %v2643 = vmax.f32 %v2635, 0.0
  %v2644 = vmax.f32 %v2636, 0.0
  %v2645 = vmax.f32 %v2637, 0.0
  %v2646 = vmax.f32 %v2638, 0.0
  %vm2647 = vcmp.ge.s32.totalorder %v70, 2
  %vm2648 = vcmp.ge.s32.totalorder %v71, 2
  %vm2649 = vcmp.ge.s32.totalorder %v72, 2
  %vm2650 = vcmp.ge.s32.totalorder %v73, 2
  %vm2651 = vcmp.lt.s32.totalorder %v70, 12
  %vm2652 = vcmp.lt.s32.totalorder %v71, 12
  %vm2653 = vcmp.lt.s32.totalorder %v72, 12
  %vm2654 = vcmp.lt.s32.totalorder %v73, 12
  %vm2655 = vmand %vm2647, %vm2651
  %vm2656 = vmand %vm2648, %vm2652
  %vm2657 = vmand %vm2649, %vm2653
  %vm2658 = vmand %vm2650, %vm2654
  %s2659 = scalar_lea.vmem %s2, 1
  %v2660 = vld [vmem:[%s2659] ss:$4 sm:$0x3]
  %s2661 = scalar_lea.vmem %s2, 2
  %v2662 = vld [vmem:[%s2661] ss:$4 sm:$0x3]
  %v2663 = vsel %vm2655, 1, 0
  %v2664 = vsel %vm2656, 1, 0
  %v2665 = vsel %vm2657, 1, 0
  %v2666 = vsel %vm2658, 1, 0
  %vm2667 = vcmp.eq.s32.totalorder %v2663, 1
  %vm2668 = vcmp.eq.s32.totalorder %v2664, 1
  %vm2669 = vcmp.eq.s32.totalorder %v2665, 1
  %vm2670 = vcmp.eq.s32.totalorder %v2666, 1
  %v2671 = vsel %vm2667, %v2639, 0.0
  %v2672 = vsel %vm2667, %v2640, 0.0
  %v2673 = vsel %vm2668, %v2641, 0.0
  %v2674 = vsel %vm2668, %v2642, 0.0
  %v2675 = vsel %vm2669, %v2643, 0.0
  %v2676 = vsel %vm2669, %v2644, 0.0
  %v2677 = vsel %vm2670, %v2645, 0.0
  %v2678 = vsel %vm2670, %v2646, 0.0
  %v2679 = vadd.f32 %v2671, %v2673
  %v2680 = vadd.f32 %v2679, %v2675
  %v2681 = vadd.f32 %v2680, %v2677
  %v2682 = vrot.slane %v2681, 4
  %v2683 = vadd.f32 %v2681, %v2682
  %v2684 = vrot.slane %v2683, 2
  %v2685 = vadd.f32 %v2683, %v2684
  %v2686 = vrot.slane %v2685, 1
  %v2687 = vadd.f32 %v2685, %v2686
  %v2688 = vadd.f32 %v2672, %v2674
  %v2689 = vadd.f32 %v2688, %v2676
  %v2690 = vadd.f32 %v2689, %v2678
  %v2691 = vrot.slane %v2690, 4
  %v2692 = vadd.f32 %v2690, %v2691
  %v2693 = vrot.slane %v2692, 2
  %v2694 = vadd.f32 %v2692, %v2693
  %v2695 = vrot.slane %v2694, 1
  %v2696 = vadd.f32 %v2694, %v2695
  %v2697 = vmul.f32 %v2687, 0.05
  %v2698 = vmul.f32 %v2696, 0.05
  %v2699 = vmul.f32 %v2671, %v2671
  %v2700 = vmul.f32 %v2672, %v2672
  %v2701 = vmul.f32 %v2673, %v2673
  %v2702 = vmul.f32 %v2674, %v2674
  %v2703 = vmul.f32 %v2675, %v2675
  %v2704 = vmul.f32 %v2676, %v2676
  %v2705 = vmul.f32 %v2677, %v2677
  %v2706 = vmul.f32 %v2678, %v2678
  %v2707 = vadd.f32 %v2699, %v2701
  %v2708 = vadd.f32 %v2707, %v2703
  %v2709 = vadd.f32 %v2708, %v2705
  %v2710 = vrot.slane %v2709, 4
  %v2711 = vadd.f32 %v2709, %v2710
  %v2712 = vrot.slane %v2711, 2
  %v2713 = vadd.f32 %v2711, %v2712
  %v2714 = vrot.slane %v2713, 1
  %v2715 = vadd.f32 %v2713, %v2714
  %v2716 = vadd.f32 %v2700, %v2702
  %v2717 = vadd.f32 %v2716, %v2704
  %v2718 = vadd.f32 %v2717, %v2706
  %v2719 = vrot.slane %v2718, 4
  %v2720 = vadd.f32 %v2718, %v2719
  %v2721 = vrot.slane %v2720, 2
  %v2722 = vadd.f32 %v2720, %v2721
  %v2723 = vrot.slane %v2722, 1
  %v2724 = vadd.f32 %v2722, %v2723
  %v2725 = vmul.f32 %v2715, 0.05
  %v2726 = vmul.f32 %v2724, 0.05
  %v2727 = vmul.f32 %v2697, %v2697
  %v2728 = vmul.f32 %v2698, %v2698
  %v2729 = vsub.f32 %v2725, %v2727
  %v2730 = vsub.f32 %v2726, %v2728
  %v2731 = vmax.f32 %v2729, 0.0
  %v2732 = vmax.f32 %v2730, 0.0
  %v2733 = vsub.f32 %v2639, %v2697
  %v2734 = vsub.f32 %v2640, %v2698
  %v2735 = vsub.f32 %v2641, %v2697
  %v2736 = vsub.f32 %v2642, %v2698
  %v2737 = vsub.f32 %v2643, %v2697
  %v2738 = vsub.f32 %v2644, %v2698
  %v2739 = vsub.f32 %v2645, %v2697
  %v2740 = vsub.f32 %v2646, %v2698
  %v2741 = vadd.f32 %v2731, 1e-05
  %v2742 = vadd.f32 %v2732, 1e-05
  %v2743 = vrsqrt.pop %v2741
  %v2744 = vrsqrt.pop %v2742
  %v2745 = vmul.f32 %v2733, %v2743
  %v2746 = vmul.f32 %v2734, %v2744
  %v2747 = vmul.f32 %v2735, %v2743
  %v2748 = vmul.f32 %v2736, %v2744
  %v2749 = vmul.f32 %v2737, %v2743
  %v2750 = vmul.f32 %v2738, %v2744
  %v2751 = vmul.f32 %v2739, %v2743
  %v2752 = vmul.f32 %v2740, %v2744
  %v2754 = vlaneseq
  %v2755 = vshrl.u32 %v2754, 7
  %v2756 = vsub.s32 0, %v2755
  %v2757 = vrot.slane %v2660, %v2756
  %v2758 = vlaneseq
  %v2759 = vshrl.u32 %v2758, 7
  %v2760 = vsub.s32 1, %v2759
  %v2761 = vrot.slane %v2660, %v2760
  %v2764 = vmul.f32 %v2745, %v2757
  %v2765 = vmul.f32 %v2746, %v2761
  %v2766 = vmul.f32 %v2747, %v2757
  %v2767 = vmul.f32 %v2748, %v2761
  %v2768 = vmul.f32 %v2749, %v2757
  %v2769 = vmul.f32 %v2750, %v2761
  %v2770 = vmul.f32 %v2751, %v2757
  %v2771 = vmul.f32 %v2752, %v2761
  %v2773 = vlaneseq
  %v2774 = vshrl.u32 %v2773, 7
  %v2775 = vsub.s32 0, %v2774
  %v2776 = vrot.slane %v2662, %v2775
  %v2777 = vlaneseq
  %v2778 = vshrl.u32 %v2777, 7
  %v2779 = vsub.s32 1, %v2778
  %v2780 = vrot.slane %v2662, %v2779
  %v2783 = vadd.f32 %v2764, %v2776
  %v2784 = vadd.f32 %v2765, %v2780
  %v2785 = vadd.f32 %v2766, %v2776
  %v2786 = vadd.f32 %v2767, %v2780
  %v2787 = vadd.f32 %v2768, %v2776
  %v2788 = vadd.f32 %v2769, %v2780
  %v2789 = vadd.f32 %v2770, %v2776
  %v2790 = vadd.f32 %v2771, %v2780
  %v2791 = vsel %vm2667, %v2783, -inf
  %v2792 = vsel %vm2667, %v2784, -inf
  %v2793 = vsel %vm2668, %v2785, -inf
  %v2794 = vsel %vm2668, %v2786, -inf
  %v2795 = vsel %vm2669, %v2787, -inf
  %v2796 = vsel %vm2669, %v2788, -inf
  %v2797 = vsel %vm2670, %v2789, -inf
  %v2798 = vsel %vm2670, %v2790, -inf
  %vm2807 = vcmask 1040384
  %v2808 = vrot.slane %v2791, 7
  %v2809 = vrot.slane %v2792, 7
  %v2810 = vrot.slane %v2793, 7
  %v2811 = vsel %vm2807, %v2808, %v2810
  %v2812 = vrot.slane %v2794, 7
  %v2813 = vsel %vm2807, %v2809, %v2812
  %v2814 = vrot.slane %v2795, 7
  %v2815 = vsel %vm2807, %v2810, %v2814
  %v2816 = vrot.slane %v2796, 7
  %v2817 = vsel %vm2807, %v2812, %v2816
  %v2818 = vrot.slane %v2797, 7
  %v2819 = vsel %vm2807, %v2814, %v2818
  %v2820 = vrot.slane %v2798, 7
  %v2821 = vsel %vm2807, %v2816, %v2820
  %v2830 = vsel %vm2807, -inf, %v2808
  %v2831 = vsel %vm2807, -inf, %v2809
  %v2832 = vmax.f32 %v2830, %v2791
  %v2833 = vmax.f32 %v2831, %v2792
  %v2834 = vmax.f32 %v2811, %v2793
  %v2835 = vmax.f32 %v2813, %v2794
  %v2836 = vmax.f32 %v2815, %v2795
  %v2837 = vmax.f32 %v2817, %v2796
  %v2838 = vmax.f32 %v2819, %v2797
  %v2839 = vmax.f32 %v2821, %v2798
  %vm2840 = vcmp.lt.s32.totalorder %v70, 13
  %vm2841 = vcmp.lt.s32.totalorder %v71, 13
  %vm2842 = vcmp.lt.s32.totalorder %v72, 13
  %vm2843 = vcmp.lt.s32.totalorder %v73, 13
  %vm2844 = vmand %vm2647, %vm2840
  %vm2845 = vmand %vm2648, %vm2841
  %vm2846 = vmand %vm2649, %vm2842
  %vm2847 = vmand %vm2650, %vm2843
  %v2848 = vsel %vm2844, 1, 0
  %v2849 = vsel %vm2845, 1, 0
  %v2850 = vsel %vm2846, 1, 0
  %v2851 = vsel %vm2847, 1, 0
  %vm2852 = vcmp.eq.s32.totalorder %v2848, 1
  %vm2853 = vcmp.eq.s32.totalorder %v2849, 1
  %vm2854 = vcmp.eq.s32.totalorder %v2850, 1
  %vm2855 = vcmp.eq.s32.totalorder %v2851, 1
  %v2856 = vsel %vm2852, %v2832, 0.0
  %v2857 = vsel %vm2852, %v2833, 0.0
  %v2858 = vsel %vm2853, %v2834, 0.0
  %v2859 = vsel %vm2853, %v2835, 0.0
  %v2860 = vsel %vm2854, %v2836, 0.0
  %v2861 = vsel %vm2854, %v2837, 0.0
  %v2862 = vsel %vm2855, %v2838, 0.0
  %v2863 = vsel %vm2855, %v2839, 0.0
  %v2864 = vpack.c.bf16 %v2858, %v2856
  %v2865 = vpack.c.bf16 %v2859, %v2857
  %v2866 = vpack.c.bf16 %v2862, %v2860
  %v2867 = vpack.c.bf16 %v2863, %v2861
  %v2868 = vld [vmem:[%s3] sm:$0xf]
  %v2869 = vld [vmem:[%s3 + $0x4] sm:$0xf]
  %v2870 = vld [vmem:[%s3 + $0x8] sm:$0xf]
  %v2871 = vld [vmem:[%s3 + $0xc] sm:$0xf]
  %v2872 = vld [vmem:[%s3 + $0x10] sm:$0xf]
  %v2873 = vld [vmem:[%s3 + $0x14] sm:$0xf]
  %v2874 = vld [vmem:[%s3 + $0x18] sm:$0xf]
  %v2875 = vld [vmem:[%s3 + $0x1c] sm:$0xf]
  %v2876 = vld [vmem:[%s3 + $0x20] sm:$0xf]
  %v2877 = vld [vmem:[%s3 + $0x24] sm:$0xf]
  %v2878 = vld [vmem:[%s3 + $0x28] sm:$0xf]
  %v2879 = vld [vmem:[%s3 + $0x2c] sm:$0xf]
  %v2880 = vld [vmem:[%s3 + $0x30] sm:$0xf]
  %v2881 = vld [vmem:[%s3 + $0x34] sm:$0xf]
  %v2882 = vld [vmem:[%s3 + $0x38] sm:$0xf]
  %v2883 = vld [vmem:[%s3 + $0x3c] sm:$0xf]
  %v2884 = vld [vmem:[%s3 + $0x40] sm:$0xf]
  %v2885 = vld [vmem:[%s3 + $0x44] sm:$0xf]
  %v2886 = vld [vmem:[%s3 + $0x48] sm:$0xf]
  %v2887 = vld [vmem:[%s3 + $0x4c] sm:$0xf]
  %v2888 = vld [vmem:[%s3 + $0x50] sm:$0xf]
  %v2889 = vld [vmem:[%s3 + $0x54] sm:$0xf]
  %v2890 = vld [vmem:[%s3 + $0x58] sm:$0xf]
  %v2891 = vld [vmem:[%s3 + $0x5c] sm:$0xf]
  %v2892 = vld [vmem:[%s3 + $0x60] sm:$0xf]
  %v2893 = vld [vmem:[%s3 + $0x64] sm:$0xf]
  %v2894 = vld [vmem:[%s3 + $0x68] sm:$0xf]
  %v2895 = vld [vmem:[%s3 + $0x6c] sm:$0xf]
  %v2896 = vld [vmem:[%s3 + $0x70] sm:$0xf]
  %v2897 = vld [vmem:[%s3 + $0x74] sm:$0xf]
  %v2898 = vld [vmem:[%s3 + $0x78] sm:$0xf]
  %v2899 = vld [vmem:[%s3 + $0x7c] sm:$0xf]
  %v2901 = vshrl.u32 %v2864, 16
  %v2903 = vshll.u32 %v2864, 16
  %v2905 = vrot.slane %v2903, 1
  %v2906 = vor.u32 %v2901, %v2905
  %v2908 = vshll.u32 %v2866, 16
  %v2910 = vrot.slane %v2908, 1
  %v2911 = vsel %vm332, %v2906, %v2910
  %v2913 = vshrl.u32 %v2865, 16
  %v2915 = vshll.u32 %v2865, 16
  %v2917 = vrot.slane %v2915, 1
  %v2918 = vor.u32 %v2913, %v2917
  %v2920 = vshll.u32 %v2867, 16
  %v2922 = vrot.slane %v2920, 1
  %v2923 = vsel %vm332, %v2918, %v2922
  %v2924 = vshrl.u32 %v2866, 16
  %v2926 = vor.u32 %v2924, %v2910
  %v2927 = vshrl.u32 %v2867, 16
  %v2929 = vor.u32 %v2927, %v2922
  %v2934 = vsel %vm436, %v2926, 0
  %v2935 = vsel %vm436, %v2929, 0
  %s2936 = scalar_lea.vmem %s3, 128
  %v2937 = vld [vmem:[%s2936] sm:$0xf]
  %v2938 = vld [vmem:[%s2936 + $0x4] sm:$0xf]
  %v2939 = vld [vmem:[%s2936 + $0x8] sm:$0xf]
  %v2940 = vld [vmem:[%s2936 + $0xc] sm:$0xf]
  %v2941 = vld [vmem:[%s2936 + $0x10] sm:$0xf]
  %v2942 = vld [vmem:[%s2936 + $0x14] sm:$0xf]
  %v2943 = vld [vmem:[%s2936 + $0x18] sm:$0xf]
  %v2944 = vld [vmem:[%s2936 + $0x1c] sm:$0xf]
  %v2945 = vld [vmem:[%s2936 + $0x20] sm:$0xf]
  %v2946 = vld [vmem:[%s2936 + $0x24] sm:$0xf]
  %v2947 = vld [vmem:[%s2936 + $0x28] sm:$0xf]
  %v2948 = vld [vmem:[%s2936 + $0x2c] sm:$0xf]
  %v2949 = vld [vmem:[%s2936 + $0x30] sm:$0xf]
  %v2950 = vld [vmem:[%s2936 + $0x34] sm:$0xf]
  %v2951 = vld [vmem:[%s2936 + $0x38] sm:$0xf]
  %v2952 = vld [vmem:[%s2936 + $0x3c] sm:$0xf]
  %v2953 = vld [vmem:[%s2936 + $0x40] sm:$0xf]
  %v2954 = vld [vmem:[%s2936 + $0x44] sm:$0xf]
  %v2955 = vld [vmem:[%s2936 + $0x48] sm:$0xf]
  %v2956 = vld [vmem:[%s2936 + $0x4c] sm:$0xf]
  %v2957 = vld [vmem:[%s2936 + $0x50] sm:$0xf]
  %v2958 = vld [vmem:[%s2936 + $0x54] sm:$0xf]
  %v2959 = vld [vmem:[%s2936 + $0x58] sm:$0xf]
  %v2960 = vld [vmem:[%s2936 + $0x5c] sm:$0xf]
  %v2961 = vld [vmem:[%s2936 + $0x60] sm:$0xf]
  %v2962 = vld [vmem:[%s2936 + $0x64] sm:$0xf]
  %v2963 = vld [vmem:[%s2936 + $0x68] sm:$0xf]
  %v2964 = vld [vmem:[%s2936 + $0x6c] sm:$0xf]
  %v2965 = vld [vmem:[%s2936 + $0x70] sm:$0xf]
  %v2966 = vld [vmem:[%s2936 + $0x74] sm:$0xf]
  %v2967 = vld [vmem:[%s2936 + $0x78] sm:$0xf]
  %v2968 = vld [vmem:[%s2936 + $0x7c] sm:$0xf]
  %v3001 = vunpack.c.l.b16 %v2937
  %v3002 = vunpack.c.l.b16 %v2938
  %v3003 = vunpack.c.l.b16 %v2939
  %v3004 = vunpack.c.l.b16 %v2940
  %v3005 = vunpack.c.l.b16 %v2941
  %v3006 = vunpack.c.l.b16 %v2942
  %v3007 = vunpack.c.l.b16 %v2943
  %v3008 = vunpack.c.l.b16 %v2944
  %v3009 = vunpack.c.l.b16 %v2945
  %v3010 = vunpack.c.l.b16 %v2946
  %v3011 = vunpack.c.l.b16 %v2947
  %v3012 = vunpack.c.l.b16 %v2948
  %v3013 = vunpack.c.l.b16 %v2949
  %v3014 = vunpack.c.l.b16 %v2950
  %v3015 = vunpack.c.l.b16 %v2951
  %v3016 = vunpack.c.l.b16 %v2952
  %v3017 = vunpack.c.l.b16 %v2953
  %v3018 = vunpack.c.l.b16 %v2954
  %v3019 = vunpack.c.l.b16 %v2955
  %v3020 = vunpack.c.l.b16 %v2956
  %v3021 = vunpack.c.l.b16 %v2957
  %v3022 = vunpack.c.l.b16 %v2958
  %v3023 = vunpack.c.l.b16 %v2959
  %v3024 = vunpack.c.l.b16 %v2960
  %v3025 = vunpack.c.l.b16 %v2961
  %v3026 = vunpack.c.l.b16 %v2962
  %v3027 = vunpack.c.l.b16 %v2963
  %v3028 = vunpack.c.l.b16 %v2964
  %v3029 = vunpack.c.l.b16 %v2965
  %v3030 = vunpack.c.l.b16 %v2966
  %v3031 = vunpack.c.l.b16 %v2967
  %v3032 = vunpack.c.l.b16 %v2968
  %v3033 = vpack.c.b16 %v3002, %v3001
  %v3034 = vpack.c.b16 %v3004, %v3003
  %v3035 = vpack.c.b16 %v3006, %v3005
  %v3036 = vpack.c.b16 %v3008, %v3007
  %v3037 = vpack.c.b16 %v3010, %v3009
  %v3038 = vpack.c.b16 %v3012, %v3011
  %v3039 = vpack.c.b16 %v3014, %v3013
  %v3040 = vpack.c.b16 %v3016, %v3015
  %v3041 = vpack.c.b16 %v3018, %v3017
  %v3042 = vpack.c.b16 %v3020, %v3019
  %v3043 = vpack.c.b16 %v3022, %v3021
  %v3044 = vpack.c.b16 %v3024, %v3023
  %v3045 = vpack.c.b16 %v3026, %v3025
  %v3046 = vpack.c.b16 %v3028, %v3027
  %v3047 = vpack.c.b16 %v3030, %v3029
  %v3048 = vpack.c.b16 %v3032, %v3031
  %3065 = vmatprep.subr.bf16.mxu0 0
  %3066 = vmatpush1.bf16.msra.mxu0 %v3040
  %3067 = vmatprep.subr.bf16.mxu0 0
  %3068 = vmatpush1.bf16.msra.mxu0 %v3039
  %3069 = vmatprep.subr.bf16.mxu0 0
  %3070 = vmatpush1.bf16.msra.mxu0 %v3038
  %3071 = vmatprep.subr.bf16.mxu0 0
  %3072 = vmatpush1.bf16.msra.mxu0 %v3037
  %3073 = vmatprep.subr.bf16.mxu0 0
  %3074 = vmatpush1.bf16.msra.mxu0 %v3036
  %3075 = vmatprep.subr.bf16.mxu0 0
  %3076 = vmatpush1.bf16.msra.mxu0 %v3035
  %3077 = vmatprep.subr.bf16.mxu0 0
  %3078 = vmatpush1.bf16.msra.mxu0 %v3034
  %3079 = vmatprep.subr.bf16.mxu0 0
  %3080 = vmatpush1.bf16.msra.mxu0 %v3033
  %3081 = vmatprep.subr.bf16.mxu0 0
  %3082 = vmatpush2.bf16.msra.mxu0 %v3048
  %3083 = vmatprep.subr.bf16.mxu0 0
  %3084 = vmatpush2.bf16.msra.mxu0 %v3047
  %3085 = vmatprep.subr.bf16.mxu0 0
  %3086 = vmatpush2.bf16.msra.mxu0 %v3046
  %3087 = vmatprep.subr.bf16.mxu0 0
  %3088 = vmatpush2.bf16.msra.mxu0 %v3045
  %3089 = vmatprep.subr.bf16.mxu0 0
  %3090 = vmatpush2.bf16.msra.mxu0 %v3044
  %3091 = vmatprep.subr.bf16.mxu0 0
  %3092 = vmatpush2.bf16.msra.mxu0 %v3043
  %3093 = vmatprep.subr.bf16.mxu0 0
  %3094 = vmatpush2.bf16.msra.mxu0 %v3042
  %3095 = vmatprep.subr.bf16.mxu0 0
  %3096 = vmatpush2.bf16.msra.mxu0 %v3041
  %3097 = vmatprep.mubr.bf16.mxu0 %v2923
  %3098 = vmatmul.mubr.bf16.gmra.mxu0 %v2911
  %v3099 = vpop.f32.mrf.mxu0
  %v3100 = vadd.f32 0.0, %v3099
  %v3101 = vpop.f32.mrf.mxu0
  %v3102 = vpop.f32.mrf.mxu0
  %v3103 = vadd.f32 0.0, %v3102
  %v3104 = vpop.f32.mrf.mxu0
  %3105 = vmatprep.mubr.bf16.mxu0 %v2935
  %3106 = vmatmul.mubr.bf16.gmra.mxu0 %v2934
  %v3107 = vpop.f32.mrf.mxu0
  %v3108 = vadd.f32 0.0, %v3107
  %v3109 = vpop.f32.mrf.mxu0
  %v3110 = vpop.f32.mrf.mxu0
  %v3111 = vadd.f32 0.0, %v3110
  %v3112 = vpop.f32.mrf.mxu0
  %3113 = vdwg.mxu0
  %v3146 = vunpack.c.l.b16 %v2868
  %v3147 = vunpack.c.l.b16 %v2869
  %v3148 = vunpack.c.l.b16 %v2870
  %v3149 = vunpack.c.l.b16 %v2871
  %v3150 = vunpack.c.l.b16 %v2872
  %v3151 = vunpack.c.l.b16 %v2873
  %v3152 = vunpack.c.l.b16 %v2874
  %v3153 = vunpack.c.l.b16 %v2875
  %v3154 = vunpack.c.l.b16 %v2876
  %v3155 = vunpack.c.l.b16 %v2877
  %v3156 = vunpack.c.l.b16 %v2878
  %v3157 = vunpack.c.l.b16 %v2879
  %v3158 = vunpack.c.l.b16 %v2880
  %v3159 = vunpack.c.l.b16 %v2881
  %v3160 = vunpack.c.l.b16 %v2882
  %v3161 = vunpack.c.l.b16 %v2883
  %v3162 = vunpack.c.l.b16 %v2884
  %v3163 = vunpack.c.l.b16 %v2885
  %v3164 = vunpack.c.l.b16 %v2886
  %v3165 = vunpack.c.l.b16 %v2887
  %v3166 = vunpack.c.l.b16 %v2888
  %v3167 = vunpack.c.l.b16 %v2889
  %v3168 = vunpack.c.l.b16 %v2890
  %v3169 = vunpack.c.l.b16 %v2891
  %v3170 = vunpack.c.l.b16 %v2892
  %v3171 = vunpack.c.l.b16 %v2893
  %v3172 = vunpack.c.l.b16 %v2894
  %v3173 = vunpack.c.l.b16 %v2895
  %v3174 = vunpack.c.l.b16 %v2896
  %v3175 = vunpack.c.l.b16 %v2897
  %v3176 = vunpack.c.l.b16 %v2898
  %v3177 = vunpack.c.l.b16 %v2899
  %v3178 = vpack.c.b16 %v3147, %v3146
  %v3179 = vpack.c.b16 %v3149, %v3148
  %v3180 = vpack.c.b16 %v3151, %v3150
  %v3181 = vpack.c.b16 %v3153, %v3152
  %v3182 = vpack.c.b16 %v3155, %v3154
  %v3183 = vpack.c.b16 %v3157, %v3156
  %v3184 = vpack.c.b16 %v3159, %v3158
  %v3185 = vpack.c.b16 %v3161, %v3160
  %v3186 = vpack.c.b16 %v3163, %v3162
  %v3187 = vpack.c.b16 %v3165, %v3164
  %v3188 = vpack.c.b16 %v3167, %v3166
  %v3189 = vpack.c.b16 %v3169, %v3168
  %v3190 = vpack.c.b16 %v3171, %v3170
  %v3191 = vpack.c.b16 %v3173, %v3172
  %v3192 = vpack.c.b16 %v3175, %v3174
  %v3193 = vpack.c.b16 %v3177, %v3176
  %3210 = vmatprep.subr.bf16.mxu0 0
  %3211 = vmatpush1.bf16.msra.mxu0 %v3185
  %3212 = vmatprep.subr.bf16.mxu0 0
  %3213 = vmatpush1.bf16.msra.mxu0 %v3184
  %3214 = vmatprep.subr.bf16.mxu0 0
  %3215 = vmatpush1.bf16.msra.mxu0 %v3183
  %3216 = vmatprep.subr.bf16.mxu0 0
  %3217 = vmatpush1.bf16.msra.mxu0 %v3182
  %3218 = vmatprep.subr.bf16.mxu0 0
  %3219 = vmatpush1.bf16.msra.mxu0 %v3181
  %3220 = vmatprep.subr.bf16.mxu0 0
  %3221 = vmatpush1.bf16.msra.mxu0 %v3180
  %3222 = vmatprep.subr.bf16.mxu0 0
  %3223 = vmatpush1.bf16.msra.mxu0 %v3179
  %3224 = vmatprep.subr.bf16.mxu0 0
  %3225 = vmatpush1.bf16.msra.mxu0 %v3178
  %3226 = vmatprep.subr.bf16.mxu0 0
  %3227 = vmatpush2.bf16.msra.mxu0 %v3193
  %3228 = vmatprep.subr.bf16.mxu0 0
  %3229 = vmatpush2.bf16.msra.mxu0 %v3192
  %3230 = vmatprep.subr.bf16.mxu0 0
  %3231 = vmatpush2.bf16.msra.mxu0 %v3191
  %3232 = vmatprep.subr.bf16.mxu0 0
  %3233 = vmatpush2.bf16.msra.mxu0 %v3190
  %3234 = vmatprep.subr.bf16.mxu0 0
  %3235 = vmatpush2.bf16.msra.mxu0 %v3189
  %3236 = vmatprep.subr.bf16.mxu0 0
  %3237 = vmatpush2.bf16.msra.mxu0 %v3188
  %3238 = vmatprep.subr.bf16.mxu0 0
  %3239 = vmatpush2.bf16.msra.mxu0 %v3187
  %3240 = vmatprep.subr.bf16.mxu0 0
  %3241 = vmatpush2.bf16.msra.mxu0 %v3186
  %3242 = vmatprep.mubr.bf16.mxu0 %v2865
  %3243 = vmatmul.mubr.bf16.gmra.mxu0 %v2864
  %v3244 = vpop.f32.mrf.mxu0
  %v3245 = vadd.f32 %v3100, %v3244
  %v3246 = vpop.f32.mrf.mxu0
  %v3247 = vpop.f32.mrf.mxu0
  %v3248 = vadd.f32 %v3103, %v3247
  %v3249 = vpop.f32.mrf.mxu0
  %3250 = vmatprep.mubr.bf16.mxu0 %v2867
  %3251 = vmatmul.mubr.bf16.gmra.mxu0 %v2866
  %v3252 = vpop.f32.mrf.mxu0
  %v3253 = vadd.f32 %v3108, %v3252
  %v3254 = vpop.f32.mrf.mxu0
  %v3255 = vpop.f32.mrf.mxu0
  %v3256 = vadd.f32 %v3111, %v3255
  %v3257 = vpop.f32.mrf.mxu0
  %3258 = vdwg.mxu0
  %v3263 = vrot.slane %v2864, 1
  %v3264 = vrot.slane %v2866, 1
  %v3265 = vsel %vm1830, %v3263, %v3264
  %v3266 = vrot.slane %v2865, 1
  %v3267 = vrot.slane %v2867, 1
  %v3268 = vsel %vm1830, %v3266, %v3267
  %v3272 = vsel %vm1855, %v3264, 0
  %v3275 = vsel %vm1855, %v3267, 0
  %s3277 = scalar_lea.vmem %s3, 256
  %v3278 = vld [vmem:[%s3277] sm:$0xf]
  %v3279 = vld [vmem:[%s3277 + $0x4] sm:$0xf]
  %v3280 = vld [vmem:[%s3277 + $0x8] sm:$0xf]
  %v3281 = vld [vmem:[%s3277 + $0xc] sm:$0xf]
  %v3282 = vld [vmem:[%s3277 + $0x10] sm:$0xf]
  %v3283 = vld [vmem:[%s3277 + $0x14] sm:$0xf]
  %v3284 = vld [vmem:[%s3277 + $0x18] sm:$0xf]
  %v3285 = vld [vmem:[%s3277 + $0x1c] sm:$0xf]
  %v3286 = vld [vmem:[%s3277 + $0x20] sm:$0xf]
  %v3287 = vld [vmem:[%s3277 + $0x24] sm:$0xf]
  %v3288 = vld [vmem:[%s3277 + $0x28] sm:$0xf]
  %v3289 = vld [vmem:[%s3277 + $0x2c] sm:$0xf]
  %v3290 = vld [vmem:[%s3277 + $0x30] sm:$0xf]
  %v3291 = vld [vmem:[%s3277 + $0x34] sm:$0xf]
  %v3292 = vld [vmem:[%s3277 + $0x38] sm:$0xf]
  %v3293 = vld [vmem:[%s3277 + $0x3c] sm:$0xf]
  %v3294 = vld [vmem:[%s3277 + $0x40] sm:$0xf]
  %v3295 = vld [vmem:[%s3277 + $0x44] sm:$0xf]
  %v3296 = vld [vmem:[%s3277 + $0x48] sm:$0xf]
  %v3297 = vld [vmem:[%s3277 + $0x4c] sm:$0xf]
  %v3298 = vld [vmem:[%s3277 + $0x50] sm:$0xf]
  %v3299 = vld [vmem:[%s3277 + $0x54] sm:$0xf]
  %v3300 = vld [vmem:[%s3277 + $0x58] sm:$0xf]
  %v3301 = vld [vmem:[%s3277 + $0x5c] sm:$0xf]
  %v3302 = vld [vmem:[%s3277 + $0x60] sm:$0xf]
  %v3303 = vld [vmem:[%s3277 + $0x64] sm:$0xf]
  %v3304 = vld [vmem:[%s3277 + $0x68] sm:$0xf]
  %v3305 = vld [vmem:[%s3277 + $0x6c] sm:$0xf]
  %v3306 = vld [vmem:[%s3277 + $0x70] sm:$0xf]
  %v3307 = vld [vmem:[%s3277 + $0x74] sm:$0xf]
  %v3308 = vld [vmem:[%s3277 + $0x78] sm:$0xf]
  %v3309 = vld [vmem:[%s3277 + $0x7c] sm:$0xf]
  %v3342 = vunpack.c.l.b16 %v3278
  %v3343 = vunpack.c.l.b16 %v3279
  %v3344 = vunpack.c.l.b16 %v3280
  %v3345 = vunpack.c.l.b16 %v3281
  %v3346 = vunpack.c.l.b16 %v3282
  %v3347 = vunpack.c.l.b16 %v3283
  %v3348 = vunpack.c.l.b16 %v3284
  %v3349 = vunpack.c.l.b16 %v3285
  %v3350 = vunpack.c.l.b16 %v3286
  %v3351 = vunpack.c.l.b16 %v3287
  %v3352 = vunpack.c.l.b16 %v3288
  %v3353 = vunpack.c.l.b16 %v3289
  %v3354 = vunpack.c.l.b16 %v3290
  %v3355 = vunpack.c.l.b16 %v3291
  %v3356 = vunpack.c.l.b16 %v3292
  %v3357 = vunpack.c.l.b16 %v3293
  %v3358 = vunpack.c.l.b16 %v3294
  %v3359 = vunpack.c.l.b16 %v3295
  %v3360 = vunpack.c.l.b16 %v3296
  %v3361 = vunpack.c.l.b16 %v3297
  %v3362 = vunpack.c.l.b16 %v3298
  %v3363 = vunpack.c.l.b16 %v3299
  %v3364 = vunpack.c.l.b16 %v3300
  %v3365 = vunpack.c.l.b16 %v3301
  %v3366 = vunpack.c.l.b16 %v3302
  %v3367 = vunpack.c.l.b16 %v3303
  %v3368 = vunpack.c.l.b16 %v3304
  %v3369 = vunpack.c.l.b16 %v3305
  %v3370 = vunpack.c.l.b16 %v3306
  %v3371 = vunpack.c.l.b16 %v3307
  %v3372 = vunpack.c.l.b16 %v3308
  %v3373 = vunpack.c.l.b16 %v3309
  %v3374 = vpack.c.b16 %v3343, %v3342
  %v3375 = vpack.c.b16 %v3345, %v3344
  %v3376 = vpack.c.b16 %v3347, %v3346
  %v3377 = vpack.c.b16 %v3349, %v3348
  %v3378 = vpack.c.b16 %v3351, %v3350
  %v3379 = vpack.c.b16 %v3353, %v3352
  %v3380 = vpack.c.b16 %v3355, %v3354
  %v3381 = vpack.c.b16 %v3357, %v3356
  %v3382 = vpack.c.b16 %v3359, %v3358
  %v3383 = vpack.c.b16 %v3361, %v3360
  %v3384 = vpack.c.b16 %v3363, %v3362
  %v3385 = vpack.c.b16 %v3365, %v3364
  %v3386 = vpack.c.b16 %v3367, %v3366
  %v3387 = vpack.c.b16 %v3369, %v3368
  %v3388 = vpack.c.b16 %v3371, %v3370
  %v3389 = vpack.c.b16 %v3373, %v3372
  %3406 = vmatprep.subr.bf16.mxu0 0
  %3407 = vmatpush1.bf16.msra.mxu0 %v3381
  %3408 = vmatprep.subr.bf16.mxu0 0
  %3409 = vmatpush1.bf16.msra.mxu0 %v3380
  %3410 = vmatprep.subr.bf16.mxu0 0
  %3411 = vmatpush1.bf16.msra.mxu0 %v3379
  %3412 = vmatprep.subr.bf16.mxu0 0
  %3413 = vmatpush1.bf16.msra.mxu0 %v3378
  %3414 = vmatprep.subr.bf16.mxu0 0
  %3415 = vmatpush1.bf16.msra.mxu0 %v3377
  %3416 = vmatprep.subr.bf16.mxu0 0
  %3417 = vmatpush1.bf16.msra.mxu0 %v3376
  %3418 = vmatprep.subr.bf16.mxu0 0
  %3419 = vmatpush1.bf16.msra.mxu0 %v3375
  %3420 = vmatprep.subr.bf16.mxu0 0
  %3421 = vmatpush1.bf16.msra.mxu0 %v3374
  %3422 = vmatprep.subr.bf16.mxu0 0
  %3423 = vmatpush2.bf16.msra.mxu0 %v3389
  %3424 = vmatprep.subr.bf16.mxu0 0
  %3425 = vmatpush2.bf16.msra.mxu0 %v3388
  %3426 = vmatprep.subr.bf16.mxu0 0
  %3427 = vmatpush2.bf16.msra.mxu0 %v3387
  %3428 = vmatprep.subr.bf16.mxu0 0
  %3429 = vmatpush2.bf16.msra.mxu0 %v3386
  %3430 = vmatprep.subr.bf16.mxu0 0
  %3431 = vmatpush2.bf16.msra.mxu0 %v3385
  %3432 = vmatprep.subr.bf16.mxu0 0
  %3433 = vmatpush2.bf16.msra.mxu0 %v3384
  %3434 = vmatprep.subr.bf16.mxu0 0
  %3435 = vmatpush2.bf16.msra.mxu0 %v3383
  %3436 = vmatprep.subr.bf16.mxu0 0
  %3437 = vmatpush2.bf16.msra.mxu0 %v3382
  %3438 = vmatprep.mubr.bf16.mxu0 %v3268
  %3439 = vmatmul.mubr.bf16.gmra.mxu0 %v3265
  %v3440 = vpop.f32.mrf.mxu0
  %v3441 = vadd.f32 0.0, %v3440
  %v3442 = vpop.f32.mrf.mxu0
  %v3443 = vpop.f32.mrf.mxu0
  %v3444 = vadd.f32 0.0, %v3443
  %v3445 = vpop.f32.mrf.mxu0
  %3446 = vmatprep.mubr.bf16.mxu0 %v3275
  %3447 = vmatmul.mubr.bf16.gmra.mxu0 %v3272
  %v3448 = vpop.f32.mrf.mxu0
  %v3449 = vadd.f32 0.0, %v3448
  %v3450 = vpop.f32.mrf.mxu0
  %v3451 = vpop.f32.mrf.mxu0
  %v3452 = vadd.f32 0.0, %v3451
  %v3453 = vpop.f32.mrf.mxu0
  %3454 = vdwg.mxu0
  %v3455 = vadd.f32 %v3245, %v3441
  %v3456 = vadd.f32 %v3248, %v3444
  %v3457 = vadd.f32 %v3253, %v3449
  %v3458 = vadd.f32 %v3256, %v3452
  %v3459 = vld [vmem:[%s4] sm:$0x1]
  %v3460 = vlaneseq
  %v3461 = vshrl.u32 %v3460, 7
  %v3462 = vsub.s32 0, %v3461
  %v3463 = vrot.slane %v3459, %v3462
  %v3464 = vadd.f32 %v3455, %v3463
  %v3465 = vadd.f32 %v3456, %v3463
  %v3466 = vadd.f32 %v3457, %v3463
  %v3467 = vadd.f32 %v3458, %v3463
  %v3468 = vld [vmem:[%s4 + $0x1] sm:$0x1]
  %v3469 = vld [vmem:[%s4 + $0x2] sm:$0x1]
  %v3470 = vsel %vm2840, 1, 0
  %v3471 = vsel %vm2841, 1, 0
  %v3472 = vsel %vm2842, 1, 0
  %v3473 = vsel %vm2843, 1, 0
  %vm3474 = vcmp.eq.s32.totalorder %v3470, 1
  %vm3475 = vcmp.eq.s32.totalorder %v3471, 1
  %vm3476 = vcmp.eq.s32.totalorder %v3472, 1
  %vm3477 = vcmp.eq.s32.totalorder %v3473, 1
  %v3478 = vsel %vm3474, %v3464, 0.0
  %v3479 = vsel %vm3475, %v3465, 0.0
  %v3480 = vsel %vm3476, %v3466, 0.0
  %v3481 = vsel %vm3477, %v3467, 0.0
  %v3482 = vadd.f32 %v3478, %v3479
  %v3483 = vadd.f32 %v3482, %v3480
  %v3484 = vadd.f32 %v3483, %v3481
  %v3485 = vrot.slane %v3484, 4
  %v3486 = vadd.f32 %v3484, %v3485
  %v3487 = vrot.slane %v3486, 2
  %v3488 = vadd.f32 %v3486, %v3487
  %v3489 = vrot.slane %v3488, 1
  %v3490 = vadd.f32 %v3488, %v3489
  %v3491 = vmul.f32 %v3490, 0.03846154
  %v3492 = vmul.f32 %v3478, %v3478
  %v3493 = vmul.f32 %v3479, %v3479
  %v3494 = vmul.f32 %v3480, %v3480
  %v3495 = vmul.f32 %v3481, %v3481
  %v3496 = vadd.f32 %v3492, %v3493
  %v3497 = vadd.f32 %v3496, %v3494
  %v3498 = vadd.f32 %v3497, %v3495
  %v3499 = vrot.slane %v3498, 4
  %v3500 = vadd.f32 %v3498, %v3499
  %v3501 = vrot.slane %v3500, 2
  %v3502 = vadd.f32 %v3500, %v3501
  %v3503 = vrot.slane %v3502, 1
  %v3504 = vadd.f32 %v3502, %v3503
  %v3505 = vmul.f32 %v3504, 0.03846154
  %v3506 = vmul.f32 %v3491, %v3491
  %v3507 = vsub.f32 %v3505, %v3506
  %v3508 = vmax.f32 %v3507, 0.0
  %v3509 = vsub.f32 %v3464, %v3491
  %v3510 = vsub.f32 %v3465, %v3491
  %v3511 = vsub.f32 %v3466, %v3491
  %v3512 = vsub.f32 %v3467, %v3491
  %v3513 = vadd.f32 %v3508, 1e-05
  %v3514 = vrsqrt.pop %v3513
  %v3515 = vmul.f32 %v3509, %v3514
  %v3516 = vmul.f32 %v3510, %v3514
  %v3517 = vmul.f32 %v3511, %v3514
  %v3518 = vmul.f32 %v3512, %v3514
  %v3519 = vlaneseq
  %v3520 = vshrl.u32 %v3519, 7
  %v3521 = vsub.s32 0, %v3520
  %v3522 = vrot.slane %v3468, %v3521
  %v3523 = vmul.f32 %v3515, %v3522
  %v3524 = vmul.f32 %v3516, %v3522
  %v3525 = vmul.f32 %v3517, %v3522
  %v3526 = vmul.f32 %v3518, %v3522
  %v3527 = vlaneseq
  %v3528 = vshrl.u32 %v3527, 7
  %v3529 = vsub.s32 0, %v3528
  %v3530 = vrot.slane %v3469, %v3529
  %v3531 = vadd.f32 %v3523, %v3530
  %v3532 = vadd.f32 %v3524, %v3530
  %v3533 = vadd.f32 %v3525, %v3530
  %v3534 = vadd.f32 %v3526, %v3530
  %v3535 = vmax.f32 %v3531, 0.0
  %v3536 = vmax.f32 %v3532, 0.0
  %v3537 = vmax.f32 %v3533, 0.0
  %v3538 = vmax.f32 %v3534, 0.0
  %v3539 = vsel %vm3474, %v3535, -inf
  %v3540 = vsel %vm3475, %v3536, -inf
  %v3541 = vsel %vm3476, %v3537, -inf
  %v3542 = vsel %vm3477, %v3538, -inf
  %v3547 = vrot.slane %v3539, 7
  %v3548 = vrot.slane %v3540, 7
  %v3549 = vsel %vm2807, %v3547, %v3548
  %v3550 = vrot.slane %v3541, 7
  %v3551 = vsel %vm2807, %v3548, %v3550
  %v3552 = vrot.slane %v3542, 7
  %v3553 = vsel %vm2807, %v3550, %v3552
  %v3558 = vsel %vm2807, -inf, %v3547
  %v3559 = vmax.f32 %v3558, %v3539
  %v3560 = vmax.f32 %v3549, %v3540
  %v3561 = vmax.f32 %v3551, %v3541
  %v3562 = vmax.f32 %v3553, %v3542
  %vm3563 = vcmp.lt.s32.totalorder %v70, 14
  %vm3564 = vcmp.lt.s32.totalorder %v71, 14
  %vm3565 = vcmp.lt.s32.totalorder %v72, 14
  %vm3566 = vcmp.lt.s32.totalorder %v73, 14
  %v3567 = vsel %vm3563, 1, 0
  %v3568 = vsel %vm3564, 1, 0
  %v3569 = vsel %vm3565, 1, 0
  %v3570 = vsel %vm3566, 1, 0
  %vm3571 = vcmp.eq.s32.totalorder %v3567, 1
  %vm3572 = vcmp.eq.s32.totalorder %v3568, 1
  %vm3573 = vcmp.eq.s32.totalorder %v3569, 1
  %vm3574 = vcmp.eq.s32.totalorder %v3570, 1
  %v3575 = vsel %vm3571, %v3559, 0.0
  %v3576 = vsel %vm3572, %v3560, 0.0
  %v3577 = vsel %vm3573, %v3561, 0.0
  %v3578 = vsel %vm3574, %v3562, 0.0
  %3579 = vst [vmem:[%s5] sm:$0xff] %v3575
  %3580 = vst [vmem:[%s5 + $0x8] sm:$0xff] %v3576
  %3581 = vst [vmem:[%s5 + $0x10] sm:$0xff] %v3577
  %3582 = vst [vmem:[%s5 + $0x18] sm:$0xff] %v3578
  // Predicated region
  $region22: #{cnn_forward.1} parent=0 // pred_check
    _
  $region23: #{cnn_forward.1} parent=0 // pred_check_branch
    %3584 = sbr.rel (0) target = $region25
  $region24: #{cnn_forward.1} parent=0 // pred_region
    _
  $region25: #{cnn_forward.1} parent=0 // pred_fallthru
    _
  // Predicated region
  $region26: #{cnn_forward.1} parent=0 // pred_check
    _
  $region27: #{cnn_forward.1} parent=0 // pred_check_branch
    %3586 = sbr.rel (0) target = $region29
  $region28: #{cnn_forward.1} parent=0 // pred_region
    _
  $region29: #{cnn_forward.1} parent=0 // pred_fallthru
    _

</llo_original>
